<compile_context>
chip_gen: v6e
topology: v6e:2x2x1
jax: 0.10.0
libtpu: 0.0.40
codegen_flags: <defaults>
</compile_context>

<pallas_src>
import math

import jax
import jax.numpy as jnp
from jax import lax
from jax.experimental import pallas as pl
from jax.experimental.pallas import tpu as pltpu


def _softplus(x):
    # softplus that lowers cleanly in Mosaic (exp/log only), numerically safe.
    return jnp.where(x > 20.0, x, jnp.log(1.0 + jnp.exp(jnp.minimum(x, 20.0))))


def _make_mamba_kernel(L, S, di, K, unroll):
    """Build the kernel closed over static sizes and the unroll factor."""
    Sh = S // 2  # packed state: h_packed[r, j] = h[chan=j%di, state=r + Sh*(j>=di)]

    def kernel(x_ref, w_in_ref, b_in_ref, w_conv_ref, b_conv_ref,
               w_dbc_ref, b_dt_ref, a_t_ref, d_ref, w_out_ref,
               o_ref, dlt_ref, du_ref, bc_ref, yp_ref):
        x = x_ref[0]                                   # (L, C) f32, one batch element

        # ---- LayerNorm statistics (gamma/beta folded into in_proj) ----
        mu = jnp.mean(x, axis=-1, keepdims=True)
        xc = x - mu
        var = jnp.mean(xc * xc, axis=-1, keepdims=True)
        x_hat = xc * lax.rsqrt(var + 1e-5)

        # ---- in_proj with LN affine folded in -> (x, z) ----
        xz = jnp.dot(x_hat, w_in_ref[...],
                     preferred_element_type=jnp.float32) + b_in_ref[...]   # (L, 2*di)
        xpart = xz[:, :di]
        zpart = xz[:, di:]

        # ---- causal depthwise conv1d (pad=K-1, truncated) via XLU rolls + masks ----
        wconv = w_conv_ref[...]                        # (K, di)
        row = lax.broadcasted_iota(jnp.int32, (L, di), 0)
        acc = b_conv_ref[...] + xpart * wconv[K - 1:K, :]       # shift-0 tap
        for k in range(K - 1):
            s = K - 1 - k                              # shift toward higher indices
            rolled = pltpu.roll(xpart, shift=s, axis=0)
            rolled = jnp.where(row >= s, rolled, 0.0)  # mask wrapped first s rows
            acc = acc + rolled * wconv[k:k + 1, :]
        u = acc * jax.nn.sigmoid(acc)                  # SiLU, (L, di)

        # ---- fused (dt_proj o x_proj[:R]) | B | C in one MXU matmul ----
        dbc = jnp.dot(u, w_dbc_ref[...],
                      preferred_element_type=jnp.float32)                  # (L, di+2S)
        delta = _softplus(dbc[:, :di] + b_dt_ref[...])                     # (L, di)
        dlt_ref[...] = delta
        du_ref[...] = delta * u
        bc_ref[...] = dbc[:, di:]                      # (L, 2S) = [B | C]

        # ---- packed A^T halves (hoisted, loop-invariant) ----
        a_t = a_t_ref[...]                             # (S, di): A^T, A = -exp(A_log)
        a_lo = a_t[:Sh]                                # states 0..Sh-1     (Sh, di)
        a_hi = a_t[Sh:]                                # states Sh..S-1     (Sh, di)

        # ---- fused serial selective scan over windows of `unroll` steps ----
        def body(i, h):
            base = pl.multiple_of(i * unroll, unroll)
            dlt_w = dlt_ref[pl.ds(base, unroll), :]    # (u, di)
            du_w = du_ref[pl.ds(base, unroll), :]      # (u, di)
            bc_w = bc_ref[pl.ds(base, unroll), :]      # (u, 2S)
            b_lo = bc_w[:, :Sh]
            b_hi = bc_w[:, Sh:S]
            c_lo = bc_w[:, S:S + Sh]
            c_hi = bc_w[:, S + Sh:]
            # packed (u, Sh, 2*di) window tiles, built with vectorized VPU/EUP work
            dA_w = jnp.exp(jnp.concatenate(
                [dlt_w[:, None, :] * a_lo[None, :, :],
                 dlt_w[:, None, :] * a_hi[None, :, :]], axis=-1))
            dBu_w = jnp.concatenate(
                [du_w[:, None, :] * b_lo[:, :, None],
                 du_w[:, None, :] * b_hi[:, :, None]], axis=-1)
            c_w = jnp.concatenate(
                [jnp.broadcast_to(c_lo[:, :, None], (unroll, Sh, di)),
                 jnp.broadcast_to(c_hi[:, :, None], (unroll, Sh, di))], axis=-1)
            ys = []
            for j in range(unroll):
                h = dA_w[j] * h + dBu_w[j]                              # (Sh, 2*di)
                ys.append(jnp.sum(h * c_w[j], axis=0, keepdims=True))   # (1, 2*di)
            yp_ref[pl.ds(base, unroll), :] = jnp.concatenate(ys, axis=0)
            return h

        lax.fori_loop(0, L // unroll, body,
                      jnp.zeros((Sh, 2 * di), jnp.float32))

        # ---- fold packed halves, + D*u, SiLU(z) gate, out_proj ----
        yp = yp_ref[...]                               # (L, 2*di)
        y = yp[:, :di] + yp[:, di:]                    # (L, di)
        y = y + u * d_ref[...]
        y = y * (zpart * jax.nn.sigmoid(zpart))
        out = jnp.dot(y, w_out_ref[...], preferred_element_type=jnp.float32)  # (L, C)
        o_ref[...] = out.T[None, :, :]                 # (1, C, L) lane-dense store

    return kernel


def mamba_layer_forward(x, params, unroll=8):
    """x: (B, C, D, H, W) -> (B, C, D, H, W), matching MambaLayer.forward (scan_type='x')."""
    x = x.astype(jnp.float32)
    B, C, D, H, W = x.shape
    L = D * H * W
    (ln_g, ln_b, w_in, w_conv, b_conv, w_xproj, w_dt, b_dt, A, Dp, w_out) = params
    di, S = A.shape
    R = w_dt.shape[1]
    K = w_conv.shape[1]
    assert S % 2 == 0, "packed state layout expects an even d_state"

    # pick an unroll factor that divides L
    while unroll > 1 and L % unroll != 0:
        unroll //= 2

    # 'x' scan: permute(0,1,4,3,2) -> flatten -> (B, L, C), n = w*H*D + h*D + d
    x_seq = jnp.transpose(x, (0, 4, 3, 2, 1)).reshape(B, L, C)

    # ---- host-side parameter fusion (zero kernel cost) ----
    w_in_t = w_in.T.astype(jnp.float32)                       # (C, 2*di)
    w_in_g = w_in_t * ln_g[:, None]                           # fold LN gamma
    b_in = (ln_b @ w_in_t).reshape(1, 2 * di)                 # fold LN beta
    w_delta = w_xproj[:R, :].T @ w_dt.T                       # (di, di): fused dt_proj
    w_b = w_xproj[R:R + S, :].T                               # (di, S)
    w_c = w_xproj[R + S:, :].T                                # (di, S)
    w_dbc = jnp.concatenate([w_delta, w_b, w_c], axis=1)      # (di, di + 2S)

    args = (
        x_seq,
        w_in_g, b_in,
        w_conv.T,                  # (K, di)
        b_conv.reshape(1, di),
        w_dbc,
        b_dt.reshape(1, di),
        A.T,                       # (S, di)
        Dp.reshape(1, di),
        w_out.T,                   # (di, C)
    )

    def full_spec(a):
        nd = a.ndim
        return pl.BlockSpec(a.shape, lambda b, _nd=nd: (0,) * _nd)

    in_specs = [pl.BlockSpec((1, L, C), lambda b: (b, 0, 0))] + \
               [full_spec(a) for a in args[1:]]
    out_spec = pl.BlockSpec((1, C, L), lambda b: (b, 0, 0))   # lane-dense output

    kernel = _make_mamba_kernel(L, S, di, K, unroll)

    # explicit scoped-VMEM budget with headroom (small here; bounded formula)
    plane = 4 * L * max(2 * di, 128)
    vmem_limit = int(min(64 * 1024 * 1024,
                         max(16 * 1024 * 1024, 16 * plane + (2 << 20))))

    out_seq = pl.pallas_call(
        kernel,
        out_shape=jax.ShapeDtypeStruct((B, C, L), jnp.float32),
        grid_spec=pltpu.PrefetchScalarGridSpec(
            num_scalar_prefetch=0,
            grid=(B,),
            in_specs=in_specs,
            out_specs=out_spec,
            # small lane-dense scratches: delta, delta*u, [B|C], packed y
            scratch_shapes=[pltpu.VMEM((L, di), jnp.float32),
                            pltpu.VMEM((L, di), jnp.float32),
                            pltpu.VMEM((L, 2 * S), jnp.float32),
                            pltpu.VMEM((L, 2 * di), jnp.float32)],
        ),
        compiler_params=pltpu.CompilerParams(
            dimension_semantics=("parallel",),
            vmem_limit_bytes=vmem_limit),
    )(*args)

    # inverse of the 'x' scan flattening: (B, C, L) with n = w*H*D + h*D + d
    return out_seq.reshape(B, C, W, H, D).transpose(0, 1, 4, 3, 2)


def mamba_layer_ref(x, params):
    """Pure-JAX reference (same math as the PyTorch module, scan_type='x'), unfused."""
    x = x.astype(jnp.float32)
    B, C, D, H, W = x.shape
    L = D * H * W
    (ln_g, ln_b, w_in, w_conv, b_conv, w_xproj, w_dt, b_dt, A, Dp, w_out) = params
    di, S = A.shape
    R = w_dt.shape[1]
    K = w_conv.shape[1]

    xs = jnp.transpose(x, (0, 4, 3, 2, 1)).reshape(B, L, C)
    mu = xs.mean(-1, keepdims=True)
    var = ((xs - mu) ** 2).mean(-1, keepdims=True)
    xn = (xs - mu) / jnp.sqrt(var + 1e-5) * ln_g + ln_b
    xz = xn @ w_in.T
    xp, z = xz[..., :di], xz[..., di:]
    xpad = jnp.pad(xp, ((0, 0), (K - 1, 0), (0, 0)))
    u = b_conv + sum(xpad[:, k:k + L, :] * w_conv[:, k] for k in range(K))
    u = u * jax.nn.sigmoid(u)
    x_dbl = u @ w_xproj.T
    dt, Bm, Cm = x_dbl[..., :R], x_dbl[..., R:R + S], x_dbl[..., R + S:]
    delta = _softplus(dt @ w_dt.T + b_dt)
    dA = jnp.exp(delta[..., None] * A[None, None])            # (B, L, di, S)
    dBu = (delta * u)[..., None] * Bm[:, :, None, :]

    def step(h, inp):
        dA_t, dBu_t = inp
        h = dA_t * h + dBu_t
        return h, h

    _, Hs = lax.scan(step, jnp.zeros((B, di, S)),
                     (jnp.moveaxis(dA, 1, 0), jnp.moveaxis(dBu, 1, 0)))
    Hs = jnp.moveaxis(Hs, 0, 1)                               # (B, L, di, S)
    y = jnp.sum(Hs * Cm[:, :, None, :], axis=-1)
    y = y + u * Dp
    y = y * (z * jax.nn.sigmoid(z))
    out = y @ w_out.T                                          # (B, L, C)
    return out.reshape(B, W, H, D, C).transpose(0, 4, 3, 2, 1)


if __name__ == "__main__":
    # TODO(synk): PCA bookkeeping (set_local_pca_vectors / get_patch_index / pca scan
    # paths) is host-side Python config unused for scan_type='x'; not ported.
    key = jax.random.PRNGKey(0)
    B, dim = 2, 32
    D, H, W = 4, 8, 8
    d_state, d_conv, expand = 16, 4, 2
    d_inner = expand * dim
    dt_rank = math.ceil(dim / 16)

    keys = jax.random.split(key, 10)
    ln_g = jnp.ones((dim,), jnp.float32)
    ln_b = jnp.zeros((dim,), jnp.float32)
    w_in = 0.05 * jax.random.normal(keys[0], (2 * d_inner, dim), jnp.float32)
    w_conv = 0.2 * jax.random.normal(keys[1], (d_inner, d_conv), jnp.float32)
    b_conv = 0.1 * jax.random.normal(keys[2], (d_inner,), jnp.float32)
    w_xproj = 0.05 * jax.random.normal(keys[3], (dt_rank + 2 * d_state, d_inner), jnp.float32)
    w_dt = 0.1 * jax.random.normal(keys[4], (d_inner, dt_rank), jnp.float32)
    b_dt = 0.1 * jax.random.normal(keys[5], (d_inner,), jnp.float32) - 3.0
    A_log = jnp.log(jnp.arange(1, d_state + 1, dtype=jnp.float32))[None, :]
    A = -jnp.exp(jnp.broadcast_to(A_log, (d_inner, d_state)))   # Mamba S4D-real init
    Dp = jnp.ones((d_inner,), jnp.float32)
    w_out = 0.05 * jax.random.normal(keys[6], (dim, d_inner), jnp.float32)

    params = (ln_g, ln_b, w_in, w_conv, b_conv, w_xproj, w_dt, b_dt, A, Dp, w_out)

    x = jax.random.normal(keys[7], (B, dim, D, H, W), jnp.float32)

    out = jax.block_until_ready(mamba_layer_forward(x, params))
    ref = jax.block_until_ready(mamba_layer_ref(x, params))

    assert out.shape == (B, dim, D, H, W)
    assert bool(jnp.all(jnp.isfinite(out)))
    max_err = float(jnp.max(jnp.abs(out - ref)))
    assert bool(jnp.allclose(out, ref, atol=1e-3, rtol=1e-3)), max_err
    print("KERNEL_OK")
</pallas_src>

<mosaic_0001>
module attributes {stable_mosaic.version = 11 : i64} {
  func.func @kernel(%arg0: i32, %arg1: memref<1x256x32xf32, #tpu.memory_space<vmem>>, %arg2: memref<32x128xf32, #tpu.memory_space<vmem>>, %arg3: memref<1x128xf32, #tpu.memory_space<vmem>>, %arg4: memref<4x64xf32, #tpu.memory_space<vmem>>, %arg5: memref<1x64xf32, #tpu.memory_space<vmem>>, %arg6: memref<64x96xf32, #tpu.memory_space<vmem>>, %arg7: memref<1x64xf32, #tpu.memory_space<vmem>>, %arg8: memref<16x64xf32, #tpu.memory_space<vmem>>, %arg9: memref<1x64xf32, #tpu.memory_space<vmem>>, %arg10: memref<64x32xf32, #tpu.memory_space<vmem>>, %arg11: memref<1x32x256xf32, #tpu.memory_space<vmem>>, %arg12: memref<256x64xf32, #tpu.memory_space<vmem>>, %arg13: memref<256x64xf32, #tpu.memory_space<vmem>>, %arg14: memref<256x32xf32, #tpu.memory_space<vmem>>, %arg15: memref<256x128xf32, #tpu.memory_space<vmem>>) attributes {dimension_semantics = [#tpu.dimension_semantics<parallel>], iteration_bounds = array<i64: 2>, scalar_prefetch = 0 : i64, scratch_operands = 4 : i64, tpu.core_type = #tpu.core_type<tc>, window_params = [{transform_indices = @transform_0, window_bounds = array<i64: 1, 256, 32>}, {pipeline_mode = #tpu.pipeline_mode<synchronous>, transform_indices = @transform_1, window_bounds = array<i64: 32, 128>}, {pipeline_mode = #tpu.pipeline_mode<synchronous>, transform_indices = @transform_2, window_bounds = array<i64: 1, 128>}, {pipeline_mode = #tpu.pipeline_mode<synchronous>, transform_indices = @transform_3, window_bounds = array<i64: 4, 64>}, {pipeline_mode = #tpu.pipeline_mode<synchronous>, transform_indices = @transform_4, window_bounds = array<i64: 1, 64>}, {pipeline_mode = #tpu.pipeline_mode<synchronous>, transform_indices = @transform_5, window_bounds = array<i64: 64, 96>}, {pipeline_mode = #tpu.pipeline_mode<synchronous>, transform_indices = @transform_6, window_bounds = array<i64: 1, 64>}, {pipeline_mode = #tpu.pipeline_mode<synchronous>, transform_indices = @transform_7, window_bounds = array<i64: 16, 64>}, {pipeline_mode = #tpu.pipeline_mode<synchronous>, transform_indices = @transform_8, window_bounds = array<i64: 1, 64>}, {pipeline_mode = #tpu.pipeline_mode<synchronous>, transform_indices = @transform_9, window_bounds = array<i64: 64, 32>}, {transform_indices = @transform_10, window_bounds = array<i64: 1, 32, 256>}]} {
    %c0 = arith.constant 0 : index
    %c0_0 = arith.constant 0 : index
    %c0_1 = arith.constant 0 : index
    %0 = vector.load %arg1[%c0, %c0_0, %c0_1] : memref<1x256x32xf32, #tpu.memory_space<vmem>>, vector<1x256x32xf32>
    %1 = vector.shape_cast %0 : vector<1x256x32xf32> to vector<256x32xf32>
    %cst = arith.constant dense<0.000000e+00> : vector<256xf32>
    %2 = vector.multi_reduction <add>, %1, %cst [1] : vector<256x32xf32> to vector<256xf32>
    %3 = vector.shape_cast %2 : vector<256xf32> to vector<256x1xf32>
    %cst_2 = arith.constant 3.200000e+01 : f32
    %4 = vector.broadcast %cst_2 : f32 to vector<256x1xf32>
    %5 = arith.divf %3, %4 : vector<256x1xf32>
    %6 = vector.broadcast %5 : vector<256x1xf32> to vector<256x32xf32>
    %7 = arith.subf %1, %6 : vector<256x32xf32>
    %8 = arith.mulf %7, %7 : vector<256x32xf32>
    %cst_3 = arith.constant dense<0.000000e+00> : vector<256xf32>
    %9 = vector.multi_reduction <add>, %8, %cst_3 [1] : vector<256x32xf32> to vector<256xf32>
    %10 = vector.shape_cast %9 : vector<256xf32> to vector<256x1xf32>
    %cst_4 = arith.constant 3.200000e+01 : f32
    %11 = vector.broadcast %cst_4 : f32 to vector<256x1xf32>
    %12 = arith.divf %10, %11 : vector<256x1xf32>
    %cst_5 = arith.constant 9.99999974E-6 : f32
    %13 = vector.broadcast %cst_5 : f32 to vector<256x1xf32>
    %14 = arith.addf %12, %13 : vector<256x1xf32>
    %15 = math.rsqrt %14 : vector<256x1xf32>
    %16 = vector.broadcast %15 : vector<256x1xf32> to vector<256x32xf32>
    %17 = arith.mulf %7, %16 : vector<256x32xf32>
    %c0_6 = arith.constant 0 : index
    %c0_7 = arith.constant 0 : index
    %18 = vector.load %arg2[%c0_6, %c0_7] : memref<32x128xf32, #tpu.memory_space<vmem>>, vector<32x128xf32>
    %cst_8 = arith.constant dense<0.000000e+00> : vector<256x128xf32>
    %19 = tpu.matmul %17, %18, %cst_8 {dimension_numbers = #tpu.dot_dimension_numbers<[1], [0], [0], [1], [0, 0, 1, 1], [], []>} : vector<256x32xf32>, vector<32x128xf32>, vector<256x128xf32> -> vector<256x128xf32>
    %c0_9 = arith.constant 0 : index
    %c0_10 = arith.constant 0 : index
    %20 = vector.load %arg3[%c0_9, %c0_10] : memref<1x128xf32, #tpu.memory_space<vmem>>, vector<1x128xf32>
    %21 = vector.broadcast %20 : vector<1x128xf32> to vector<256x128xf32>
    %22 = arith.addf %19, %21 : vector<256x128xf32>
    %23 = vector.extract_strided_slice %22 {offsets = [0, 0], sizes = [256, 64], strides = [1, 1]} : vector<256x128xf32> to vector<256x64xf32>
    %24 = vector.extract_strided_slice %22 {offsets = [0, 64], sizes = [256, 64], strides = [1, 1]} : vector<256x128xf32> to vector<256x64xf32>
    %c0_11 = arith.constant 0 : index
    %c0_12 = arith.constant 0 : index
    %25 = vector.load %arg4[%c0_11, %c0_12] : memref<4x64xf32, #tpu.memory_space<vmem>>, vector<4x64xf32>
    %26 = tpu.iota {dimensions = array<i32: 0>} : vector<256x64xi32>
    %c0_13 = arith.constant 0 : index
    %c0_14 = arith.constant 0 : index
    %27 = vector.load %arg5[%c0_13, %c0_14] : memref<1x64xf32, #tpu.memory_space<vmem>>, vector<1x64xf32>
    %28 = vector.extract_strided_slice %25 {offsets = [3, 0], sizes = [1, 64], strides = [1, 1]} : vector<4x64xf32> to vector<1x64xf32>
    %29 = vector.broadcast %28 : vector<1x64xf32> to vector<256x64xf32>
    %30 = arith.mulf %23, %29 : vector<256x64xf32>
    %31 = vector.broadcast %27 : vector<1x64xf32> to vector<256x64xf32>
    %32 = arith.addf %31, %30 : vector<256x64xf32>
    %c3_i32 = arith.constant 3 : i32
    %33 = tpu.dynamic_rotate %23 by %c3_i32 dim 0 : vector<256x64xf32>, i32 -> vector<256x64xf32>
    %c3_i32_15 = arith.constant 3 : i32
    %34 = vector.broadcast %c3_i32_15 : i32 to vector<256x64xi32>
    %35 = arith.cmpi sge, %26, %34 : vector<256x64xi32>
    %cst_16 = arith.constant 0.000000e+00 : f32
    %36 = vector.broadcast %cst_16 : f32 to vector<256x64xf32>
    %37 = arith.select %35, %33, %36 : vector<256x64xi1>, vector<256x64xf32>
    %38 = vector.extract_strided_slice %25 {offsets = [0, 0], sizes = [1, 64], strides = [1, 1]} : vector<4x64xf32> to vector<1x64xf32>
    %39 = vector.broadcast %38 : vector<1x64xf32> to vector<256x64xf32>
    %40 = arith.mulf %37, %39 : vector<256x64xf32>
    %41 = arith.addf %32, %40 : vector<256x64xf32>
    %c2_i32 = arith.constant 2 : i32
    %42 = tpu.dynamic_rotate %23 by %c2_i32 dim 0 : vector<256x64xf32>, i32 -> vector<256x64xf32>
    %c2_i32_17 = arith.constant 2 : i32
    %43 = vector.broadcast %c2_i32_17 : i32 to vector<256x64xi32>
    %44 = arith.cmpi sge, %26, %43 : vector<256x64xi32>
    %cst_18 = arith.constant 0.000000e+00 : f32
    %45 = vector.broadcast %cst_18 : f32 to vector<256x64xf32>
    %46 = arith.select %44, %42, %45 : vector<256x64xi1>, vector<256x64xf32>
    %47 = vector.extract_strided_slice %25 {offsets = [1, 0], sizes = [1, 64], strides = [1, 1]} : vector<4x64xf32> to vector<1x64xf32>
    %48 = vector.broadcast %47 : vector<1x64xf32> to vector<256x64xf32>
    %49 = arith.mulf %46, %48 : vector<256x64xf32>
    %50 = arith.addf %41, %49 : vector<256x64xf32>
    %c1_i32 = arith.constant 1 : i32
    %51 = tpu.dynamic_rotate %23 by %c1_i32 dim 0 : vector<256x64xf32>, i32 -> vector<256x64xf32>
    %c1_i32_19 = arith.constant 1 : i32
    %52 = vector.broadcast %c1_i32_19 : i32 to vector<256x64xi32>
    %53 = arith.cmpi sge, %26, %52 : vector<256x64xi32>
    %cst_20 = arith.constant 0.000000e+00 : f32
    %54 = vector.broadcast %cst_20 : f32 to vector<256x64xf32>
    %55 = arith.select %53, %51, %54 : vector<256x64xi1>, vector<256x64xf32>
    %56 = vector.extract_strided_slice %25 {offsets = [2, 0], sizes = [1, 64], strides = [1, 1]} : vector<4x64xf32> to vector<1x64xf32>
    %57 = vector.broadcast %56 : vector<1x64xf32> to vector<256x64xf32>
    %58 = arith.mulf %55, %57 : vector<256x64xf32>
    %59 = arith.addf %50, %58 : vector<256x64xf32>
    %60 = arith.negf %59 : vector<256x64xf32>
    %61 = math.exp %60 : vector<256x64xf32>
    %cst_21 = arith.constant 1.000000e+00 : f32
    %62 = vector.broadcast %cst_21 : f32 to vector<256x64xf32>
    %63 = arith.addf %62, %61 : vector<256x64xf32>
    %64 = arith.divf %62, %63 : vector<256x64xf32>
    %65 = arith.mulf %59, %64 : vector<256x64xf32>
    %c0_22 = arith.constant 0 : index
    %c0_23 = arith.constant 0 : index
    %66 = vector.load %arg6[%c0_22, %c0_23] : memref<64x96xf32, #tpu.memory_space<vmem>>, vector<64x96xf32>
    %cst_24 = arith.constant dense<0.000000e+00> : vector<256x96xf32>
    %67 = tpu.matmul %65, %66, %cst_24 {dimension_numbers = #tpu.dot_dimension_numbers<[1], [0], [0], [1], [0, 0, 1, 1], [], []>} : vector<256x64xf32>, vector<64x96xf32>, vector<256x96xf32> -> vector<256x96xf32>
    %68 = vector.extract_strided_slice %67 {offsets = [0, 0], sizes = [256, 64], strides = [1, 1]} : vector<256x96xf32> to vector<256x64xf32>
    %c0_25 = arith.constant 0 : index
    %c0_26 = arith.constant 0 : index
    %69 = vector.load %arg7[%c0_25, %c0_26] : memref<1x64xf32, #tpu.memory_space<vmem>>, vector<1x64xf32>
    %70 = vector.broadcast %69 : vector<1x64xf32> to vector<256x64xf32>
    %71 = arith.addf %68, %70 : vector<256x64xf32>
    %cst_27 = arith.constant 2.000000e+01 : f32
    %72 = vector.broadcast %cst_27 : f32 to vector<256x64xf32>
    %73 = arith.cmpf ogt, %71, %72 : vector<256x64xf32>
    %cst_28 = arith.constant 2.000000e+01 : f32
    %74 = vector.broadcast %cst_28 : f32 to vector<256x64xf32>
    %75 = arith.minimumf %71, %74 : vector<256x64xf32>
    %76 = math.exp %75 : vector<256x64xf32>
    %cst_29 = arith.constant 1.000000e+00 : f32
    %77 = vector.broadcast %cst_29 : f32 to vector<256x64xf32>
    %78 = arith.addf %77, %76 : vector<256x64xf32>
    %79 = math.log %78 : vector<256x64xf32>
    %80 = arith.select %73, %71, %79 : vector<256x64xi1>, vector<256x64xf32>
    %c0_30 = arith.constant 0 : index
    %c0_31 = arith.constant 0 : index
    %81 = vector.load %arg12[%c0_30, %c0_31] : memref<256x64xf32, #tpu.memory_space<vmem>>, vector<256x64xf32>
    tpu.vector_store %arg12[%c0_30, %c0_31], %80 {strides = array<i32>} : memref<256x64xf32, #tpu.memory_space<vmem>>, vector<256x64xf32>,
    %82 = arith.mulf %80, %65 : vector<256x64xf32>
    %c0_32 = arith.constant 0 : index
    %c0_33 = arith.constant 0 : index
    %83 = vector.load %arg13[%c0_32, %c0_33] : memref<256x64xf32, #tpu.memory_space<vmem>>, vector<256x64xf32>
    tpu.vector_store %arg13[%c0_32, %c0_33], %82 {strides = array<i32>} : memref<256x64xf32, #tpu.memory_space<vmem>>, vector<256x64xf32>,
    %84 = vector.extract_strided_slice %67 {offsets = [0, 64], sizes = [256, 32], strides = [1, 1]} : vector<256x96xf32> to vector<256x32xf32>
    %c0_34 = arith.constant 0 : index
    %c0_35 = arith.constant 0 : index
    %85 = vector.load %arg14[%c0_34, %c0_35] : memref<256x32xf32, #tpu.memory_space<vmem>>, vector<256x32xf32>
    tpu.vector_store %arg14[%c0_34, %c0_35], %84 {strides = array<i32>} : memref<256x32xf32, #tpu.memory_space<vmem>>, vector<256x32xf32>,
    %c0_36 = arith.constant 0 : index
    %c0_37 = arith.constant 0 : index
    %86 = vector.load %arg8[%c0_36, %c0_37] : memref<16x64xf32, #tpu.memory_space<vmem>>, vector<16x64xf32>
    %87 = vector.extract_strided_slice %86 {offsets = [0, 0], sizes = [8, 64], strides = [1, 1]} : vector<16x64xf32> to vector<8x64xf32>
    %88 = vector.extract_strided_slice %86 {offsets = [8, 0], sizes = [8, 64], strides = [1, 1]} : vector<16x64xf32> to vector<8x64xf32>
    %cst_38 = arith.constant 0.000000e+00 : f32
    %89 = vector.broadcast %cst_38 : f32 to vector<8x128xf32>
    %c0_i32 = arith.constant 0 : i32
    %c32_i32 = arith.constant 32 : i32
    %90 = arith.addi %c0_i32, %c32_i32 : i32
    %c1_i32_39 = arith.constant 1 : i32
    %91 = scf.for %arg16 = %c0_i32 to %90 step %c1_i32_39 iter_args(%arg17 = %89) -> (vector<8x128xf32>)  : i32 {
      %c8_i32 = arith.constant 8 : i32
      %112 = arith.muli %arg16, %c8_i32 : i32
      %113 = tpu.assume_multiple %112, 8 : i32
      %114 = arith.index_cast %113 : i32 to index
      %c0_52 = arith.constant 0 : index
      %115 = vector.load %arg12[%114, %c0_52] : memref<256x64xf32, #tpu.memory_space<vmem>>, vector<8x64xf32>
      %116 = arith.index_cast %113 : i32 to index
      %c0_53 = arith.constant 0 : index
      %117 = vector.load %arg13[%116, %c0_53] : memref<256x64xf32, #tpu.memory_space<vmem>>, vector<8x64xf32>
      %118 = arith.index_cast %113 : i32 to index
      %c0_54 = arith.constant 0 : index
      %119 = vector.load %arg14[%118, %c0_54] : memref<256x32xf32, #tpu.memory_space<vmem>>, vector<8x32xf32>
      %120 = vector.extract_strided_slice %119 {offsets = [0, 0], sizes = [8, 8], strides = [1, 1]} : vector<8x32xf32> to vector<8x8xf32>
      %121 = vector.extract_strided_slice %119 {offsets = [0, 8], sizes = [8, 8], strides = [1, 1]} : vector<8x32xf32> to vector<8x8xf32>
      %122 = vector.extract_strided_slice %119 {offsets = [0, 16], sizes = [8, 8], strides = [1, 1]} : vector<8x32xf32> to vector<8x8xf32>
      %123 = vector.extract_strided_slice %119 {offsets = [0, 24], sizes = [8, 8], strides = [1, 1]} : vector<8x32xf32> to vector<8x8xf32>
      %124 = vector.shape_cast %115 : vector<8x64xf32> to vector<8x1x64xf32>
      %125 = vector.shape_cast %87 : vector<8x64xf32> to vector<1x8x64xf32>
      %126 = vector.broadcast %124 : vector<8x1x64xf32> to vector<8x8x64xf32>
      %127 = vector.broadcast %125 : vector<1x8x64xf32> to vector<8x8x64xf32>
      %128 = arith.mulf %126, %127 : vector<8x8x64xf32>
      %129 = vector.shape_cast %115 : vector<8x64xf32> to vector<8x1x64xf32>
      %130 = vector.shape_cast %88 : vector<8x64xf32> to vector<1x8x64xf32>
      %131 = vector.broadcast %129 : vector<8x1x64xf32> to vector<8x8x64xf32>
      %132 = vector.broadcast %130 : vector<1x8x64xf32> to vector<8x8x64xf32>
      %133 = arith.mulf %131, %132 : vector<8x8x64xf32>
      %134 = tpu.concatenate %128, %133 in 2 : vector<8x8x64xf32>, vector<8x8x64xf32> -> vector<8x8x128xf32>
      %135 = math.exp %134 : vector<8x8x128xf32>
      %136 = vector.shape_cast %117 : vector<8x64xf32> to vector<8x1x64xf32>
      %137 = vector.shape_cast %120 : vector<8x8xf32> to vector<8x8x1xf32>
      %138 = vector.broadcast %136 : vector<8x1x64xf32> to vector<8x8x64xf32>
      %139 = vector.broadcast %137 : vector<8x8x1xf32> to vector<8x8x64xf32>
      %140 = arith.mulf %138, %139 : vector<8x8x64xf32>
      %141 = vector.shape_cast %117 : vector<8x64xf32> to vector<8x1x64xf32>
      %142 = vector.shape_cast %121 : vector<8x8xf32> to vector<8x8x1xf32>
      %143 = vector.broadcast %141 : vector<8x1x64xf32> to vector<8x8x64xf32>
      %144 = vector.broadcast %142 : vector<8x8x1xf32> to vector<8x8x64xf32>
      %145 = arith.mulf %143, %144 : vector<8x8x64xf32>
      %146 = tpu.concatenate %140, %145 in 2 : vector<8x8x64xf32>, vector<8x8x64xf32> -> vector<8x8x128xf32>
      %147 = vector.shape_cast %122 : vector<8x8xf32> to vector<8x8x1xf32>
      %148 = vector.shape_cast %147 : vector<8x8x1xf32> to vector<8x8x1xf32>
      %149 = vector.broadcast %148 : vector<8x8x1xf32> to vector<8x8x64xf32>
      %150 = vector.shape_cast %123 : vector<8x8xf32> to vector<8x8x1xf32>
      %151 = vector.shape_cast %150 : vector<8x8x1xf32> to vector<8x8x1xf32>
      %152 = vector.broadcast %151 : vector<8x8x1xf32> to vector<8x8x64xf32>
      %153 = tpu.concatenate %149, %152 in 2 : vector<8x8x64xf32>, vector<8x8x64xf32> -> vector<8x8x128xf32>
      %154 = vector.extract_strided_slice %135 {offsets = [0, 0, 0], sizes = [1, 8, 128], strides = [1, 1, 1]} : vector<8x8x128xf32> to vector<1x8x128xf32>
      %155 = vector.shape_cast %154 : vector<1x8x128xf32> to vector<8x128xf32>
      %156 = arith.mulf %155, %arg17 : vector<8x128xf32>
      %157 = vector.extract_strided_slice %146 {offsets = [0, 0, 0], sizes = [1, 8, 128], strides = [1, 1, 1]} : vector<8x8x128xf32> to vector<1x8x128xf32>
      %158 = vector.shape_cast %157 : vector<1x8x128xf32> to vector<8x128xf32>
      %159 = arith.addf %156, %158 : vector<8x128xf32>
      %160 = vector.extract_strided_slice %153 {offsets = [0, 0, 0], sizes = [1, 8, 128], strides = [1, 1, 1]} : vector<8x8x128xf32> to vector<1x8x128xf32>
      %161 = vector.shape_cast %160 : vector<1x8x128xf32> to vector<8x128xf32>
      %162 = arith.mulf %159, %161 : vector<8x128xf32>
      %cst_55 = arith.constant dense<0.000000e+00> : vector<128xf32>
      %163 = vector.multi_reduction <add>, %162, %cst_55 [0] : vector<8x128xf32> to vector<128xf32>
      %164 = vector.shape_cast %163 : vector<128xf32> to vector<1x128xf32>
      %165 = vector.extract_strided_slice %135 {offsets = [1, 0, 0], sizes = [1, 8, 128], strides = [1, 1, 1]} : vector<8x8x128xf32> to vector<1x8x128xf32>
      %166 = vector.shape_cast %165 : vector<1x8x128xf32> to vector<8x128xf32>
      %167 = arith.mulf %166, %159 : vector<8x128xf32>
      %168 = vector.extract_strided_slice %146 {offsets = [1, 0, 0], sizes = [1, 8, 128], strides = [1, 1, 1]} : vector<8x8x128xf32> to vector<1x8x128xf32>
      %169 = vector.shape_cast %168 : vector<1x8x128xf32> to vector<8x128xf32>
      %170 = arith.addf %167, %169 : vector<8x128xf32>
      %171 = vector.extract_strided_slice %153 {offsets = [1, 0, 0], sizes = [1, 8, 128], strides = [1, 1, 1]} : vector<8x8x128xf32> to vector<1x8x128xf32>
      %172 = vector.shape_cast %171 : vector<1x8x128xf32> to vector<8x128xf32>
      %173 = arith.mulf %170, %172 : vector<8x128xf32>
      %cst_56 = arith.constant dense<0.000000e+00> : vector<128xf32>
      %174 = vector.multi_reduction <add>, %173, %cst_56 [0] : vector<8x128xf32> to vector<128xf32>
      %175 = vector.shape_cast %174 : vector<128xf32> to vector<1x128xf32>
      %176 = vector.extract_strided_slice %135 {offsets = [2, 0, 0], sizes = [1, 8, 128], strides = [1, 1, 1]} : vector<8x8x128xf32> to vector<1x8x128xf32>
      %177 = vector.shape_cast %176 : vector<1x8x128xf32> to vector<8x128xf32>
      %178 = arith.mulf %177, %170 : vector<8x128xf32>
      %179 = vector.extract_strided_slice %146 {offsets = [2, 0, 0], sizes = [1, 8, 128], strides = [1, 1, 1]} : vector<8x8x128xf32> to vector<1x8x128xf32>
      %180 = vector.shape_cast %179 : vector<1x8x128xf32> to vector<8x128xf32>
      %181 = arith.addf %178, %180 : vector<8x128xf32>
      %182 = vector.extract_strided_slice %153 {offsets = [2, 0, 0], sizes = [1, 8, 128], strides = [1, 1, 1]} : vector<8x8x128xf32> to vector<1x8x128xf32>
      %183 = vector.shape_cast %182 : vector<1x8x128xf32> to vector<8x128xf32>
      %184 = arith.mulf %181, %183 : vector<8x128xf32>
      %cst_57 = arith.constant dense<0.000000e+00> : vector<128xf32>
      %185 = vector.multi_reduction <add>, %184, %cst_57 [0] : vector<8x128xf32> to vector<128xf32>
      %186 = vector.shape_cast %185 : vector<128xf32> to vector<1x128xf32>
      %187 = vector.extract_strided_slice %135 {offsets = [3, 0, 0], sizes = [1, 8, 128], strides = [1, 1, 1]} : vector<8x8x128xf32> to vector<1x8x128xf32>
      %188 = vector.shape_cast %187 : vector<1x8x128xf32> to vector<8x128xf32>
      %189 = arith.mulf %188, %181 : vector<8x128xf32>
      %190 = vector.extract_strided_slice %146 {offsets = [3, 0, 0], sizes = [1, 8, 128], strides = [1, 1, 1]} : vector<8x8x128xf32> to vector<1x8x128xf32>
      %191 = vector.shape_cast %190 : vector<1x8x128xf32> to vector<8x128xf32>
      %192 = arith.addf %189, %191 : vector<8x128xf32>
      %193 = vector.extract_strided_slice %153 {offsets = [3, 0, 0], sizes = [1, 8, 128], strides = [1, 1, 1]} : vector<8x8x128xf32> to vector<1x8x128xf32>
      %194 = vector.shape_cast %193 : vector<1x8x128xf32> to vector<8x128xf32>
      %195 = arith.mulf %192, %194 : vector<8x128xf32>
      %cst_58 = arith.constant dense<0.000000e+00> : vector<128xf32>
      %196 = vector.multi_reduction <add>, %195, %cst_58 [0] : vector<8x128xf32> to vector<128xf32>
      %197 = vector.shape_cast %196 : vector<128xf32> to vector<1x128xf32>
      %198 = vector.extract_strided_slice %135 {offsets = [4, 0, 0], sizes = [1, 8, 128], strides = [1, 1, 1]} : vector<8x8x128xf32> to vector<1x8x128xf32>
      %199 = vector.shape_cast %198 : vector<1x8x128xf32> to vector<8x128xf32>
      %200 = arith.mulf %199, %192 : vector<8x128xf32>
      %201 = vector.extract_strided_slice %146 {offsets = [4, 0, 0], sizes = [1, 8, 128], strides = [1, 1, 1]} : vector<8x8x128xf32> to vector<1x8x128xf32>
      %202 = vector.shape_cast %201 : vector<1x8x128xf32> to vector<8x128xf32>
      %203 = arith.addf %200, %202 : vector<8x128xf32>
      %204 = vector.extract_strided_slice %153 {offsets = [4, 0, 0], sizes = [1, 8, 128], strides = [1, 1, 1]} : vector<8x8x128xf32> to vector<1x8x128xf32>
      %205 = vector.shape_cast %204 : vector<1x8x128xf32> to vector<8x128xf32>
      %206 = arith.mulf %203, %205 : vector<8x128xf32>
      %cst_59 = arith.constant dense<0.000000e+00> : vector<128xf32>
      %207 = vector.multi_reduction <add>, %206, %cst_59 [0] : vector<8x128xf32> to vector<128xf32>
      %208 = vector.shape_cast %207 : vector<128xf32> to vector<1x128xf32>
      %209 = vector.extract_strided_slice %135 {offsets = [5, 0, 0], sizes = [1, 8, 128], strides = [1, 1, 1]} : vector<8x8x128xf32> to vector<1x8x128xf32>
      %210 = vector.shape_cast %209 : vector<1x8x128xf32> to vector<8x128xf32>
      %211 = arith.mulf %210, %203 : vector<8x128xf32>
      %212 = vector.extract_strided_slice %146 {offsets = [5, 0, 0], sizes = [1, 8, 128], strides = [1, 1, 1]} : vector<8x8x128xf32> to vector<1x8x128xf32>
      %213 = vector.shape_cast %212 : vector<1x8x128xf32> to vector<8x128xf32>
      %214 = arith.addf %211, %213 : vector<8x128xf32>
      %215 = vector.extract_strided_slice %153 {offsets = [5, 0, 0], sizes = [1, 8, 128], strides = [1, 1, 1]} : vector<8x8x128xf32> to vector<1x8x128xf32>
      %216 = vector.shape_cast %215 : vector<1x8x128xf32> to vector<8x128xf32>
      %217 = arith.mulf %214, %216 : vector<8x128xf32>
      %cst_60 = arith.constant dense<0.000000e+00> : vector<128xf32>
      %218 = vector.multi_reduction <add>, %217, %cst_60 [0] : vector<8x128xf32> to vector<128xf32>
      %219 = vector.shape_cast %218 : vector<128xf32> to vector<1x128xf32>
      %220 = vector.extract_strided_slice %135 {offsets = [6, 0, 0], sizes = [1, 8, 128], strides = [1, 1, 1]} : vector<8x8x128xf32> to vector<1x8x128xf32>
      %221 = vector.shape_cast %220 : vector<1x8x128xf32> to vector<8x128xf32>
      %222 = arith.mulf %221, %214 : vector<8x128xf32>
      %223 = vector.extract_strided_slice %146 {offsets = [6, 0, 0], sizes = [1, 8, 128], strides = [1, 1, 1]} : vector<8x8x128xf32> to vector<1x8x128xf32>
      %224 = vector.shape_cast %223 : vector<1x8x128xf32> to vector<8x128xf32>
      %225 = arith.addf %222, %224 : vector<8x128xf32>
      %226 = vector.extract_strided_slice %153 {offsets = [6, 0, 0], sizes = [1, 8, 128], strides = [1, 1, 1]} : vector<8x8x128xf32> to vector<1x8x128xf32>
      %227 = vector.shape_cast %226 : vector<1x8x128xf32> to vector<8x128xf32>
      %228 = arith.mulf %225, %227 : vector<8x128xf32>
      %cst_61 = arith.constant dense<0.000000e+00> : vector<128xf32>
      %229 = vector.multi_reduction <add>, %228, %cst_61 [0] : vector<8x128xf32> to vector<128xf32>
      %230 = vector.shape_cast %229 : vector<128xf32> to vector<1x128xf32>
      %231 = vector.extract_strided_slice %135 {offsets = [7, 0, 0], sizes = [1, 8, 128], strides = [1, 1, 1]} : vector<8x8x128xf32> to vector<1x8x128xf32>
      %232 = vector.shape_cast %231 : vector<1x8x128xf32> to vector<8x128xf32>
      %233 = arith.mulf %232, %225 : vector<8x128xf32>
      %234 = vector.extract_strided_slice %146 {offsets = [7, 0, 0], sizes = [1, 8, 128], strides = [1, 1, 1]} : vector<8x8x128xf32> to vector<1x8x128xf32>
      %235 = vector.shape_cast %234 : vector<1x8x128xf32> to vector<8x128xf32>
      %236 = arith.addf %233, %235 : vector<8x128xf32>
      %237 = vector.extract_strided_slice %153 {offsets = [7, 0, 0], sizes = [1, 8, 128], strides = [1, 1, 1]} : vector<8x8x128xf32> to vector<1x8x128xf32>
      %238 = vector.shape_cast %237 : vector<1x8x128xf32> to vector<8x128xf32>
      %239 = arith.mulf %236, %238 : vector<8x128xf32>
      %cst_62 = arith.constant dense<0.000000e+00> : vector<128xf32>
      %240 = vector.multi_reduction <add>, %239, %cst_62 [0] : vector<8x128xf32> to vector<128xf32>
      %241 = vector.shape_cast %240 : vector<128xf32> to vector<1x128xf32>
      %242 = tpu.concatenate %164, %175, %186, %197, %208, %219, %230, %241 in 0 : vector<1x128xf32>, vector<1x128xf32>, vector<1x128xf32>, vector<1x128xf32>, vector<1x128xf32>, vector<1x128xf32>, vector<1x128xf32>, vector<1x128xf32> -> vector<8x128xf32>
      %243 = arith.index_cast %113 : i32 to index
      %c0_63 = arith.constant 0 : index
      %244 = vector.load %arg15[%243, %c0_63] : memref<256x128xf32, #tpu.memory_space<vmem>>, vector<8x128xf32>
      tpu.vector_store %arg15[%243, %c0_63], %242 {strides = array<i32>} : memref<256x128xf32, #tpu.memory_space<vmem>>, vector<8x128xf32>,
      scf.yield %236 : vector<8x128xf32>
    }
    %c32_i32_40 = arith.constant 32 : i32
    %c0_41 = arith.constant 0 : index
    %c0_42 = arith.constant 0 : index
    %92 = vector.load %arg15[%c0_41, %c0_42] : memref<256x128xf32, #tpu.memory_space<vmem>>, vector<256x128xf32>
    %93 = vector.extract_strided_slice %92 {offsets = [0, 0], sizes = [256, 64], strides = [1, 1]} : vector<256x128xf32> to vector<256x64xf32>
    %94 = vector.extract_strided_slice %92 {offsets = [0, 64], sizes = [256, 64], strides = [1, 1]} : vector<256x128xf32> to vector<256x64xf32>
    %95 = arith.addf %93, %94 : vector<256x64xf32>
    %c0_43 = arith.constant 0 : index
    %c0_44 = arith.constant 0 : index
    %96 = vector.load %arg9[%c0_43, %c0_44] : memref<1x64xf32, #tpu.memory_space<vmem>>, vector<1x64xf32>
    %97 = vector.broadcast %96 : vector<1x64xf32> to vector<256x64xf32>
    %98 = arith.mulf %65, %97 : vector<256x64xf32>
    %99 = arith.addf %95, %98 : vector<256x64xf32>
    %100 = arith.negf %24 : vector<256x64xf32>
    %101 = math.exp %100 : vector<256x64xf32>
    %cst_45 = arith.constant 1.000000e+00 : f32
    %102 = vector.broadcast %cst_45 : f32 to vector<256x64xf32>
    %103 = arith.addf %102, %101 : vector<256x64xf32>
    %104 = arith.divf %102, %103 : vector<256x64xf32>
    %105 = arith.mulf %24, %104 : vector<256x64xf32>
    %106 = arith.mulf %99, %105 : vector<256x64xf32>
    %c0_46 = arith.constant 0 : index
    %c0_47 = arith.constant 0 : index
    %107 = vector.load %arg10[%c0_46, %c0_47] : memref<64x32xf32, #tpu.memory_space<vmem>>, vector<64x32xf32>
    %cst_48 = arith.constant dense<0.000000e+00> : vector<256x32xf32>
    %108 = tpu.matmul %106, %107, %cst_48 {dimension_numbers = #tpu.dot_dimension_numbers<[1], [0], [0], [1], [0, 0, 1, 1], [], []>} : vector<256x64xf32>, vector<64x32xf32>, vector<256x32xf32> -> vector<256x32xf32>
    %109 = tpu.transpose %108, [1, 0] : vector<256x32xf32> -> vector<32x256xf32>
    %110 = vector.shape_cast %109 : vector<32x256xf32> to vector<1x32x256xf32>
    %c0_49 = arith.constant 0 : index
    %c0_50 = arith.constant 0 : index
    %c0_51 = arith.constant 0 : index
    %111 = vector.load %arg11[%c0_49, %c0_50, %c0_51] : memref<1x32x256xf32, #tpu.memory_space<vmem>>, vector<1x32x256xf32>
    tpu.vector_store %arg11[%c0_49, %c0_50, %c0_51], %110 {strides = array<i32>} : memref<1x32x256xf32, #tpu.memory_space<vmem>>, vector<1x32x256xf32>,
    return
  }
  func.func @transform_0(%arg0: i32) -> (i32, i32, i32) {
    %c0_i32 = arith.constant 0 : i32
    %c0_i32_0 = arith.constant 0 : i32
    %c0_i32_1 = arith.constant 0 : i32
    return %arg0, %c0_i32, %c0_i32_0 : i32, i32, i32
  }
  func.func @transform_1(%arg0: i32) -> (i32, i32) {
    %c0_i32 = arith.constant 0 : i32
    %c0_i32_0 = arith.constant 0 : i32
    %c0_i32_1 = arith.constant 0 : i32
    return %c0_i32, %c0_i32_0 : i32, i32
  }
  func.func @transform_2(%arg0: i32) -> (i32, i32) {
    %c0_i32 = arith.constant 0 : i32
    %c0_i32_0 = arith.constant 0 : i32
    %c0_i32_1 = arith.constant 0 : i32
    return %c0_i32, %c0_i32_0 : i32, i32
  }
  func.func @transform_3(%arg0: i32) -> (i32, i32) {
    %c0_i32 = arith.constant 0 : i32
    %c0_i32_0 = arith.constant 0 : i32
    %c0_i32_1 = arith.constant 0 : i32
    return %c0_i32, %c0_i32_0 : i32, i32
  }
  func.func @transform_4(%arg0: i32) -> (i32, i32) {
    %c0_i32 = arith.constant 0 : i32
    %c0_i32_0 = arith.constant 0 : i32
    %c0_i32_1 = arith.constant 0 : i32
    return %c0_i32, %c0_i32_0 : i32, i32
  }
  func.func @transform_5(%arg0: i32) -> (i32, i32) {
    %c0_i32 = arith.constant 0 : i32
    %c0_i32_0 = arith.constant 0 : i32
    %c0_i32_1 = arith.constant 0 : i32
    return %c0_i32, %c0_i32_0 : i32, i32
  }
  func.func @transform_6(%arg0: i32) -> (i32, i32) {
    %c0_i32 = arith.constant 0 : i32
    %c0_i32_0 = arith.constant 0 : i32
    %c0_i32_1 = arith.constant 0 : i32
    return %c0_i32, %c0_i32_0 : i32, i32
  }
  func.func @transform_7(%arg0: i32) -> (i32, i32) {
    %c0_i32 = arith.constant 0 : i32
    %c0_i32_0 = arith.constant 0 : i32
    %c0_i32_1 = arith.constant 0 : i32
    return %c0_i32, %c0_i32_0 : i32, i32
  }
  func.func @transform_8(%arg0: i32) -> (i32, i32) {
    %c0_i32 = arith.constant 0 : i32
    %c0_i32_0 = arith.constant 0 : i32
    %c0_i32_1 = arith.constant 0 : i32
    return %c0_i32, %c0_i32_0 : i32, i32
  }
  func.func @transform_9(%arg0: i32) -> (i32, i32) {
    %c0_i32 = arith.constant 0 : i32
    %c0_i32_0 = arith.constant 0 : i32
    %c0_i32_1 = arith.constant 0 : i32
    return %c0_i32, %c0_i32_0 : i32, i32
  }
  func.func @transform_10(%arg0: i32) -> (i32, i32, i32) {
    %c0_i32 = arith.constant 0 : i32
    %c0_i32_0 = arith.constant 0 : i32
    %c0_i32_1 = arith.constant 0 : i32
    return %arg0, %c0_i32, %c0_i32_0 : i32, i32, i32
  }
}

</mosaic_0001>

<llo_original>
// kernel: tpu_custom_call.1
$region0: #{tpu_custom_call.1}
  #allocation0 [shape = 'u32[]', space=smem, size = 0x4, offset = 0x4, fixed_abs, tag = 'smem constant byte address 0x4 - core index']
  #allocation1 [shape = 'u32[144,128]{1,0:T(1,128)}', space=vmem, size = 0x12000, scoped, tag = 'internal scratch']
  #allocation2 [shape = 'f32[256,64]{1,0:T(8,128)}', space=vmem, size = 0x20000, scoped, tag = 'scratch operand']
  #allocation3 [shape = 'f32[256,64]{1,0:T(8,128)}', space=vmem, size = 0x20000, scoped, tag = 'scratch operand']
  #allocation4 [shape = 'f32[256,32]{1,0:T(8,128)}', space=vmem, size = 0x20000, scoped, tag = 'scratch operand']
  #allocation5 [shape = 'f32[256,128]{1,0:T(8,128)}', space=vmem, size = 0x20000, scoped, tag = 'scratch operand']
  %s0 = inlined_call_operand.vmem [shape: f32[2,256,32], index: 0, kind: input, shape index: {}]
  %s1 = inlined_call_operand.vmem [shape: f32[32,128], index: 1, kind: input, shape index: {}]
  %s2 = inlined_call_operand.vmem [shape: f32[1,128], index: 2, kind: input, shape index: {}]
  %s3 = inlined_call_operand.vmem [shape: f32[4,64], index: 3, kind: input, shape index: {}]
  %s4 = inlined_call_operand.vmem [shape: f32[1,64], index: 4, kind: input, shape index: {}]
  %s5 = inlined_call_operand.vmem [shape: f32[64,96], index: 5, kind: input, shape index: {}]
  %s6 = inlined_call_operand.vmem [shape: f32[1,64], index: 6, kind: input, shape index: {}]
  %s7 = inlined_call_operand.vmem [shape: f32[16,64], index: 7, kind: input, shape index: {}]
  %s8 = inlined_call_operand.vmem [shape: f32[1,64], index: 8, kind: input, shape index: {}]
  %s9 = inlined_call_operand.vmem [shape: f32[64,32], index: 9, kind: input, shape index: {}]
  %s10 = inlined_call_operand.hbm [shape: f32[2,32,256], index: 10, kind: output, shape index: {}]
  %s11 = sld [smem:[#allocation0]]
  $region80: #{tpu_custom_call.1} parent=0
    _
  %s13 = ssub.s32 1, %s11
  %s14 = scalar_select 0, %s13, %s11
  $region1: #{tpu_custom_call.1} parent=0
    #allocation6 [shape = 'u8[65536]{0}', space=vmem, size = 0x10000, scoped, tag = 'output window, operand 0']
    #allocation7 [shape = 's32[2]{0}', space=sflag, size = 0x8, scoped, tag = 'scoped memory for tpu_custom_call.1']
    %15 = vsyncpa [#allocation7], 0
    %s16 = scalar_lea.sflag [#allocation7], 1
    %17 = vsyncpa %s16, 0
    loop: start=0, step=1, limit=4
    $region2: #{tpu_custom_call.1} parent=1 // loop_pre_header
      _
    $region3: #{tpu_custom_call.1} parent=1 // loop_header
      %s19 = sphi 0, %s23
      %p20 = scmp.ge.s32.totalorder %s19, 4
      %s29 = sphi 0, %s31
      %s32 = sphi 0, %s29
      %s33 = sphi 0, %s32
      %s49 = sphi 0, %s33
      %s53 = sphi 0, %s53
      %s55 = sphi 0, %s53
      %s56 = sphi 0, %s55
      %s70 = sphi 0, %s56
      %s74 = sphi 0, %s74
      %s76 = sphi 0, %s74
      %s77 = sphi 0, %s76
      %s91 = sphi 0, %s77
      %s95 = sphi 0, %s95
      %s97 = sphi 0, %s95
      %s98 = sphi 0, %s97
      %s112 = sphi 0, %s98
      %s116 = sphi 0, %s116
      %s118 = sphi 0, %s116
      %s119 = sphi 0, %s118
      %s133 = sphi 0, %s119
      %s137 = sphi 0, %s137
      %s139 = sphi 0, %s137
      %s140 = sphi 0, %s139
      %s154 = sphi 0, %s140
      %s158 = sphi 0, %s158
      %s160 = sphi 0, %s158
      %s161 = sphi 0, %s160
      %s175 = sphi 0, %s161
      %s179 = sphi 0, %s179
      %s181 = sphi 0, %s179
      %s182 = sphi 0, %s181
      %s196 = sphi 0, %s182
      %s200 = sphi 0, %s200
      %s202 = sphi 0, %s200
      %s203 = sphi 0, %s202
      %s217 = sphi 0, %s203
      %s221 = sphi 0, %s221
      %s223 = sphi 0, %s221
      %s224 = sphi 0, %s223
      %s238 = sphi 0, %s224
      %s244 = sphi 0, %s246
      %s247 = sphi 0, %s244
      %s248 = sphi 0, %s247
      %s264 = sphi 0, %s248
    $region4: #{tpu_custom_call.1} parent=1 // loop_header_branch
      %22 = sbr.rel (%p20) target = $region8
    $region5: #{tpu_custom_call.1} parent=1 // loop_body
      %s24 = ssub.s32 %s19, 1
      %s25 = ssub.s32 %s19, 2
      %s26 = sadd.s32 %s19, 1
      %s27 = ssub.s32 %s19, %s26
      %p28 = scmp.eq.s32.totalorder %s27, 0
      %s30 = sadd.s32 %s29, 1
      %s31 = scalar_select %p28, %s29, %s30
      %p34 = pneg %p28
      %p35 = scmp.eq.s32.totalorder %s19, 1
      %p36 = por %p34, %p35
      %p37 = scmp.ne.s32.totalorder %s29, %s32
      %p38 = scmp.eq.s32.totalorder %s19, 0
      %p39 = por %p37, %p38
      %p40 = scmp.ne.s32.totalorder %s29, %s32
      %p41 = scmp.eq.s32.totalorder %s24, 1
      %p42 = por %p40, %p41
      %p43 = scmp.ne.s32.totalorder %s32, %s33
      %p44 = scmp.eq.s32.totalorder %s24, 0
      %p45 = por %p43, %p44
      %p46 = scmp.ne.s32.totalorder %s32, %s33
      %p47 = scmp.eq.s32.totalorder %s25, 1
      %p48 = por %p46, %p47
      %p50 = scmp.ne.s32.totalorder %s33, %s49
      %p51 = scmp.eq.s32.totalorder %s25, 0
      %p52 = por %p50, %p51
      %s54 = sadd.s32 %s53, 1
      %p57 = scmp.eq.s32.totalorder %s19, 1
      %p58 = scmp.ne.s32.totalorder %s53, %s55
      %p59 = scmp.eq.s32.totalorder %s19, 0
      %p60 = por %p58, %p59
      %p61 = scmp.ne.s32.totalorder %s53, %s55
      %p62 = scmp.eq.s32.totalorder %s24, 1
      %p63 = por %p61, %p62
      %p64 = scmp.ne.s32.totalorder %s55, %s56
      %p65 = scmp.eq.s32.totalorder %s24, 0
      %p66 = por %p64, %p65
      %p67 = scmp.ne.s32.totalorder %s55, %s56
      %p68 = scmp.eq.s32.totalorder %s25, 1
      %p69 = por %p67, %p68
      %p71 = scmp.ne.s32.totalorder %s56, %s70
      %p72 = scmp.eq.s32.totalorder %s25, 0
      %p73 = por %p71, %p72
      %s75 = sadd.s32 %s74, 1
      %p78 = scmp.eq.s32.totalorder %s19, 1
      %p79 = scmp.ne.s32.totalorder %s74, %s76
      %p80 = scmp.eq.s32.totalorder %s19, 0
      %p81 = por %p79, %p80
      %p82 = scmp.ne.s32.totalorder %s74, %s76
      %p83 = scmp.eq.s32.totalorder %s24, 1
      %p84 = por %p82, %p83
      %p85 = scmp.ne.s32.totalorder %s76, %s77
      %p86 = scmp.eq.s32.totalorder %s24, 0
      %p87 = por %p85, %p86
      %p88 = scmp.ne.s32.totalorder %s76, %s77
      %p89 = scmp.eq.s32.totalorder %s25, 1
      %p90 = por %p88, %p89
      %p92 = scmp.ne.s32.totalorder %s77, %s91
      %p93 = scmp.eq.s32.totalorder %s25, 0
      %p94 = por %p92, %p93
      %s96 = sadd.s32 %s95, 1
      %p99 = scmp.eq.s32.totalorder %s19, 1
      %p100 = scmp.ne.s32.totalorder %s95, %s97
      %p101 = scmp.eq.s32.totalorder %s19, 0
      %p102 = por %p100, %p101
      %p103 = scmp.ne.s32.totalorder %s95, %s97
      %p104 = scmp.eq.s32.totalorder %s24, 1
      %p105 = por %p103, %p104
      %p106 = scmp.ne.s32.totalorder %s97, %s98
      %p107 = scmp.eq.s32.totalorder %s24, 0
      %p108 = por %p106, %p107
      %p109 = scmp.ne.s32.totalorder %s97, %s98
      %p110 = scmp.eq.s32.totalorder %s25, 1
      %p111 = por %p109, %p110
      %p113 = scmp.ne.s32.totalorder %s98, %s112
      %p114 = scmp.eq.s32.totalorder %s25, 0
      %p115 = por %p113, %p114
      %s117 = sadd.s32 %s116, 1
      %p120 = scmp.eq.s32.totalorder %s19, 1
      %p121 = scmp.ne.s32.totalorder %s116, %s118
      %p122 = scmp.eq.s32.totalorder %s19, 0
      %p123 = por %p121, %p122
      %p124 = scmp.ne.s32.totalorder %s116, %s118
      %p125 = scmp.eq.s32.totalorder %s24, 1
      %p126 = por %p124, %p125
      %p127 = scmp.ne.s32.totalorder %s118, %s119
      %p128 = scmp.eq.s32.totalorder %s24, 0
      %p129 = por %p127, %p128
      %p130 = scmp.ne.s32.totalorder %s118, %s119
      %p131 = scmp.eq.s32.totalorder %s25, 1
      %p132 = por %p130, %p131
      %p134 = scmp.ne.s32.totalorder %s119, %s133
      %p135 = scmp.eq.s32.totalorder %s25, 0
      %p136 = por %p134, %p135
      %s138 = sadd.s32 %s137, 1
      %p141 = scmp.eq.s32.totalorder %s19, 1
      %p142 = scmp.ne.s32.totalorder %s137, %s139
      %p143 = scmp.eq.s32.totalorder %s19, 0
      %p144 = por %p142, %p143
      %p145 = scmp.ne.s32.totalorder %s137, %s139
      %p146 = scmp.eq.s32.totalorder %s24, 1
      %p147 = por %p145, %p146
      %p148 = scmp.ne.s32.totalorder %s139, %s140
      %p149 = scmp.eq.s32.totalorder %s24, 0
      %p150 = por %p148, %p149
      %p151 = scmp.ne.s32.totalorder %s139, %s140
      %p152 = scmp.eq.s32.totalorder %s25, 1
      %p153 = por %p151, %p152
      %p155 = scmp.ne.s32.totalorder %s140, %s154
      %p156 = scmp.eq.s32.totalorder %s25, 0
      %p157 = por %p155, %p156
      %s159 = sadd.s32 %s158, 1
      %p162 = scmp.eq.s32.totalorder %s19, 1
      %p163 = scmp.ne.s32.totalorder %s158, %s160
      %p164 = scmp.eq.s32.totalorder %s19, 0
      %p165 = por %p163, %p164
      %p166 = scmp.ne.s32.totalorder %s158, %s160
      %p167 = scmp.eq.s32.totalorder %s24, 1
      %p168 = por %p166, %p167
      %p169 = scmp.ne.s32.totalorder %s160, %s161
      %p170 = scmp.eq.s32.totalorder %s24, 0
      %p171 = por %p169, %p170
      %p172 = scmp.ne.s32.totalorder %s160, %s161
      %p173 = scmp.eq.s32.totalorder %s25, 1
      %p174 = por %p172, %p173
      %p176 = scmp.ne.s32.totalorder %s161, %s175
      %p177 = scmp.eq.s32.totalorder %s25, 0
      %p178 = por %p176, %p177
      %s180 = sadd.s32 %s179, 1
      %p183 = scmp.eq.s32.totalorder %s19, 1
      %p184 = scmp.ne.s32.totalorder %s179, %s181
      %p185 = scmp.eq.s32.totalorder %s19, 0
      %p186 = por %p184, %p185
      %p187 = scmp.ne.s32.totalorder %s179, %s181
      %p188 = scmp.eq.s32.totalorder %s24, 1
      %p189 = por %p187, %p188
      %p190 = scmp.ne.s32.totalorder %s181, %s182
      %p191 = scmp.eq.s32.totalorder %s24, 0
      %p192 = por %p190, %p191
      %p193 = scmp.ne.s32.totalorder %s181, %s182
      %p194 = scmp.eq.s32.totalorder %s25, 1
      %p195 = por %p193, %p194
      %p197 = scmp.ne.s32.totalorder %s182, %s196
      %p198 = scmp.eq.s32.totalorder %s25, 0
      %p199 = por %p197, %p198
      %s201 = sadd.s32 %s200, 1
      %p204 = scmp.eq.s32.totalorder %s19, 1
      %p205 = scmp.ne.s32.totalorder %s200, %s202
      %p206 = scmp.eq.s32.totalorder %s19, 0
      %p207 = por %p205, %p206
      %p208 = scmp.ne.s32.totalorder %s200, %s202
      %p209 = scmp.eq.s32.totalorder %s24, 1
      %p210 = por %p208, %p209
      %p211 = scmp.ne.s32.totalorder %s202, %s203
      %p212 = scmp.eq.s32.totalorder %s24, 0
      %p213 = por %p211, %p212
      %p214 = scmp.ne.s32.totalorder %s202, %s203
      %p215 = scmp.eq.s32.totalorder %s25, 1
      %p216 = por %p214, %p215
      %p218 = scmp.ne.s32.totalorder %s203, %s217
      %p219 = scmp.eq.s32.totalorder %s25, 0
      %p220 = por %p218, %p219
      %s222 = sadd.s32 %s221, 1
      %p225 = scmp.eq.s32.totalorder %s19, 1
      %p226 = scmp.ne.s32.totalorder %s221, %s223
      %p227 = scmp.eq.s32.totalorder %s19, 0
      %p228 = por %p226, %p227
      %p229 = scmp.ne.s32.totalorder %s221, %s223
      %p230 = scmp.eq.s32.totalorder %s24, 1
      %p231 = por %p229, %p230
      %p232 = scmp.ne.s32.totalorder %s223, %s224
      %p233 = scmp.eq.s32.totalorder %s24, 0
      %p234 = por %p232, %p233
      %p235 = scmp.ne.s32.totalorder %s223, %s224
      %p236 = scmp.eq.s32.totalorder %s25, 1
      %p237 = por %p235, %p236
      %p239 = scmp.ne.s32.totalorder %s224, %s238
      %p240 = scmp.eq.s32.totalorder %s25, 0
      %p241 = por %p239, %p240
      %s242 = ssub.s32 %s19, %s26
      %p243 = scmp.eq.s32.totalorder %s242, 0
      %s245 = sadd.s32 %s244, 1
      %s246 = scalar_select %p243, %s244, %s245
      %p249 = pneg %p243
      %p250 = scmp.eq.s32.totalorder %s19, 1
      %p251 = por %p249, %p250
      %p252 = scmp.ne.s32.totalorder %s244, %s247
      %p253 = scmp.eq.s32.totalorder %s19, 0
      %p254 = por %p252, %p253
      %p255 = scmp.ne.s32.totalorder %s244, %s247
      %p256 = scmp.eq.s32.totalorder %s24, 1
      %p257 = por %p255, %p256
      %p258 = scmp.ne.s32.totalorder %s247, %s248
      %p259 = scmp.eq.s32.totalorder %s24, 0
      %p260 = por %p258, %p259
      %p261 = scmp.ne.s32.totalorder %s247, %s248
      %p262 = scmp.eq.s32.totalorder %s25, 1
      %p263 = por %p261, %p262
      %p265 = scmp.ne.s32.totalorder %s248, %s264
      %p266 = scmp.eq.s32.totalorder %s25, 0
      %p267 = por %p265, %p266
      %p268 = scmp.le.s32.totalorder 1, %s19
      %p269 = scmp.lt.s32.totalorder %s19, 3
      %p270 = pnand %p268, %p269
      %p271 = pneg %p270
      // Predicated region
      $region9: #{tpu_custom_call.1} parent=5 // pred_check
        _
      $region10: #{tpu_custom_call.1} parent=5 // pred_check_branch
        %273 = sbr.rel (%p270) target = $region12
      $region11: #{tpu_custom_call.1} parent=5 // pred_region
        %s274 = ssub.s32 %s19, 1
        // Predicated region
        $region13: #{tpu_custom_call.1} parent=11 // pred_check
          %p275 = pneg %p66
        $region14: #{tpu_custom_call.1} parent=11 // pred_check_branch
          %277 = sbr.rel (%p275) target = $region16
        $region15: #{tpu_custom_call.1} parent=11 // pred_region
          _
        $region16: #{tpu_custom_call.1} parent=11 // pred_fallthru
          _
        // Predicated region
        $region17: #{tpu_custom_call.1} parent=11 // pred_check
          %p278 = pneg %p87
        $region18: #{tpu_custom_call.1} parent=11 // pred_check_branch
          %280 = sbr.rel (%p278) target = $region20
        $region19: #{tpu_custom_call.1} parent=11 // pred_region
          _
        $region20: #{tpu_custom_call.1} parent=11 // pred_fallthru
          _
        // Predicated region
        $region21: #{tpu_custom_call.1} parent=11 // pred_check
          %p281 = pneg %p108
        $region22: #{tpu_custom_call.1} parent=11 // pred_check_branch
          %283 = sbr.rel (%p281) target = $region24
        $region23: #{tpu_custom_call.1} parent=11 // pred_region
          _
        $region24: #{tpu_custom_call.1} parent=11 // pred_fallthru
          _
        // Predicated region
        $region25: #{tpu_custom_call.1} parent=11 // pred_check
          %p284 = pneg %p129
        $region26: #{tpu_custom_call.1} parent=11 // pred_check_branch
          %286 = sbr.rel (%p284) target = $region28
        $region27: #{tpu_custom_call.1} parent=11 // pred_region
          _
        $region28: #{tpu_custom_call.1} parent=11 // pred_fallthru
          _
        // Predicated region
        $region29: #{tpu_custom_call.1} parent=11 // pred_check
          %p287 = pneg %p150
        $region30: #{tpu_custom_call.1} parent=11 // pred_check_branch
          %289 = sbr.rel (%p287) target = $region32
        $region31: #{tpu_custom_call.1} parent=11 // pred_region
          _
        $region32: #{tpu_custom_call.1} parent=11 // pred_fallthru
          _
        // Predicated region
        $region33: #{tpu_custom_call.1} parent=11 // pred_check
          %p290 = pneg %p171
        $region34: #{tpu_custom_call.1} parent=11 // pred_check_branch
          %292 = sbr.rel (%p290) target = $region36
        $region35: #{tpu_custom_call.1} parent=11 // pred_region
          _
        $region36: #{tpu_custom_call.1} parent=11 // pred_fallthru
          _
        // Predicated region
        $region37: #{tpu_custom_call.1} parent=11 // pred_check
          %p293 = pneg %p192
        $region38: #{tpu_custom_call.1} parent=11 // pred_check_branch
          %295 = sbr.rel (%p293) target = $region40
        $region39: #{tpu_custom_call.1} parent=11 // pred_region
          _
        $region40: #{tpu_custom_call.1} parent=11 // pred_fallthru
          _
        // Predicated region
        $region41: #{tpu_custom_call.1} parent=11 // pred_check
          %p296 = pneg %p213
        $region42: #{tpu_custom_call.1} parent=11 // pred_check_branch
          %298 = sbr.rel (%p296) target = $region44
        $region43: #{tpu_custom_call.1} parent=11 // pred_region
          _
        $region44: #{tpu_custom_call.1} parent=11 // pred_fallthru
          _
        // Predicated region
        $region45: #{tpu_custom_call.1} parent=11 // pred_check
          %p299 = pneg %p234
        $region46: #{tpu_custom_call.1} parent=11 // pred_check_branch
          %301 = sbr.rel (%p299) target = $region48
        $region47: #{tpu_custom_call.1} parent=11 // pred_region
          _
        $region48: #{tpu_custom_call.1} parent=11 // pred_fallthru
          _
      $region12: #{tpu_custom_call.1} parent=5 // pred_fallthru
        _
      %p302 = scmp.lt.s32.totalorder %s19, 2
      // Predicated region
      $region49: #{tpu_custom_call.1} parent=5 // pred_check
        %p303 = pneg %p302
      $region50: #{tpu_custom_call.1} parent=5 // pred_check_branch
        %305 = sbr.rel (%p303) target = $region52
      $region51: #{tpu_custom_call.1} parent=5 // pred_region
        // Predicated region
        $region53: #{tpu_custom_call.1} parent=51 // pred_check
          %p306 = pneg %p39
        $region54: #{tpu_custom_call.1} parent=51 // pred_check_branch
          %308 = sbr.rel (%p306) target = $region56
        $region55: #{tpu_custom_call.1} parent=51 // pred_region
          %p309 = scmp.lt.s32.totalorder %s19, 1
          %s310 = scalar_select %p309, %s19, 1
          %s311 = smul.addr %s310, 32
          %s312 = smul.addr %s311, 8
          %s313 = scalar_lea.vmem %s0, %s312
        $region56: #{tpu_custom_call.1} parent=51 // pred_fallthru
          _
      $region52: #{tpu_custom_call.1} parent=5 // pred_fallthru
        _
      %p314 = scmp.le.s32.totalorder 1, %s19
      %p315 = scmp.lt.s32.totalorder %s19, 3
      %p316 = pnand %p314, %p315
      %p317 = pneg %p316
      // Predicated region
      $region57: #{tpu_custom_call.1} parent=5 // pred_check
        _
      $region58: #{tpu_custom_call.1} parent=5 // pred_check_branch
        %319 = sbr.rel (%p316) target = $region60
      $region59: #{tpu_custom_call.1} parent=5 // pred_region
        %s320 = ssub.s32 %s19, 1
        %p321 = scmp.lt.s32.totalorder %s24, 1
        %s322 = scalar_select %p321, %s24, 1
        %s323 = smul.addr %s322, 32
        %s324 = smul.addr %s323, 8
        %s325 = scalar_lea.vmem %s0, %s324
        %p326 = pneg %p45
        %p327 = pneg %p42
        %p328 = pneg %p66
        %p329 = pneg %p63
        %p330 = pneg %p87
        %p331 = pneg %p84
        %p332 = pneg %p108
        %p333 = pneg %p105
        %p334 = pneg %p129
        %p335 = pneg %p126
        %p336 = pneg %p150
        %p337 = pneg %p147
        %p338 = pneg %p171
        %p339 = pneg %p168
        %p340 = pneg %p192
        %p341 = pneg %p189
        %p342 = pneg %p213
        %p343 = pneg %p210
        %p344 = pneg %p234
        %p345 = pneg %p231
        %p346 = pneg %p260
        %p347 = pneg %p257
        %s348 = sand.u32 %s247, 1
        %s349 = scalar_lea.sflag [#allocation7], %s348
        %s350 = sand.u32 %s247, 1
        %s351 = smul.addr %s350, 64
        %s352 = scalar_lea.vmem [#allocation6], %s351
        %p353 = scmp.lt.s32.totalorder %s24, 1
        %s354 = scalar_select %p353, %s24, 1
        %s355 = smul.addr %s354, 32
        %s356 = smul.addr %s355, 8
        %s357 = scalar_lea.vmem %s0, %s356
        %v358 = vld [vmem:[%s357] sm:$0xff]
        %v359 = vld [vmem:[%s357 + $0x8] sm:$0xff]
        %v360 = vld [vmem:[%s357 + $0x10] sm:$0xff]
        %v361 = vld [vmem:[%s357 + $0x18] sm:$0xff]
        %v362 = vld [vmem:[%s357 + $0x20] sm:$0xff]
        %v363 = vld [vmem:[%s357 + $0x28] sm:$0xff]
        %v364 = vld [vmem:[%s357 + $0x30] sm:$0xff]
        %v365 = vld [vmem:[%s357 + $0x38] sm:$0xff]
        %v366 = vld [vmem:[%s357 + $0x40] sm:$0xff]
        %v367 = vld [vmem:[%s357 + $0x48] sm:$0xff]
        %v368 = vld [vmem:[%s357 + $0x50] sm:$0xff]
        %v369 = vld [vmem:[%s357 + $0x58] sm:$0xff]
        %v370 = vld [vmem:[%s357 + $0x60] sm:$0xff]
        %v371 = vld [vmem:[%s357 + $0x68] sm:$0xff]
        %v372 = vld [vmem:[%s357 + $0x70] sm:$0xff]
        %v373 = vld [vmem:[%s357 + $0x78] sm:$0xff]
        %v374 = vld [vmem:[%s357 + $0x80] sm:$0xff]
        %v375 = vld [vmem:[%s357 + $0x88] sm:$0xff]
        %v376 = vld [vmem:[%s357 + $0x90] sm:$0xff]
        %v377 = vld [vmem:[%s357 + $0x98] sm:$0xff]
        %v378 = vld [vmem:[%s357 + $0xa0] sm:$0xff]
        %v379 = vld [vmem:[%s357 + $0xa8] sm:$0xff]
        %v380 = vld [vmem:[%s357 + $0xb0] sm:$0xff]
        %v381 = vld [vmem:[%s357 + $0xb8] sm:$0xff]
        %v382 = vld [vmem:[%s357 + $0xc0] sm:$0xff]
        %v383 = vld [vmem:[%s357 + $0xc8] sm:$0xff]
        %v384 = vld [vmem:[%s357 + $0xd0] sm:$0xff]
        %v385 = vld [vmem:[%s357 + $0xd8] sm:$0xff]
        %v386 = vld [vmem:[%s357 + $0xe0] sm:$0xff]
        %v387 = vld [vmem:[%s357 + $0xe8] sm:$0xff]
        %v388 = vld [vmem:[%s357 + $0xf0] sm:$0xff]
        %v389 = vld [vmem:[%s357 + $0xf8] sm:$0xff]
        %vm390 = vcmask 261120
        %v391 = vsel %vm390, %v358, 0.0
        %392 = vadd.xlane.f32.xlu0 %v391
        %v393 = vpop.xlane.xlu0 %392
        %v394 = vsel %vm390, %v359, 0.0
        %395 = vadd.xlane.f32.xlu0 %v394
        %v396 = vpop.xlane.xlu0 %395
        %v397 = vsel %vm390, %v360, 0.0
        %398 = vadd.xlane.f32.xlu0 %v397
        %v399 = vpop.xlane.xlu0 %398
        %v400 = vsel %vm390, %v361, 0.0
        %401 = vadd.xlane.f32.xlu0 %v400
        %v402 = vpop.xlane.xlu0 %401
        %v403 = vsel %vm390, %v362, 0.0
        %404 = vadd.xlane.f32.xlu0 %v403
        %v405 = vpop.xlane.xlu0 %404
        %v406 = vsel %vm390, %v363, 0.0
        %407 = vadd.xlane.f32.xlu0 %v406
        %v408 = vpop.xlane.xlu0 %407
        %v409 = vsel %vm390, %v364, 0.0
        %410 = vadd.xlane.f32.xlu0 %v409
        %v411 = vpop.xlane.xlu0 %410
        %v412 = vsel %vm390, %v365, 0.0
        %413 = vadd.xlane.f32.xlu0 %v412
        %v414 = vpop.xlane.xlu0 %413
        %v415 = vsel %vm390, %v366, 0.0
        %416 = vadd.xlane.f32.xlu0 %v415
        %v417 = vpop.xlane.xlu0 %416
        %v418 = vsel %vm390, %v367, 0.0
        %419 = vadd.xlane.f32.xlu0 %v418
        %v420 = vpop.xlane.xlu0 %419
        %v421 = vsel %vm390, %v368, 0.0
        %422 = vadd.xlane.f32.xlu0 %v421
        %v423 = vpop.xlane.xlu0 %422
        %v424 = vsel %vm390, %v369, 0.0
        %425 = vadd.xlane.f32.xlu0 %v424
        %v426 = vpop.xlane.xlu0 %425
        %v427 = vsel %vm390, %v370, 0.0
        %428 = vadd.xlane.f32.xlu0 %v427
        %v429 = vpop.xlane.xlu0 %428
        %v430 = vsel %vm390, %v371, 0.0
        %431 = vadd.xlane.f32.xlu0 %v430
        %v432 = vpop.xlane.xlu0 %431
        %v433 = vsel %vm390, %v372, 0.0
        %434 = vadd.xlane.f32.xlu0 %v433
        %v435 = vpop.xlane.xlu0 %434
        %v436 = vsel %vm390, %v373, 0.0
        %437 = vadd.xlane.f32.xlu0 %v436
        %v438 = vpop.xlane.xlu0 %437
        %v439 = vsel %vm390, %v374, 0.0
        %440 = vadd.xlane.f32.xlu0 %v439
        %v441 = vpop.xlane.xlu0 %440
        %v442 = vsel %vm390, %v375, 0.0
        %443 = vadd.xlane.f32.xlu0 %v442
        %v444 = vpop.xlane.xlu0 %443
        %v445 = vsel %vm390, %v376, 0.0
        %446 = vadd.xlane.f32.xlu0 %v445
        %v447 = vpop.xlane.xlu0 %446
        %v448 = vsel %vm390, %v377, 0.0
        %449 = vadd.xlane.f32.xlu0 %v448
        %v450 = vpop.xlane.xlu0 %449
        %v451 = vsel %vm390, %v378, 0.0
        %452 = vadd.xlane.f32.xlu0 %v451
        %v453 = vpop.xlane.xlu0 %452
        %v454 = vsel %vm390, %v379, 0.0
        %455 = vadd.xlane.f32.xlu0 %v454
        %v456 = vpop.xlane.xlu0 %455
        %v457 = vsel %vm390, %v380, 0.0
        %458 = vadd.xlane.f32.xlu0 %v457
        %v459 = vpop.xlane.xlu0 %458
        %v460 = vsel %vm390, %v381, 0.0
        %461 = vadd.xlane.f32.xlu0 %v460
        %v462 = vpop.xlane.xlu0 %461
        %v463 = vsel %vm390, %v382, 0.0
        %464 = vadd.xlane.f32.xlu0 %v463
        %v465 = vpop.xlane.xlu0 %464
        %v466 = vsel %vm390, %v383, 0.0
        %467 = vadd.xlane.f32.xlu0 %v466
        %v468 = vpop.xlane.xlu0 %467
        %v469 = vsel %vm390, %v384, 0.0
        %470 = vadd.xlane.f32.xlu0 %v469
        %v471 = vpop.xlane.xlu0 %470
        %v472 = vsel %vm390, %v385, 0.0
        %473 = vadd.xlane.f32.xlu0 %v472
        %v474 = vpop.xlane.xlu0 %473
        %v475 = vsel %vm390, %v386, 0.0
        %476 = vadd.xlane.f32.xlu0 %v475
        %v477 = vpop.xlane.xlu0 %476
        %v478 = vsel %vm390, %v387, 0.0
        %479 = vadd.xlane.f32.xlu0 %v478
        %v480 = vpop.xlane.xlu0 %479
        %v481 = vsel %vm390, %v388, 0.0
        %482 = vadd.xlane.f32.xlu0 %v481
        %v483 = vpop.xlane.xlu0 %482
        %v484 = vsel %vm390, %v389, 0.0
        %485 = vadd.xlane.f32.xlu0 %v484
        %v486 = vpop.xlane.xlu0 %485
        %v487 = vrcp.pop 32.0
        %v488 = vmul.f32 %v393, %v487
        %v489 = vmul.f32 %v396, %v487
        %v490 = vmul.f32 %v399, %v487
        %v491 = vmul.f32 %v402, %v487
        %v492 = vmul.f32 %v405, %v487
        %v493 = vmul.f32 %v408, %v487
        %v494 = vmul.f32 %v411, %v487
        %v495 = vmul.f32 %v414, %v487
        %v496 = vmul.f32 %v417, %v487
        %v497 = vmul.f32 %v420, %v487
        %v498 = vmul.f32 %v423, %v487
        %v499 = vmul.f32 %v426, %v487
        %v500 = vmul.f32 %v429, %v487
        %v501 = vmul.f32 %v432, %v487
        %v502 = vmul.f32 %v435, %v487
        %v503 = vmul.f32 %v438, %v487
        %v504 = vmul.f32 %v441, %v487
        %v505 = vmul.f32 %v444, %v487
        %v506 = vmul.f32 %v447, %v487
        %v507 = vmul.f32 %v450, %v487
        %v508 = vmul.f32 %v453, %v487
        %v509 = vmul.f32 %v456, %v487
        %v510 = vmul.f32 %v459, %v487
        %v511 = vmul.f32 %v462, %v487
        %v512 = vmul.f32 %v465, %v487
        %v513 = vmul.f32 %v468, %v487
        %v514 = vmul.f32 %v471, %v487
        %v515 = vmul.f32 %v474, %v487
        %v516 = vmul.f32 %v477, %v487
        %v517 = vmul.f32 %v480, %v487
        %v518 = vmul.f32 %v483, %v487
        %v519 = vmul.f32 %v486, %v487
        %v520 = vsub.f32 %v358, %v488
        %v521 = vsub.f32 %v359, %v489
        %v522 = vsub.f32 %v360, %v490
        %v523 = vsub.f32 %v361, %v491
        %v524 = vsub.f32 %v362, %v492
        %v525 = vsub.f32 %v363, %v493
        %v526 = vsub.f32 %v364, %v494
        %v527 = vsub.f32 %v365, %v495
        %v528 = vsub.f32 %v366, %v496
        %v529 = vsub.f32 %v367, %v497
        %v530 = vsub.f32 %v368, %v498
        %v531 = vsub.f32 %v369, %v499
        %v532 = vsub.f32 %v370, %v500
        %v533 = vsub.f32 %v371, %v501
        %v534 = vsub.f32 %v372, %v502
        %v535 = vsub.f32 %v373, %v503
        %v536 = vsub.f32 %v374, %v504
        %v537 = vsub.f32 %v375, %v505
        %v538 = vsub.f32 %v376, %v506
        %v539 = vsub.f32 %v377, %v507
        %v540 = vsub.f32 %v378, %v508
        %v541 = vsub.f32 %v379, %v509
        %v542 = vsub.f32 %v380, %v510
        %v543 = vsub.f32 %v381, %v511
        %v544 = vsub.f32 %v382, %v512
        %v545 = vsub.f32 %v383, %v513
        %v546 = vsub.f32 %v384, %v514
        %v547 = vsub.f32 %v385, %v515
        %v548 = vsub.f32 %v386, %v516
        %v549 = vsub.f32 %v387, %v517
        %v550 = vsub.f32 %v388, %v518
        %v551 = vsub.f32 %v389, %v519
        %v552 = vmul.f32 %v520, %v520
        %v553 = vmul.f32 %v521, %v521
        %v554 = vmul.f32 %v522, %v522
        %v555 = vmul.f32 %v523, %v523
        %v556 = vmul.f32 %v524, %v524
        %v557 = vmul.f32 %v525, %v525
        %v558 = vmul.f32 %v526, %v526
        %v559 = vmul.f32 %v527, %v527
        %v560 = vmul.f32 %v528, %v528
        %v561 = vmul.f32 %v529, %v529
        %v562 = vmul.f32 %v530, %v530
        %v563 = vmul.f32 %v531, %v531
        %v564 = vmul.f32 %v532, %v532
        %v565 = vmul.f32 %v533, %v533
        %v566 = vmul.f32 %v534, %v534
        %v567 = vmul.f32 %v535, %v535
        %v568 = vmul.f32 %v536, %v536
        %v569 = vmul.f32 %v537, %v537
        %v570 = vmul.f32 %v538, %v538
        %v571 = vmul.f32 %v539, %v539
        %v572 = vmul.f32 %v540, %v540
        %v573 = vmul.f32 %v541, %v541
        %v574 = vmul.f32 %v542, %v542
        %v575 = vmul.f32 %v543, %v543
        %v576 = vmul.f32 %v544, %v544
        %v577 = vmul.f32 %v545, %v545
        %v578 = vmul.f32 %v546, %v546
        %v579 = vmul.f32 %v547, %v547
        %v580 = vmul.f32 %v548, %v548
        %v581 = vmul.f32 %v549, %v549
        %v582 = vmul.f32 %v550, %v550
        %v583 = vmul.f32 %v551, %v551
        %v584 = vsel %vm390, %v552, 0.0
        %585 = vadd.xlane.f32.xlu0 %v584
        %v586 = vpop.xlane.xlu0 %585
        %v587 = vsel %vm390, %v553, 0.0
        %588 = vadd.xlane.f32.xlu0 %v587
        %v589 = vpop.xlane.xlu0 %588
        %v590 = vsel %vm390, %v554, 0.0
        %591 = vadd.xlane.f32.xlu0 %v590
        %v592 = vpop.xlane.xlu0 %591
        %v593 = vsel %vm390, %v555, 0.0
        %594 = vadd.xlane.f32.xlu0 %v593
        %v595 = vpop.xlane.xlu0 %594
        %v596 = vsel %vm390, %v556, 0.0
        %597 = vadd.xlane.f32.xlu0 %v596
        %v598 = vpop.xlane.xlu0 %597
        %v599 = vsel %vm390, %v557, 0.0
        %600 = vadd.xlane.f32.xlu0 %v599
        %v601 = vpop.xlane.xlu0 %600
        %v602 = vsel %vm390, %v558, 0.0
        %603 = vadd.xlane.f32.xlu0 %v602
        %v604 = vpop.xlane.xlu0 %603
        %v605 = vsel %vm390, %v559, 0.0
        %606 = vadd.xlane.f32.xlu0 %v605
        %v607 = vpop.xlane.xlu0 %606
        %v608 = vsel %vm390, %v560, 0.0
        %609 = vadd.xlane.f32.xlu0 %v608
        %v610 = vpop.xlane.xlu0 %609
        %v611 = vsel %vm390, %v561, 0.0
        %612 = vadd.xlane.f32.xlu0 %v611
        %v613 = vpop.xlane.xlu0 %612
        %v614 = vsel %vm390, %v562, 0.0
        %615 = vadd.xlane.f32.xlu0 %v614
        %v616 = vpop.xlane.xlu0 %615
        %v617 = vsel %vm390, %v563, 0.0
        %618 = vadd.xlane.f32.xlu0 %v617
        %v619 = vpop.xlane.xlu0 %618
        %v620 = vsel %vm390, %v564, 0.0
        %621 = vadd.xlane.f32.xlu0 %v620
        %v622 = vpop.xlane.xlu0 %621
        %v623 = vsel %vm390, %v565, 0.0
        %624 = vadd.xlane.f32.xlu0 %v623
        %v625 = vpop.xlane.xlu0 %624
        %v626 = vsel %vm390, %v566, 0.0
        %627 = vadd.xlane.f32.xlu0 %v626
        %v628 = vpop.xlane.xlu0 %627
        %v629 = vsel %vm390, %v567, 0.0
        %630 = vadd.xlane.f32.xlu0 %v629
        %v631 = vpop.xlane.xlu0 %630
        %v632 = vsel %vm390, %v568, 0.0
        %633 = vadd.xlane.f32.xlu0 %v632
        %v634 = vpop.xlane.xlu0 %633
        %v635 = vsel %vm390, %v569, 0.0
        %636 = vadd.xlane.f32.xlu0 %v635
        %v637 = vpop.xlane.xlu0 %636
        %v638 = vsel %vm390, %v570, 0.0
        %639 = vadd.xlane.f32.xlu0 %v638
        %v640 = vpop.xlane.xlu0 %639
        %v641 = vsel %vm390, %v571, 0.0
        %642 = vadd.xlane.f32.xlu0 %v641
        %v643 = vpop.xlane.xlu0 %642
        %v644 = vsel %vm390, %v572, 0.0
        %645 = vadd.xlane.f32.xlu0 %v644
        %v646 = vpop.xlane.xlu0 %645
        %v647 = vsel %vm390, %v573, 0.0
        %648 = vadd.xlane.f32.xlu0 %v647
        %v649 = vpop.xlane.xlu0 %648
        %v650 = vsel %vm390, %v574, 0.0
        %651 = vadd.xlane.f32.xlu0 %v650
        %v652 = vpop.xlane.xlu0 %651
        %v653 = vsel %vm390, %v575, 0.0
        %654 = vadd.xlane.f32.xlu0 %v653
        %v655 = vpop.xlane.xlu0 %654
        %v656 = vsel %vm390, %v576, 0.0
        %657 = vadd.xlane.f32.xlu0 %v656
        %v658 = vpop.xlane.xlu0 %657
        %v659 = vsel %vm390, %v577, 0.0
        %660 = vadd.xlane.f32.xlu0 %v659
        %v661 = vpop.xlane.xlu0 %660
        %v662 = vsel %vm390, %v578, 0.0
        %663 = vadd.xlane.f32.xlu0 %v662
        %v664 = vpop.xlane.xlu0 %663
        %v665 = vsel %vm390, %v579, 0.0
        %666 = vadd.xlane.f32.xlu0 %v665
        %v667 = vpop.xlane.xlu0 %666
        %v668 = vsel %vm390, %v580, 0.0
        %669 = vadd.xlane.f32.xlu0 %v668
        %v670 = vpop.xlane.xlu0 %669
        %v671 = vsel %vm390, %v581, 0.0
        %672 = vadd.xlane.f32.xlu0 %v671
        %v673 = vpop.xlane.xlu0 %672
        %v674 = vsel %vm390, %v582, 0.0
        %675 = vadd.xlane.f32.xlu0 %v674
        %v676 = vpop.xlane.xlu0 %675
        %v677 = vsel %vm390, %v583, 0.0
        %678 = vadd.xlane.f32.xlu0 %v677
        %v679 = vpop.xlane.xlu0 %678
        %v680 = vmul.f32 %v586, %v487
        %v681 = vmul.f32 %v589, %v487
        %v682 = vmul.f32 %v592, %v487
        %v683 = vmul.f32 %v595, %v487
        %v684 = vmul.f32 %v598, %v487
        %v685 = vmul.f32 %v601, %v487
        %v686 = vmul.f32 %v604, %v487
        %v687 = vmul.f32 %v607, %v487
        %v688 = vmul.f32 %v610, %v487
        %v689 = vmul.f32 %v613, %v487
        %v690 = vmul.f32 %v616, %v487
        %v691 = vmul.f32 %v619, %v487
        %v692 = vmul.f32 %v622, %v487
        %v693 = vmul.f32 %v625, %v487
        %v694 = vmul.f32 %v628, %v487
        %v695 = vmul.f32 %v631, %v487
        %v696 = vmul.f32 %v634, %v487
        %v697 = vmul.f32 %v637, %v487
        %v698 = vmul.f32 %v640, %v487
        %v699 = vmul.f32 %v643, %v487
        %v700 = vmul.f32 %v646, %v487
        %v701 = vmul.f32 %v649, %v487
        %v702 = vmul.f32 %v652, %v487
        %v703 = vmul.f32 %v655, %v487
        %v704 = vmul.f32 %v658, %v487
        %v705 = vmul.f32 %v661, %v487
        %v706 = vmul.f32 %v664, %v487
        %v707 = vmul.f32 %v667, %v487
        %v708 = vmul.f32 %v670, %v487
        %v709 = vmul.f32 %v673, %v487
        %v710 = vmul.f32 %v676, %v487
        %v711 = vmul.f32 %v679, %v487
        %v712 = vadd.f32 %v680, 1e-05
        %v713 = vadd.f32 %v681, 1e-05
        %v714 = vadd.f32 %v682, 1e-05
        %v715 = vadd.f32 %v683, 1e-05
        %v716 = vadd.f32 %v684, 1e-05
        %v717 = vadd.f32 %v685, 1e-05
        %v718 = vadd.f32 %v686, 1e-05
        %v719 = vadd.f32 %v687, 1e-05
        %v720 = vadd.f32 %v688, 1e-05
        %v721 = vadd.f32 %v689, 1e-05
        %v722 = vadd.f32 %v690, 1e-05
        %v723 = vadd.f32 %v691, 1e-05
        %v724 = vadd.f32 %v692, 1e-05
        %v725 = vadd.f32 %v693, 1e-05
        %v726 = vadd.f32 %v694, 1e-05
        %v727 = vadd.f32 %v695, 1e-05
        %v728 = vadd.f32 %v696, 1e-05
        %v729 = vadd.f32 %v697, 1e-05
        %v730 = vadd.f32 %v698, 1e-05
        %v731 = vadd.f32 %v699, 1e-05
        %v732 = vadd.f32 %v700, 1e-05
        %v733 = vadd.f32 %v701, 1e-05
        %v734 = vadd.f32 %v702, 1e-05
        %v735 = vadd.f32 %v703, 1e-05
        %v736 = vadd.f32 %v704, 1e-05
        %v737 = vadd.f32 %v705, 1e-05
        %v738 = vadd.f32 %v706, 1e-05
        %v739 = vadd.f32 %v707, 1e-05
        %v740 = vadd.f32 %v708, 1e-05
        %v741 = vadd.f32 %v709, 1e-05
        %v742 = vadd.f32 %v710, 1e-05
        %v743 = vadd.f32 %v711, 1e-05
        %v744 = vrsqrt.pop %v712
        %v745 = vrsqrt.pop %v713
        %v746 = vrsqrt.pop %v714
        %v747 = vrsqrt.pop %v715
        %v748 = vrsqrt.pop %v716
        %v749 = vrsqrt.pop %v717
        %v750 = vrsqrt.pop %v718
        %v751 = vrsqrt.pop %v719
        %v752 = vrsqrt.pop %v720
        %v753 = vrsqrt.pop %v721
        %v754 = vrsqrt.pop %v722
        %v755 = vrsqrt.pop %v723
        %v756 = vrsqrt.pop %v724
        %v757 = vrsqrt.pop %v725
        %v758 = vrsqrt.pop %v726
        %v759 = vrsqrt.pop %v727
        %v760 = vrsqrt.pop %v728
        %v761 = vrsqrt.pop %v729
        %v762 = vrsqrt.pop %v730
        %v763 = vrsqrt.pop %v731
        %v764 = vrsqrt.pop %v732
        %v765 = vrsqrt.pop %v733
        %v766 = vrsqrt.pop %v734
        %v767 = vrsqrt.pop %v735
        %v768 = vrsqrt.pop %v736
        %v769 = vrsqrt.pop %v737
        %v770 = vrsqrt.pop %v738
        %v771 = vrsqrt.pop %v739
        %v772 = vrsqrt.pop %v740
        %v773 = vrsqrt.pop %v741
        %v774 = vrsqrt.pop %v742
        %v775 = vrsqrt.pop %v743
        %v776 = vmul.f32 %v520, %v744
        %v777 = vmul.f32 %v521, %v745
        %v778 = vmul.f32 %v522, %v746
        %v779 = vmul.f32 %v523, %v747
        %v780 = vmul.f32 %v524, %v748
        %v781 = vmul.f32 %v525, %v749
        %v782 = vmul.f32 %v526, %v750
        %v783 = vmul.f32 %v527, %v751
        %v784 = vmul.f32 %v528, %v752
        %v785 = vmul.f32 %v529, %v753
        %v786 = vmul.f32 %v530, %v754
        %v787 = vmul.f32 %v531, %v755
        %v788 = vmul.f32 %v532, %v756
        %v789 = vmul.f32 %v533, %v757
        %v790 = vmul.f32 %v534, %v758
        %v791 = vmul.f32 %v535, %v759
        %v792 = vmul.f32 %v536, %v760
        %v793 = vmul.f32 %v537, %v761
        %v794 = vmul.f32 %v538, %v762
        %v795 = vmul.f32 %v539, %v763
        %v796 = vmul.f32 %v540, %v764
        %v797 = vmul.f32 %v541, %v765
        %v798 = vmul.f32 %v542, %v766
        %v799 = vmul.f32 %v543, %v767
        %v800 = vmul.f32 %v544, %v768
        %v801 = vmul.f32 %v545, %v769
        %v802 = vmul.f32 %v546, %v770
        %v803 = vmul.f32 %v547, %v771
        %v804 = vmul.f32 %v548, %v772
        %v805 = vmul.f32 %v549, %v773
        %v806 = vmul.f32 %v550, %v774
        %v807 = vmul.f32 %v551, %v775
        %v808 = vld [vmem:[%s1] sm:$0xff]
        %v809 = vld [vmem:[%s1 + $0x8] sm:$0xff]
        %v810 = vld [vmem:[%s1 + $0x10] sm:$0xff]
        %v811 = vld [vmem:[%s1 + $0x18] sm:$0xff]
        %v812 = vld [vmem:[%s2] sm:$0x1]
        %v814 = vlaneseq
        %v815 = vshrl.u32 %v814, 7
        %v816 = vsub.s32 0, %v815
        %v817 = vrot.slane %v812, %v816
        %v820 = vsel %vm390, %v776, 0
        %v823 = vsel %vm390, %v777, 0
        %v826 = vsel %vm390, %v778, 0
        %v829 = vsel %vm390, %v779, 0
        %v832 = vsel %vm390, %v780, 0
        %v835 = vsel %vm390, %v781, 0
        %v838 = vsel %vm390, %v782, 0
        %v841 = vsel %vm390, %v783, 0
        %v844 = vsel %vm390, %v784, 0
        %v847 = vsel %vm390, %v785, 0
        %v850 = vsel %vm390, %v786, 0
        %v853 = vsel %vm390, %v787, 0
        %v856 = vsel %vm390, %v788, 0
        %v859 = vsel %vm390, %v789, 0
        %v862 = vsel %vm390, %v790, 0
        %v865 = vsel %vm390, %v791, 0
        %v868 = vsel %vm390, %v792, 0
        %v871 = vsel %vm390, %v793, 0
        %v874 = vsel %vm390, %v794, 0
        %v877 = vsel %vm390, %v795, 0
        %v880 = vsel %vm390, %v796, 0
        %v883 = vsel %vm390, %v797, 0
        %v886 = vsel %vm390, %v798, 0
        %v889 = vsel %vm390, %v799, 0
        %v892 = vsel %vm390, %v800, 0
        %v895 = vsel %vm390, %v801, 0
        %v898 = vsel %vm390, %v802, 0
        %v901 = vsel %vm390, %v803, 0
        %v904 = vsel %vm390, %v804, 0
        %v907 = vsel %vm390, %v805, 0
        %v910 = vsel %vm390, %v806, 0
        %v913 = vsel %vm390, %v807, 0
        %915 = vmatprep.subr.mxu0 0.0
        %916 = vmatpush1.msra.mxu0 0.0
        %917 = vmatprep.subr.mxu0 0.0
        %918 = vmatpush1.msra.mxu0 0.0
        %919 = vmatprep.subr.mxu0 0.0
        %920 = vmatpush1.msra.mxu0 0.0
        %921 = vmatprep.subr.mxu0 0.0
        %922 = vmatpush1.msra.mxu0 0.0
        %923 = vmatprep.subr.mxu0 0.0
        %924 = vmatpush1.msra.mxu0 0.0
        %925 = vmatprep.subr.mxu0 0.0
        %926 = vmatpush1.msra.mxu0 0.0
        %927 = vmatprep.subr.mxu0 0.0
        %928 = vmatpush1.msra.mxu0 0.0
        %929 = vmatprep.subr.mxu0 0.0
        %930 = vmatpush1.msra.mxu0 0.0
        %931 = vmatprep.subr.mxu0 0.0
        %932 = vmatpush1.msra.mxu0 0.0
        %933 = vmatprep.subr.mxu0 0.0
        %934 = vmatpush1.msra.mxu0 0.0
        %935 = vmatprep.subr.mxu0 0.0
        %936 = vmatpush1.msra.mxu0 0.0
        %937 = vmatprep.subr.mxu0 0.0
        %938 = vmatpush1.msra.mxu0 0.0
        %939 = vmatprep.subr.mxu0 0.0
        %940 = vmatpush1.msra.mxu0 %v811
        %941 = vmatprep.subr.mxu0 0.0
        %942 = vmatpush1.msra.mxu0 %v810
        %943 = vmatprep.subr.mxu0 0.0
        %944 = vmatpush1.msra.mxu0 %v809
        %945 = vmatprep.subr.mxu0 0.0
        %946 = vmatpush1.msra.mxu0 %v808
        %947 = vmatprep.subr.mxu0 0.0
        %948 = vmatpush2.msra.mxu0 0.0
        %949 = vmatprep.subr.mxu0 0.0
        %950 = vmatpush2.msra.mxu0 0.0
        %951 = vmatprep.subr.mxu0 0.0
        %952 = vmatpush2.msra.mxu0 0.0
        %953 = vmatprep.subr.mxu0 0.0
        %954 = vmatpush2.msra.mxu0 0.0
        %955 = vmatprep.subr.mxu0 0.0
        %956 = vmatpush2.msra.mxu0 0.0
        %957 = vmatprep.subr.mxu0 0.0
        %958 = vmatpush2.msra.mxu0 0.0
        %959 = vmatprep.subr.mxu0 0.0
        %960 = vmatpush2.msra.mxu0 0.0
        %961 = vmatprep.subr.mxu0 0.0
        %962 = vmatpush2.msra.mxu0 0.0
        %963 = vmatprep.subr.mxu0 0.0
        %964 = vmatpush2.msra.mxu0 0.0
        %965 = vmatprep.subr.mxu0 0.0
        %966 = vmatpush2.msra.mxu0 0.0
        %967 = vmatprep.subr.mxu0 0.0
        %968 = vmatpush2.msra.mxu0 0.0
        %969 = vmatprep.subr.mxu0 0.0
        %970 = vmatpush2.msra.mxu0 0.0
        %971 = vmatprep.subr.mxu0 0.0
        %972 = vmatpush2.msra.mxu0 0.0
        %973 = vmatprep.subr.mxu0 0.0
        %974 = vmatpush2.msra.mxu0 0.0
        %975 = vmatprep.subr.mxu0 0.0
        %976 = vmatpush2.msra.mxu0 0.0
        %977 = vmatprep.subr.mxu0 0.0
        %978 = vmatpush2.msra.mxu0 0.0
        %979 = vmatprep.mubr.f32.mxu0 0.0
        %980 = vmatmul.mubr.f32.gmra.mxu0 %v820
        %v981 = vpop.f32.mrf.mxu0
        %v982 = vadd.f32 %v817, %v981
        %v983 = vpop.f32.mrf.mxu0
        %984 = vmatprep.mubr.f32.mxu0 0.0
        %985 = vmatmul.mubr.f32.gmra.mxu0 %v823
        %v986 = vpop.f32.mrf.mxu0
        %v987 = vadd.f32 %v817, %v986
        %v988 = vpop.f32.mrf.mxu0
        %989 = vmatprep.mubr.f32.mxu0 0.0
        %990 = vmatmul.mubr.f32.gmra.mxu0 %v826
        %v991 = vpop.f32.mrf.mxu0
        %v992 = vadd.f32 %v817, %v991
        %v993 = vpop.f32.mrf.mxu0
        %994 = vmatprep.mubr.f32.mxu0 0.0
        %995 = vmatmul.mubr.f32.gmra.mxu0 %v829
        %v996 = vpop.f32.mrf.mxu0
        %v997 = vadd.f32 %v817, %v996
        %v998 = vpop.f32.mrf.mxu0
        %999 = vmatprep.mubr.f32.mxu0 0.0
        %1000 = vmatmul.mubr.f32.gmra.mxu0 %v832
        %v1001 = vpop.f32.mrf.mxu0
        %v1002 = vadd.f32 %v817, %v1001
        %v1003 = vpop.f32.mrf.mxu0
        %1004 = vmatprep.mubr.f32.mxu0 0.0
        %1005 = vmatmul.mubr.f32.gmra.mxu0 %v835
        %v1006 = vpop.f32.mrf.mxu0
        %v1007 = vadd.f32 %v817, %v1006
        %v1008 = vpop.f32.mrf.mxu0
        %1009 = vmatprep.mubr.f32.mxu0 0.0
        %1010 = vmatmul.mubr.f32.gmra.mxu0 %v838
        %v1011 = vpop.f32.mrf.mxu0
        %v1012 = vadd.f32 %v817, %v1011
        %v1013 = vpop.f32.mrf.mxu0
        %1014 = vmatprep.mubr.f32.mxu0 0.0
        %1015 = vmatmul.mubr.f32.gmra.mxu0 %v841
        %v1016 = vpop.f32.mrf.mxu0
        %v1017 = vadd.f32 %v817, %v1016
        %v1018 = vpop.f32.mrf.mxu0
        %1019 = vmatprep.mubr.f32.mxu0 0.0
        %1020 = vmatmul.mubr.f32.gmra.mxu0 %v844
        %v1021 = vpop.f32.mrf.mxu0
        %v1022 = vadd.f32 %v817, %v1021
        %v1023 = vpop.f32.mrf.mxu0
        %1024 = vmatprep.mubr.f32.mxu0 0.0
        %1025 = vmatmul.mubr.f32.gmra.mxu0 %v847
        %v1026 = vpop.f32.mrf.mxu0
        %v1027 = vadd.f32 %v817, %v1026
        %v1028 = vpop.f32.mrf.mxu0
        %1029 = vmatprep.mubr.f32.mxu0 0.0
        %1030 = vmatmul.mubr.f32.gmra.mxu0 %v850
        %v1031 = vpop.f32.mrf.mxu0
        %v1032 = vadd.f32 %v817, %v1031
        %v1033 = vpop.f32.mrf.mxu0
        %1034 = vmatprep.mubr.f32.mxu0 0.0
        %1035 = vmatmul.mubr.f32.gmra.mxu0 %v853
        %v1036 = vpop.f32.mrf.mxu0
        %v1037 = vadd.f32 %v817, %v1036
        %v1038 = vpop.f32.mrf.mxu0
        %1039 = vmatprep.mubr.f32.mxu0 0.0
        %1040 = vmatmul.mubr.f32.gmra.mxu0 %v856
        %v1041 = vpop.f32.mrf.mxu0
        %v1042 = vadd.f32 %v817, %v1041
        %v1043 = vpop.f32.mrf.mxu0
        %1044 = vmatprep.mubr.f32.mxu0 0.0
        %1045 = vmatmul.mubr.f32.gmra.mxu0 %v859
        %v1046 = vpop.f32.mrf.mxu0
        %v1047 = vadd.f32 %v817, %v1046
        %v1048 = vpop.f32.mrf.mxu0
        %1049 = vmatprep.mubr.f32.mxu0 0.0
        %1050 = vmatmul.mubr.f32.gmra.mxu0 %v862
        %v1051 = vpop.f32.mrf.mxu0
        %v1052 = vadd.f32 %v817, %v1051
        %v1053 = vpop.f32.mrf.mxu0
        %1054 = vmatprep.mubr.f32.mxu0 0.0
        %1055 = vmatmul.mubr.f32.gmra.mxu0 %v865
        %v1056 = vpop.f32.mrf.mxu0
        %v1057 = vadd.f32 %v817, %v1056
        %v1058 = vpop.f32.mrf.mxu0
        %1059 = vmatprep.mubr.f32.mxu0 0.0
        %1060 = vmatmul.mubr.f32.gmra.mxu0 %v868
        %v1061 = vpop.f32.mrf.mxu0
        %v1062 = vadd.f32 %v817, %v1061
        %v1063 = vpop.f32.mrf.mxu0
        %1064 = vmatprep.mubr.f32.mxu0 0.0
        %1065 = vmatmul.mubr.f32.gmra.mxu0 %v871
        %v1066 = vpop.f32.mrf.mxu0
        %v1067 = vadd.f32 %v817, %v1066
        %v1068 = vpop.f32.mrf.mxu0
        %1069 = vmatprep.mubr.f32.mxu0 0.0
        %1070 = vmatmul.mubr.f32.gmra.mxu0 %v874
        %v1071 = vpop.f32.mrf.mxu0
        %v1072 = vadd.f32 %v817, %v1071
        %v1073 = vpop.f32.mrf.mxu0
        %1074 = vmatprep.mubr.f32.mxu0 0.0
        %1075 = vmatmul.mubr.f32.gmra.mxu0 %v877
        %v1076 = vpop.f32.mrf.mxu0
        %v1077 = vadd.f32 %v817, %v1076
        %v1078 = vpop.f32.mrf.mxu0
        %1079 = vmatprep.mubr.f32.mxu0 0.0
        %1080 = vmatmul.mubr.f32.gmra.mxu0 %v880
        %v1081 = vpop.f32.mrf.mxu0
        %v1082 = vadd.f32 %v817, %v1081
        %v1083 = vpop.f32.mrf.mxu0
        %1084 = vmatprep.mubr.f32.mxu0 0.0
        %1085 = vmatmul.mubr.f32.gmra.mxu0 %v883
        %v1086 = vpop.f32.mrf.mxu0
        %v1087 = vadd.f32 %v817, %v1086
        %v1088 = vpop.f32.mrf.mxu0
        %1089 = vmatprep.mubr.f32.mxu0 0.0
        %1090 = vmatmul.mubr.f32.gmra.mxu0 %v886
        %v1091 = vpop.f32.mrf.mxu0
        %v1092 = vadd.f32 %v817, %v1091
        %v1093 = vpop.f32.mrf.mxu0
        %1094 = vmatprep.mubr.f32.mxu0 0.0
        %1095 = vmatmul.mubr.f32.gmra.mxu0 %v889
        %v1096 = vpop.f32.mrf.mxu0
        %v1097 = vadd.f32 %v817, %v1096
        %v1098 = vpop.f32.mrf.mxu0
        %1099 = vmatprep.mubr.f32.mxu0 0.0
        %1100 = vmatmul.mubr.f32.gmra.mxu0 %v892
        %v1101 = vpop.f32.mrf.mxu0
        %v1102 = vadd.f32 %v817, %v1101
        %v1103 = vpop.f32.mrf.mxu0
        %1104 = vmatprep.mubr.f32.mxu0 0.0
        %1105 = vmatmul.mubr.f32.gmra.mxu0 %v895
        %v1106 = vpop.f32.mrf.mxu0
        %v1107 = vadd.f32 %v817, %v1106
        %v1108 = vpop.f32.mrf.mxu0
        %1109 = vmatprep.mubr.f32.mxu0 0.0
        %1110 = vmatmul.mubr.f32.gmra.mxu0 %v898
        %v1111 = vpop.f32.mrf.mxu0
        %v1112 = vadd.f32 %v817, %v1111
        %v1113 = vpop.f32.mrf.mxu0
        %1114 = vmatprep.mubr.f32.mxu0 0.0
        %1115 = vmatmul.mubr.f32.gmra.mxu0 %v901
        %v1116 = vpop.f32.mrf.mxu0
        %v1117 = vadd.f32 %v817, %v1116
        %v1118 = vpop.f32.mrf.mxu0
        %1119 = vmatprep.mubr.f32.mxu0 0.0
        %1120 = vmatmul.mubr.f32.gmra.mxu0 %v904
        %v1121 = vpop.f32.mrf.mxu0
        %v1122 = vadd.f32 %v817, %v1121
        %v1123 = vpop.f32.mrf.mxu0
        %1124 = vmatprep.mubr.f32.mxu0 0.0
        %1125 = vmatmul.mubr.f32.gmra.mxu0 %v907
        %v1126 = vpop.f32.mrf.mxu0
        %v1127 = vadd.f32 %v817, %v1126
        %v1128 = vpop.f32.mrf.mxu0
        %1129 = vmatprep.mubr.f32.mxu0 0.0
        %1130 = vmatmul.mubr.f32.gmra.mxu0 %v910
        %v1131 = vpop.f32.mrf.mxu0
        %v1132 = vadd.f32 %v817, %v1131
        %v1133 = vpop.f32.mrf.mxu0
        %1134 = vmatprep.mubr.f32.mxu0 0.0
        %1135 = vmatmul.mubr.f32.gmra.mxu0 %v913
        %v1136 = vpop.f32.mrf.mxu0
        %v1137 = vadd.f32 %v817, %v1136
        %v1138 = vpop.f32.mrf.mxu0
        %1139 = vdwg.mxu0
        %v1140 = vld [vmem:[%s3] sm:$0xf]
        %v1141 = vlaneseq
        %v1142 = vshrl.u32 %v1141, 7
        %v1143 = vadd.s32 %v1142, 8
        %v1144 = vadd.s32 %v1142, 16
        %v1145 = vadd.s32 %v1142, 24
        %v1146 = vadd.s32 %v1142, 32
        %v1147 = vadd.s32 %v1142, 40
        %v1148 = vadd.s32 %v1142, 48
        %v1149 = vadd.s32 %v1142, 56
        %v1150 = vadd.s32 %v1142, 64
        %v1151 = vadd.s32 %v1142, 72
        %v1152 = vadd.s32 %v1142, 80
        %v1153 = vadd.s32 %v1142, 88
        %v1154 = vadd.s32 %v1142, 96
        %v1155 = vadd.s32 %v1142, 104
        %v1156 = vadd.s32 %v1142, 112
        %v1157 = vadd.s32 %v1142, 120
        %v1158 = vadd.s32 %v1142, 128
        %v1159 = vadd.s32 %v1142, 136
        %v1160 = vadd.s32 %v1142, 144
        %v1161 = vadd.s32 %v1142, 152
        %v1162 = vadd.s32 %v1142, 160
        %v1163 = vadd.s32 %v1142, 168
        %v1164 = vadd.s32 %v1142, 176
        %v1165 = vadd.s32 %v1142, 184
        %v1166 = vadd.s32 %v1142, 192
        %v1167 = vadd.s32 %v1142, 200
        %v1168 = vadd.s32 %v1142, 208
        %v1169 = vadd.s32 %v1142, 216
        %v1170 = vadd.s32 %v1142, 224
        %v1171 = vadd.s32 %v1142, 232
        %v1172 = vadd.s32 %v1142, 240
        %v1173 = vadd.s32 %v1142, 248
        %v1174 = vld [vmem:[%s4] sm:$0x1]
        %v1175 = vlaneseq
        %v1176 = vshrl.u32 %v1175, 7
        %v1177 = vsub.s32 3, %v1176
        %v1178 = vrot.slane %v1140, %v1177
        %v1179 = vmul.f32 %v982, %v1178
        %v1180 = vmul.f32 %v987, %v1178
        %v1181 = vmul.f32 %v992, %v1178
        %v1182 = vmul.f32 %v997, %v1178
        %v1183 = vmul.f32 %v1002, %v1178
        %v1184 = vmul.f32 %v1007, %v1178
        %v1185 = vmul.f32 %v1012, %v1178
        %v1186 = vmul.f32 %v1017, %v1178
        %v1187 = vmul.f32 %v1022, %v1178
        %v1188 = vmul.f32 %v1027, %v1178
        %v1189 = vmul.f32 %v1032, %v1178
        %v1190 = vmul.f32 %v1037, %v1178
        %v1191 = vmul.f32 %v1042, %v1178
        %v1192 = vmul.f32 %v1047, %v1178
        %v1193 = vmul.f32 %v1052, %v1178
        %v1194 = vmul.f32 %v1057, %v1178
        %v1195 = vmul.f32 %v1062, %v1178
        %v1196 = vmul.f32 %v1067, %v1178
        %v1197 = vmul.f32 %v1072, %v1178
        %v1198 = vmul.f32 %v1077, %v1178
        %v1199 = vmul.f32 %v1082, %v1178
        %v1200 = vmul.f32 %v1087, %v1178
        %v1201 = vmul.f32 %v1092, %v1178
        %v1202 = vmul.f32 %v1097, %v1178
        %v1203 = vmul.f32 %v1102, %v1178
        %v1204 = vmul.f32 %v1107, %v1178
        %v1205 = vmul.f32 %v1112, %v1178
        %v1206 = vmul.f32 %v1117, %v1178
        %v1207 = vmul.f32 %v1122, %v1178
        %v1208 = vmul.f32 %v1127, %v1178
        %v1209 = vmul.f32 %v1132, %v1178
        %v1210 = vmul.f32 %v1137, %v1178
        %v1212 = vlaneseq
        %v1213 = vshrl.u32 %v1212, 7
        %v1214 = vsub.s32 0, %v1213
        %v1215 = vrot.slane %v1174, %v1214
        %v1217 = vadd.f32 %v1215, %v1179
        %v1218 = vadd.f32 %v1215, %v1180
        %v1219 = vadd.f32 %v1215, %v1181
        %v1220 = vadd.f32 %v1215, %v1182
        %v1221 = vadd.f32 %v1215, %v1183
        %v1222 = vadd.f32 %v1215, %v1184
        %v1223 = vadd.f32 %v1215, %v1185
        %v1224 = vadd.f32 %v1215, %v1186
        %v1225 = vadd.f32 %v1215, %v1187
        %v1226 = vadd.f32 %v1215, %v1188
        %v1227 = vadd.f32 %v1215, %v1189
        %v1228 = vadd.f32 %v1215, %v1190
        %v1229 = vadd.f32 %v1215, %v1191
        %v1230 = vadd.f32 %v1215, %v1192
        %v1231 = vadd.f32 %v1215, %v1193
        %v1232 = vadd.f32 %v1215, %v1194
        %v1233 = vadd.f32 %v1215, %v1195
        %v1234 = vadd.f32 %v1215, %v1196
        %v1235 = vadd.f32 %v1215, %v1197
        %v1236 = vadd.f32 %v1215, %v1198
        %v1237 = vadd.f32 %v1215, %v1199
        %v1238 = vadd.f32 %v1215, %v1200
        %v1239 = vadd.f32 %v1215, %v1201
        %v1240 = vadd.f32 %v1215, %v1202
        %v1241 = vadd.f32 %v1215, %v1203
        %v1242 = vadd.f32 %v1215, %v1204
        %v1243 = vadd.f32 %v1215, %v1205
        %v1244 = vadd.f32 %v1215, %v1206
        %v1245 = vadd.f32 %v1215, %v1207
        %v1246 = vadd.f32 %v1215, %v1208
        %v1247 = vadd.f32 %v1215, %v1209
        %v1248 = vadd.f32 %v1215, %v1210
        %v1249 = vrot.slane %v982, 5
        %v1250 = vrot.slane %v987, 5
        %v1251 = vrot.slane %v992, 5
        %v1252 = vrot.slane %v997, 5
        %v1253 = vrot.slane %v1002, 5
        %v1254 = vrot.slane %v1007, 5
        %v1255 = vrot.slane %v1012, 5
        %v1256 = vrot.slane %v1017, 5
        %v1257 = vrot.slane %v1022, 5
        %v1258 = vrot.slane %v1027, 5
        %v1259 = vrot.slane %v1032, 5
        %v1260 = vrot.slane %v1037, 5
        %v1261 = vrot.slane %v1042, 5
        %v1262 = vrot.slane %v1047, 5
        %v1263 = vrot.slane %v1052, 5
        %v1264 = vrot.slane %v1057, 5
        %v1265 = vrot.slane %v1062, 5
        %v1266 = vrot.slane %v1067, 5
        %v1267 = vrot.slane %v1072, 5
        %v1268 = vrot.slane %v1077, 5
        %v1269 = vrot.slane %v1082, 5
        %v1270 = vrot.slane %v1087, 5
        %v1271 = vrot.slane %v1092, 5
        %v1272 = vrot.slane %v1097, 5
        %v1273 = vrot.slane %v1102, 5
        %v1274 = vrot.slane %v1107, 5
        %v1275 = vrot.slane %v1112, 5
        %v1276 = vrot.slane %v1117, 5
        %v1277 = vrot.slane %v1122, 5
        %v1278 = vrot.slane %v1127, 5
        %v1279 = vrot.slane %v1132, 5
        %v1280 = vrot.slane %v1137, 5
        %vm1281 = vcmp.lt.s32.totalorder %v1142, 3
        %v1282 = vsel %vm1281, %v1279, %v1280
        %v1283 = vsel %vm1281, %v1278, %v1279
        %v1284 = vsel %vm1281, %v1277, %v1278
        %v1285 = vsel %vm1281, %v1276, %v1277
        %v1286 = vsel %vm1281, %v1275, %v1276
        %v1287 = vsel %vm1281, %v1274, %v1275
        %v1288 = vsel %vm1281, %v1273, %v1274
        %v1289 = vsel %vm1281, %v1272, %v1273
        %v1290 = vsel %vm1281, %v1271, %v1272
        %v1291 = vsel %vm1281, %v1270, %v1271
        %v1292 = vsel %vm1281, %v1269, %v1270
        %v1293 = vsel %vm1281, %v1268, %v1269
        %v1294 = vsel %vm1281, %v1267, %v1268
        %v1295 = vsel %vm1281, %v1266, %v1267
        %v1296 = vsel %vm1281, %v1265, %v1266
        %v1297 = vsel %vm1281, %v1264, %v1265
        %v1298 = vsel %vm1281, %v1263, %v1264
        %v1299 = vsel %vm1281, %v1262, %v1263
        %v1300 = vsel %vm1281, %v1261, %v1262
        %v1301 = vsel %vm1281, %v1260, %v1261
        %v1302 = vsel %vm1281, %v1259, %v1260
        %v1303 = vsel %vm1281, %v1258, %v1259
        %v1304 = vsel %vm1281, %v1257, %v1258
        %v1305 = vsel %vm1281, %v1256, %v1257
        %v1306 = vsel %vm1281, %v1255, %v1256
        %v1307 = vsel %vm1281, %v1254, %v1255
        %v1308 = vsel %vm1281, %v1253, %v1254
        %v1309 = vsel %vm1281, %v1252, %v1253
        %v1310 = vsel %vm1281, %v1251, %v1252
        %v1311 = vsel %vm1281, %v1250, %v1251
        %v1312 = vsel %vm1281, %v1249, %v1250
        %v1313 = vsel %vm1281, %v1280, %v1249
        %vm1314 = vcmp.ge.s32.totalorder %v1142, 3
        %vm1315 = vcmp.ge.s32.totalorder %v1143, 3
        %vm1316 = vcmp.ge.s32.totalorder %v1144, 3
        %vm1317 = vcmp.ge.s32.totalorder %v1145, 3
        %vm1318 = vcmp.ge.s32.totalorder %v1146, 3
        %vm1319 = vcmp.ge.s32.totalorder %v1147, 3
        %vm1320 = vcmp.ge.s32.totalorder %v1148, 3
        %vm1321 = vcmp.ge.s32.totalorder %v1149, 3
        %vm1322 = vcmp.ge.s32.totalorder %v1150, 3
        %vm1323 = vcmp.ge.s32.totalorder %v1151, 3
        %vm1324 = vcmp.ge.s32.totalorder %v1152, 3
        %vm1325 = vcmp.ge.s32.totalorder %v1153, 3
        %vm1326 = vcmp.ge.s32.totalorder %v1154, 3
        %vm1327 = vcmp.ge.s32.totalorder %v1155, 3
        %vm1328 = vcmp.ge.s32.totalorder %v1156, 3
        %vm1329 = vcmp.ge.s32.totalorder %v1157, 3
        %vm1330 = vcmp.ge.s32.totalorder %v1158, 3
        %vm1331 = vcmp.ge.s32.totalorder %v1159, 3
        %vm1332 = vcmp.ge.s32.totalorder %v1160, 3
        %vm1333 = vcmp.ge.s32.totalorder %v1161, 3
        %vm1334 = vcmp.ge.s32.totalorder %v1162, 3
        %vm1335 = vcmp.ge.s32.totalorder %v1163, 3
        %vm1336 = vcmp.ge.s32.totalorder %v1164, 3
        %vm1337 = vcmp.ge.s32.totalorder %v1165, 3
        %vm1338 = vcmp.ge.s32.totalorder %v1166, 3
        %vm1339 = vcmp.ge.s32.totalorder %v1167, 3
        %vm1340 = vcmp.ge.s32.totalorder %v1168, 3
        %vm1341 = vcmp.ge.s32.totalorder %v1169, 3
        %vm1342 = vcmp.ge.s32.totalorder %v1170, 3
        %vm1343 = vcmp.ge.s32.totalorder %v1171, 3
        %vm1344 = vcmp.ge.s32.totalorder %v1172, 3
        %vm1345 = vcmp.ge.s32.totalorder %v1173, 3
        %v1346 = vsel %vm1314, %v1313, 0.0
        %v1347 = vsel %vm1315, %v1312, 0.0
        %v1348 = vsel %vm1316, %v1311, 0.0
        %v1349 = vsel %vm1317, %v1310, 0.0
        %v1350 = vsel %vm1318, %v1309, 0.0
        %v1351 = vsel %vm1319, %v1308, 0.0
        %v1352 = vsel %vm1320, %v1307, 0.0
        %v1353 = vsel %vm1321, %v1306, 0.0
        %v1354 = vsel %vm1322, %v1305, 0.0
        %v1355 = vsel %vm1323, %v1304, 0.0
        %v1356 = vsel %vm1324, %v1303, 0.0
        %v1357 = vsel %vm1325, %v1302, 0.0
        %v1358 = vsel %vm1326, %v1301, 0.0
        %v1359 = vsel %vm1327, %v1300, 0.0
        %v1360 = vsel %vm1328, %v1299, 0.0
        %v1361 = vsel %vm1329, %v1298, 0.0
        %v1362 = vsel %vm1330, %v1297, 0.0
        %v1363 = vsel %vm1331, %v1296, 0.0
        %v1364 = vsel %vm1332, %v1295, 0.0
        %v1365 = vsel %vm1333, %v1294, 0.0
        %v1366 = vsel %vm1334, %v1293, 0.0
        %v1367 = vsel %vm1335, %v1292, 0.0
        %v1368 = vsel %vm1336, %v1291, 0.0
        %v1369 = vsel %vm1337, %v1290, 0.0
        %v1370 = vsel %vm1338, %v1289, 0.0
        %v1371 = vsel %vm1339, %v1288, 0.0
        %v1372 = vsel %vm1340, %v1287, 0.0
        %v1373 = vsel %vm1341, %v1286, 0.0
        %v1374 = vsel %vm1342, %v1285, 0.0
        %v1375 = vsel %vm1343, %v1284, 0.0
        %v1376 = vsel %vm1344, %v1283, 0.0
        %v1377 = vsel %vm1345, %v1282, 0.0
        %v1378 = vlaneseq
        %v1379 = vshrl.u32 %v1378, 7
        %v1380 = vsub.s32 0, %v1379
        %v1381 = vrot.slane %v1140, %v1380
        %v1382 = vmul.f32 %v1346, %v1381
        %v1383 = vmul.f32 %v1347, %v1381
        %v1384 = vmul.f32 %v1348, %v1381
        %v1385 = vmul.f32 %v1349, %v1381
        %v1386 = vmul.f32 %v1350, %v1381
        %v1387 = vmul.f32 %v1351, %v1381
        %v1388 = vmul.f32 %v1352, %v1381
        %v1389 = vmul.f32 %v1353, %v1381
        %v1390 = vmul.f32 %v1354, %v1381
        %v1391 = vmul.f32 %v1355, %v1381
        %v1392 = vmul.f32 %v1356, %v1381
        %v1393 = vmul.f32 %v1357, %v1381
        %v1394 = vmul.f32 %v1358, %v1381
        %v1395 = vmul.f32 %v1359, %v1381
        %v1396 = vmul.f32 %v1360, %v1381
        %v1397 = vmul.f32 %v1361, %v1381
        %v1398 = vmul.f32 %v1362, %v1381
        %v1399 = vmul.f32 %v1363, %v1381
        %v1400 = vmul.f32 %v1364, %v1381
        %v1401 = vmul.f32 %v1365, %v1381
        %v1402 = vmul.f32 %v1366, %v1381
        %v1403 = vmul.f32 %v1367, %v1381
        %v1404 = vmul.f32 %v1368, %v1381
        %v1405 = vmul.f32 %v1369, %v1381
        %v1406 = vmul.f32 %v1370, %v1381
        %v1407 = vmul.f32 %v1371, %v1381
        %v1408 = vmul.f32 %v1372, %v1381
        %v1409 = vmul.f32 %v1373, %v1381
        %v1410 = vmul.f32 %v1374, %v1381
        %v1411 = vmul.f32 %v1375, %v1381
        %v1412 = vmul.f32 %v1376, %v1381
        %v1413 = vmul.f32 %v1377, %v1381
        %v1414 = vadd.f32 %v1217, %v1382
        %v1415 = vadd.f32 %v1218, %v1383
        %v1416 = vadd.f32 %v1219, %v1384
        %v1417 = vadd.f32 %v1220, %v1385
        %v1418 = vadd.f32 %v1221, %v1386
        %v1419 = vadd.f32 %v1222, %v1387
        %v1420 = vadd.f32 %v1223, %v1388
        %v1421 = vadd.f32 %v1224, %v1389
        %v1422 = vadd.f32 %v1225, %v1390
        %v1423 = vadd.f32 %v1226, %v1391
        %v1424 = vadd.f32 %v1227, %v1392
        %v1425 = vadd.f32 %v1228, %v1393
        %v1426 = vadd.f32 %v1229, %v1394
        %v1427 = vadd.f32 %v1230, %v1395
        %v1428 = vadd.f32 %v1231, %v1396
        %v1429 = vadd.f32 %v1232, %v1397
        %v1430 = vadd.f32 %v1233, %v1398
        %v1431 = vadd.f32 %v1234, %v1399
        %v1432 = vadd.f32 %v1235, %v1400
        %v1433 = vadd.f32 %v1236, %v1401
        %v1434 = vadd.f32 %v1237, %v1402
        %v1435 = vadd.f32 %v1238, %v1403
        %v1436 = vadd.f32 %v1239, %v1404
        %v1437 = vadd.f32 %v1240, %v1405
        %v1438 = vadd.f32 %v1241, %v1406
        %v1439 = vadd.f32 %v1242, %v1407
        %v1440 = vadd.f32 %v1243, %v1408
        %v1441 = vadd.f32 %v1244, %v1409
        %v1442 = vadd.f32 %v1245, %v1410
        %v1443 = vadd.f32 %v1246, %v1411
        %v1444 = vadd.f32 %v1247, %v1412
        %v1445 = vadd.f32 %v1248, %v1413
        %v1446 = vrot.slane %v982, 6
        %v1447 = vrot.slane %v987, 6
        %v1448 = vrot.slane %v992, 6
        %v1449 = vrot.slane %v997, 6
        %v1450 = vrot.slane %v1002, 6
        %v1451 = vrot.slane %v1007, 6
        %v1452 = vrot.slane %v1012, 6
        %v1453 = vrot.slane %v1017, 6
        %v1454 = vrot.slane %v1022, 6
        %v1455 = vrot.slane %v1027, 6
        %v1456 = vrot.slane %v1032, 6
        %v1457 = vrot.slane %v1037, 6
        %v1458 = vrot.slane %v1042, 6
        %v1459 = vrot.slane %v1047, 6
        %v1460 = vrot.slane %v1052, 6
        %v1461 = vrot.slane %v1057, 6
        %v1462 = vrot.slane %v1062, 6
        %v1463 = vrot.slane %v1067, 6
        %v1464 = vrot.slane %v1072, 6
        %v1465 = vrot.slane %v1077, 6
        %v1466 = vrot.slane %v1082, 6
        %v1467 = vrot.slane %v1087, 6
        %v1468 = vrot.slane %v1092, 6
        %v1469 = vrot.slane %v1097, 6
        %v1470 = vrot.slane %v1102, 6
        %v1471 = vrot.slane %v1107, 6
        %v1472 = vrot.slane %v1112, 6
        %v1473 = vrot.slane %v1117, 6
        %v1474 = vrot.slane %v1122, 6
        %v1475 = vrot.slane %v1127, 6
        %v1476 = vrot.slane %v1132, 6
        %v1477 = vrot.slane %v1137, 6
        %vm1478 = vcmp.lt.s32.totalorder %v1142, 2
        %v1479 = vsel %vm1478, %v1476, %v1477
        %v1480 = vsel %vm1478, %v1475, %v1476
        %v1481 = vsel %vm1478, %v1474, %v1475
        %v1482 = vsel %vm1478, %v1473, %v1474
        %v1483 = vsel %vm1478, %v1472, %v1473
        %v1484 = vsel %vm1478, %v1471, %v1472
        %v1485 = vsel %vm1478, %v1470, %v1471
        %v1486 = vsel %vm1478, %v1469, %v1470
        %v1487 = vsel %vm1478, %v1468, %v1469
        %v1488 = vsel %vm1478, %v1467, %v1468
        %v1489 = vsel %vm1478, %v1466, %v1467
        %v1490 = vsel %vm1478, %v1465, %v1466
        %v1491 = vsel %vm1478, %v1464, %v1465
        %v1492 = vsel %vm1478, %v1463, %v1464
        %v1493 = vsel %vm1478, %v1462, %v1463
        %v1494 = vsel %vm1478, %v1461, %v1462
        %v1495 = vsel %vm1478, %v1460, %v1461
        %v1496 = vsel %vm1478, %v1459, %v1460
        %v1497 = vsel %vm1478, %v1458, %v1459
        %v1498 = vsel %vm1478, %v1457, %v1458
        %v1499 = vsel %vm1478, %v1456, %v1457
        %v1500 = vsel %vm1478, %v1455, %v1456
        %v1501 = vsel %vm1478, %v1454, %v1455
        %v1502 = vsel %vm1478, %v1453, %v1454
        %v1503 = vsel %vm1478, %v1452, %v1453
        %v1504 = vsel %vm1478, %v1451, %v1452
        %v1505 = vsel %vm1478, %v1450, %v1451
        %v1506 = vsel %vm1478, %v1449, %v1450
        %v1507 = vsel %vm1478, %v1448, %v1449
        %v1508 = vsel %vm1478, %v1447, %v1448
        %v1509 = vsel %vm1478, %v1446, %v1447
        %v1510 = vsel %vm1478, %v1477, %v1446
        %vm1511 = vcmp.ge.s32.totalorder %v1142, 2
        %vm1512 = vcmp.ge.s32.totalorder %v1143, 2
        %vm1513 = vcmp.ge.s32.totalorder %v1144, 2
        %vm1514 = vcmp.ge.s32.totalorder %v1145, 2
        %vm1515 = vcmp.ge.s32.totalorder %v1146, 2
        %vm1516 = vcmp.ge.s32.totalorder %v1147, 2
        %vm1517 = vcmp.ge.s32.totalorder %v1148, 2
        %vm1518 = vcmp.ge.s32.totalorder %v1149, 2
        %vm1519 = vcmp.ge.s32.totalorder %v1150, 2
        %vm1520 = vcmp.ge.s32.totalorder %v1151, 2
        %vm1521 = vcmp.ge.s32.totalorder %v1152, 2
        %vm1522 = vcmp.ge.s32.totalorder %v1153, 2
        %vm1523 = vcmp.ge.s32.totalorder %v1154, 2
        %vm1524 = vcmp.ge.s32.totalorder %v1155, 2
        %vm1525 = vcmp.ge.s32.totalorder %v1156, 2
        %vm1526 = vcmp.ge.s32.totalorder %v1157, 2
        %vm1527 = vcmp.ge.s32.totalorder %v1158, 2
        %vm1528 = vcmp.ge.s32.totalorder %v1159, 2
        %vm1529 = vcmp.ge.s32.totalorder %v1160, 2
        %vm1530 = vcmp.ge.s32.totalorder %v1161, 2
        %vm1531 = vcmp.ge.s32.totalorder %v1162, 2
        %vm1532 = vcmp.ge.s32.totalorder %v1163, 2
        %vm1533 = vcmp.ge.s32.totalorder %v1164, 2
        %vm1534 = vcmp.ge.s32.totalorder %v1165, 2
        %vm1535 = vcmp.ge.s32.totalorder %v1166, 2
        %vm1536 = vcmp.ge.s32.totalorder %v1167, 2
        %vm1537 = vcmp.ge.s32.totalorder %v1168, 2
        %vm1538 = vcmp.ge.s32.totalorder %v1169, 2
        %vm1539 = vcmp.ge.s32.totalorder %v1170, 2
        %vm1540 = vcmp.ge.s32.totalorder %v1171, 2
        %vm1541 = vcmp.ge.s32.totalorder %v1172, 2
        %vm1542 = vcmp.ge.s32.totalorder %v1173, 2
        %v1543 = vsel %vm1511, %v1510, 0.0
        %v1544 = vsel %vm1512, %v1509, 0.0
        %v1545 = vsel %vm1513, %v1508, 0.0
        %v1546 = vsel %vm1514, %v1507, 0.0
        %v1547 = vsel %vm1515, %v1506, 0.0
        %v1548 = vsel %vm1516, %v1505, 0.0
        %v1549 = vsel %vm1517, %v1504, 0.0
        %v1550 = vsel %vm1518, %v1503, 0.0
        %v1551 = vsel %vm1519, %v1502, 0.0
        %v1552 = vsel %vm1520, %v1501, 0.0
        %v1553 = vsel %vm1521, %v1500, 0.0
        %v1554 = vsel %vm1522, %v1499, 0.0
        %v1555 = vsel %vm1523, %v1498, 0.0
        %v1556 = vsel %vm1524, %v1497, 0.0
        %v1557 = vsel %vm1525, %v1496, 0.0
        %v1558 = vsel %vm1526, %v1495, 0.0
        %v1559 = vsel %vm1527, %v1494, 0.0
        %v1560 = vsel %vm1528, %v1493, 0.0
        %v1561 = vsel %vm1529, %v1492, 0.0
        %v1562 = vsel %vm1530, %v1491, 0.0
        %v1563 = vsel %vm1531, %v1490, 0.0
        %v1564 = vsel %vm1532, %v1489, 0.0
        %v1565 = vsel %vm1533, %v1488, 0.0
        %v1566 = vsel %vm1534, %v1487, 0.0
        %v1567 = vsel %vm1535, %v1486, 0.0
        %v1568 = vsel %vm1536, %v1485, 0.0
        %v1569 = vsel %vm1537, %v1484, 0.0
        %v1570 = vsel %vm1538, %v1483, 0.0
        %v1571 = vsel %vm1539, %v1482, 0.0
        %v1572 = vsel %vm1540, %v1481, 0.0
        %v1573 = vsel %vm1541, %v1480, 0.0
        %v1574 = vsel %vm1542, %v1479, 0.0
        %v1575 = vlaneseq
        %v1576 = vshrl.u32 %v1575, 7
        %v1577 = vsub.s32 1, %v1576
        %v1578 = vrot.slane %v1140, %v1577
        %v1579 = vmul.f32 %v1543, %v1578
        %v1580 = vmul.f32 %v1544, %v1578
        %v1581 = vmul.f32 %v1545, %v1578
        %v1582 = vmul.f32 %v1546, %v1578
        %v1583 = vmul.f32 %v1547, %v1578
        %v1584 = vmul.f32 %v1548, %v1578
        %v1585 = vmul.f32 %v1549, %v1578
        %v1586 = vmul.f32 %v1550, %v1578
        %v1587 = vmul.f32 %v1551, %v1578
        %v1588 = vmul.f32 %v1552, %v1578
        %v1589 = vmul.f32 %v1553, %v1578
        %v1590 = vmul.f32 %v1554, %v1578
        %v1591 = vmul.f32 %v1555, %v1578
        %v1592 = vmul.f32 %v1556, %v1578
        %v1593 = vmul.f32 %v1557, %v1578
        %v1594 = vmul.f32 %v1558, %v1578
        %v1595 = vmul.f32 %v1559, %v1578
        %v1596 = vmul.f32 %v1560, %v1578
        %v1597 = vmul.f32 %v1561, %v1578
        %v1598 = vmul.f32 %v1562, %v1578
        %v1599 = vmul.f32 %v1563, %v1578
        %v1600 = vmul.f32 %v1564, %v1578
        %v1601 = vmul.f32 %v1565, %v1578
        %v1602 = vmul.f32 %v1566, %v1578
        %v1603 = vmul.f32 %v1567, %v1578
        %v1604 = vmul.f32 %v1568, %v1578
        %v1605 = vmul.f32 %v1569, %v1578
        %v1606 = vmul.f32 %v1570, %v1578
        %v1607 = vmul.f32 %v1571, %v1578
        %v1608 = vmul.f32 %v1572, %v1578
        %v1609 = vmul.f32 %v1573, %v1578
        %v1610 = vmul.f32 %v1574, %v1578
        %v1611 = vadd.f32 %v1414, %v1579
        %v1612 = vadd.f32 %v1415, %v1580
        %v1613 = vadd.f32 %v1416, %v1581
        %v1614 = vadd.f32 %v1417, %v1582
        %v1615 = vadd.f32 %v1418, %v1583
        %v1616 = vadd.f32 %v1419, %v1584
        %v1617 = vadd.f32 %v1420, %v1585
        %v1618 = vadd.f32 %v1421, %v1586
        %v1619 = vadd.f32 %v1422, %v1587
        %v1620 = vadd.f32 %v1423, %v1588
        %v1621 = vadd.f32 %v1424, %v1589
        %v1622 = vadd.f32 %v1425, %v1590
        %v1623 = vadd.f32 %v1426, %v1591
        %v1624 = vadd.f32 %v1427, %v1592
        %v1625 = vadd.f32 %v1428, %v1593
        %v1626 = vadd.f32 %v1429, %v1594
        %v1627 = vadd.f32 %v1430, %v1595
        %v1628 = vadd.f32 %v1431, %v1596
        %v1629 = vadd.f32 %v1432, %v1597
        %v1630 = vadd.f32 %v1433, %v1598
        %v1631 = vadd.f32 %v1434, %v1599
        %v1632 = vadd.f32 %v1435, %v1600
        %v1633 = vadd.f32 %v1436, %v1601
        %v1634 = vadd.f32 %v1437, %v1602
        %v1635 = vadd.f32 %v1438, %v1603
        %v1636 = vadd.f32 %v1439, %v1604
        %v1637 = vadd.f32 %v1440, %v1605
        %v1638 = vadd.f32 %v1441, %v1606
        %v1639 = vadd.f32 %v1442, %v1607
        %v1640 = vadd.f32 %v1443, %v1608
        %v1641 = vadd.f32 %v1444, %v1609
        %v1642 = vadd.f32 %v1445, %v1610
        %v1643 = vrot.slane %v982, 7
        %v1644 = vrot.slane %v987, 7
        %v1645 = vrot.slane %v992, 7
        %v1646 = vrot.slane %v997, 7
        %v1647 = vrot.slane %v1002, 7
        %v1648 = vrot.slane %v1007, 7
        %v1649 = vrot.slane %v1012, 7
        %v1650 = vrot.slane %v1017, 7
        %v1651 = vrot.slane %v1022, 7
        %v1652 = vrot.slane %v1027, 7
        %v1653 = vrot.slane %v1032, 7
        %v1654 = vrot.slane %v1037, 7
        %v1655 = vrot.slane %v1042, 7
        %v1656 = vrot.slane %v1047, 7
        %v1657 = vrot.slane %v1052, 7
        %v1658 = vrot.slane %v1057, 7
        %v1659 = vrot.slane %v1062, 7
        %v1660 = vrot.slane %v1067, 7
        %v1661 = vrot.slane %v1072, 7
        %v1662 = vrot.slane %v1077, 7
        %v1663 = vrot.slane %v1082, 7
        %v1664 = vrot.slane %v1087, 7
        %v1665 = vrot.slane %v1092, 7
        %v1666 = vrot.slane %v1097, 7
        %v1667 = vrot.slane %v1102, 7
        %v1668 = vrot.slane %v1107, 7
        %v1669 = vrot.slane %v1112, 7
        %v1670 = vrot.slane %v1117, 7
        %v1671 = vrot.slane %v1122, 7
        %v1672 = vrot.slane %v1127, 7
        %v1673 = vrot.slane %v1132, 7
        %v1674 = vrot.slane %v1137, 7
        %vm1675 = vcmp.lt.s32.totalorder %v1142, 1
        %v1676 = vsel %vm1675, %v1673, %v1674
        %v1677 = vsel %vm1675, %v1672, %v1673
        %v1678 = vsel %vm1675, %v1671, %v1672
        %v1679 = vsel %vm1675, %v1670, %v1671
        %v1680 = vsel %vm1675, %v1669, %v1670
        %v1681 = vsel %vm1675, %v1668, %v1669
        %v1682 = vsel %vm1675, %v1667, %v1668
        %v1683 = vsel %vm1675, %v1666, %v1667
        %v1684 = vsel %vm1675, %v1665, %v1666
        %v1685 = vsel %vm1675, %v1664, %v1665
        %v1686 = vsel %vm1675, %v1663, %v1664
        %v1687 = vsel %vm1675, %v1662, %v1663
        %v1688 = vsel %vm1675, %v1661, %v1662
        %v1689 = vsel %vm1675, %v1660, %v1661
        %v1690 = vsel %vm1675, %v1659, %v1660
        %v1691 = vsel %vm1675, %v1658, %v1659
        %v1692 = vsel %vm1675, %v1657, %v1658
        %v1693 = vsel %vm1675, %v1656, %v1657
        %v1694 = vsel %vm1675, %v1655, %v1656
        %v1695 = vsel %vm1675, %v1654, %v1655
        %v1696 = vsel %vm1675, %v1653, %v1654
        %v1697 = vsel %vm1675, %v1652, %v1653
        %v1698 = vsel %vm1675, %v1651, %v1652
        %v1699 = vsel %vm1675, %v1650, %v1651
        %v1700 = vsel %vm1675, %v1649, %v1650
        %v1701 = vsel %vm1675, %v1648, %v1649
        %v1702 = vsel %vm1675, %v1647, %v1648
        %v1703 = vsel %vm1675, %v1646, %v1647
        %v1704 = vsel %vm1675, %v1645, %v1646
        %v1705 = vsel %vm1675, %v1644, %v1645
        %v1706 = vsel %vm1675, %v1643, %v1644
        %v1707 = vsel %vm1675, %v1674, %v1643
        %vm1708 = vcmp.ge.s32.totalorder %v1142, 1
        %vm1709 = vcmp.ge.s32.totalorder %v1143, 1
        %vm1710 = vcmp.ge.s32.totalorder %v1144, 1
        %vm1711 = vcmp.ge.s32.totalorder %v1145, 1
        %vm1712 = vcmp.ge.s32.totalorder %v1146, 1
        %vm1713 = vcmp.ge.s32.totalorder %v1147, 1
        %vm1714 = vcmp.ge.s32.totalorder %v1148, 1
        %vm1715 = vcmp.ge.s32.totalorder %v1149, 1
        %vm1716 = vcmp.ge.s32.totalorder %v1150, 1
        %vm1717 = vcmp.ge.s32.totalorder %v1151, 1
        %vm1718 = vcmp.ge.s32.totalorder %v1152, 1
        %vm1719 = vcmp.ge.s32.totalorder %v1153, 1
        %vm1720 = vcmp.ge.s32.totalorder %v1154, 1
        %vm1721 = vcmp.ge.s32.totalorder %v1155, 1
        %vm1722 = vcmp.ge.s32.totalorder %v1156, 1
        %vm1723 = vcmp.ge.s32.totalorder %v1157, 1
        %vm1724 = vcmp.ge.s32.totalorder %v1158, 1
        %vm1725 = vcmp.ge.s32.totalorder %v1159, 1
        %vm1726 = vcmp.ge.s32.totalorder %v1160, 1
        %vm1727 = vcmp.ge.s32.totalorder %v1161, 1
        %vm1728 = vcmp.ge.s32.totalorder %v1162, 1
        %vm1729 = vcmp.ge.s32.totalorder %v1163, 1
        %vm1730 = vcmp.ge.s32.totalorder %v1164, 1
        %vm1731 = vcmp.ge.s32.totalorder %v1165, 1
        %vm1732 = vcmp.ge.s32.totalorder %v1166, 1
        %vm1733 = vcmp.ge.s32.totalorder %v1167, 1
        %vm1734 = vcmp.ge.s32.totalorder %v1168, 1
        %vm1735 = vcmp.ge.s32.totalorder %v1169, 1
        %vm1736 = vcmp.ge.s32.totalorder %v1170, 1
        %vm1737 = vcmp.ge.s32.totalorder %v1171, 1
        %vm1738 = vcmp.ge.s32.totalorder %v1172, 1
        %vm1739 = vcmp.ge.s32.totalorder %v1173, 1
        %v1740 = vsel %vm1708, %v1707, 0.0
        %v1741 = vsel %vm1709, %v1706, 0.0
        %v1742 = vsel %vm1710, %v1705, 0.0
        %v1743 = vsel %vm1711, %v1704, 0.0
        %v1744 = vsel %vm1712, %v1703, 0.0
        %v1745 = vsel %vm1713, %v1702, 0.0
        %v1746 = vsel %vm1714, %v1701, 0.0
        %v1747 = vsel %vm1715, %v1700, 0.0
        %v1748 = vsel %vm1716, %v1699, 0.0
        %v1749 = vsel %vm1717, %v1698, 0.0
        %v1750 = vsel %vm1718, %v1697, 0.0
        %v1751 = vsel %vm1719, %v1696, 0.0
        %v1752 = vsel %vm1720, %v1695, 0.0
        %v1753 = vsel %vm1721, %v1694, 0.0
        %v1754 = vsel %vm1722, %v1693, 0.0
        %v1755 = vsel %vm1723, %v1692, 0.0
        %v1756 = vsel %vm1724, %v1691, 0.0
        %v1757 = vsel %vm1725, %v1690, 0.0
        %v1758 = vsel %vm1726, %v1689, 0.0
        %v1759 = vsel %vm1727, %v1688, 0.0
        %v1760 = vsel %vm1728, %v1687, 0.0
        %v1761 = vsel %vm1729, %v1686, 0.0
        %v1762 = vsel %vm1730, %v1685, 0.0
        %v1763 = vsel %vm1731, %v1684, 0.0
        %v1764 = vsel %vm1732, %v1683, 0.0
        %v1765 = vsel %vm1733, %v1682, 0.0
        %v1766 = vsel %vm1734, %v1681, 0.0
        %v1767 = vsel %vm1735, %v1680, 0.0
        %v1768 = vsel %vm1736, %v1679, 0.0
        %v1769 = vsel %vm1737, %v1678, 0.0
        %v1770 = vsel %vm1738, %v1677, 0.0
        %v1771 = vsel %vm1739, %v1676, 0.0
        %v1772 = vlaneseq
        %v1773 = vshrl.u32 %v1772, 7
        %v1774 = vsub.s32 2, %v1773
        %v1775 = vrot.slane %v1140, %v1774
        %v1776 = vmul.f32 %v1740, %v1775
        %v1777 = vmul.f32 %v1741, %v1775
        %v1778 = vmul.f32 %v1742, %v1775
        %v1779 = vmul.f32 %v1743, %v1775
        %v1780 = vmul.f32 %v1744, %v1775
        %v1781 = vmul.f32 %v1745, %v1775
        %v1782 = vmul.f32 %v1746, %v1775
        %v1783 = vmul.f32 %v1747, %v1775
        %v1784 = vmul.f32 %v1748, %v1775
        %v1785 = vmul.f32 %v1749, %v1775
        %v1786 = vmul.f32 %v1750, %v1775
        %v1787 = vmul.f32 %v1751, %v1775
        %v1788 = vmul.f32 %v1752, %v1775
        %v1789 = vmul.f32 %v1753, %v1775
        %v1790 = vmul.f32 %v1754, %v1775
        %v1791 = vmul.f32 %v1755, %v1775
        %v1792 = vmul.f32 %v1756, %v1775
        %v1793 = vmul.f32 %v1757, %v1775
        %v1794 = vmul.f32 %v1758, %v1775
        %v1795 = vmul.f32 %v1759, %v1775
        %v1796 = vmul.f32 %v1760, %v1775
        %v1797 = vmul.f32 %v1761, %v1775
        %v1798 = vmul.f32 %v1762, %v1775
        %v1799 = vmul.f32 %v1763, %v1775
        %v1800 = vmul.f32 %v1764, %v1775
        %v1801 = vmul.f32 %v1765, %v1775
        %v1802 = vmul.f32 %v1766, %v1775
        %v1803 = vmul.f32 %v1767, %v1775
        %v1804 = vmul.f32 %v1768, %v1775
        %v1805 = vmul.f32 %v1769, %v1775
        %v1806 = vmul.f32 %v1770, %v1775
        %v1807 = vmul.f32 %v1771, %v1775
        %v1808 = vadd.f32 %v1611, %v1776
        %v1809 = vadd.f32 %v1612, %v1777
        %v1810 = vadd.f32 %v1613, %v1778
        %v1811 = vadd.f32 %v1614, %v1779
        %v1812 = vadd.f32 %v1615, %v1780
        %v1813 = vadd.f32 %v1616, %v1781
        %v1814 = vadd.f32 %v1617, %v1782
        %v1815 = vadd.f32 %v1618, %v1783
        %v1816 = vadd.f32 %v1619, %v1784
        %v1817 = vadd.f32 %v1620, %v1785
        %v1818 = vadd.f32 %v1621, %v1786
        %v1819 = vadd.f32 %v1622, %v1787
        %v1820 = vadd.f32 %v1623, %v1788
        %v1821 = vadd.f32 %v1624, %v1789
        %v1822 = vadd.f32 %v1625, %v1790
        %v1823 = vadd.f32 %v1626, %v1791
        %v1824 = vadd.f32 %v1627, %v1792
        %v1825 = vadd.f32 %v1628, %v1793
        %v1826 = vadd.f32 %v1629, %v1794
        %v1827 = vadd.f32 %v1630, %v1795
        %v1828 = vadd.f32 %v1631, %v1796
        %v1829 = vadd.f32 %v1632, %v1797
        %v1830 = vadd.f32 %v1633, %v1798
        %v1831 = vadd.f32 %v1634, %v1799
        %v1832 = vadd.f32 %v1635, %v1800
        %v1833 = vadd.f32 %v1636, %v1801
        %v1834 = vadd.f32 %v1637, %v1802
        %v1835 = vadd.f32 %v1638, %v1803
        %v1836 = vadd.f32 %v1639, %v1804
        %v1837 = vadd.f32 %v1640, %v1805
        %v1838 = vadd.f32 %v1641, %v1806
        %v1839 = vadd.f32 %v1642, %v1807
        %v1840 = vxor.u32 %v1808, 2147483648
        %v1841 = vxor.u32 %v1809, 2147483648
        %v1842 = vxor.u32 %v1810, 2147483648
        %v1843 = vxor.u32 %v1811, 2147483648
        %v1844 = vxor.u32 %v1812, 2147483648
        %v1845 = vxor.u32 %v1813, 2147483648
        %v1846 = vxor.u32 %v1814, 2147483648
        %v1847 = vxor.u32 %v1815, 2147483648
        %v1848 = vxor.u32 %v1816, 2147483648
        %v1849 = vxor.u32 %v1817, 2147483648
        %v1850 = vxor.u32 %v1818, 2147483648
        %v1851 = vxor.u32 %v1819, 2147483648
        %v1852 = vxor.u32 %v1820, 2147483648
        %v1853 = vxor.u32 %v1821, 2147483648
        %v1854 = vxor.u32 %v1822, 2147483648
        %v1855 = vxor.u32 %v1823, 2147483648
        %v1856 = vxor.u32 %v1824, 2147483648
        %v1857 = vxor.u32 %v1825, 2147483648
        %v1858 = vxor.u32 %v1826, 2147483648
        %v1859 = vxor.u32 %v1827, 2147483648
        %v1860 = vxor.u32 %v1828, 2147483648
        %v1861 = vxor.u32 %v1829, 2147483648
        %v1862 = vxor.u32 %v1830, 2147483648
        %v1863 = vxor.u32 %v1831, 2147483648
        %v1864 = vxor.u32 %v1832, 2147483648
        %v1865 = vxor.u32 %v1833, 2147483648
        %v1866 = vxor.u32 %v1834, 2147483648
        %v1867 = vxor.u32 %v1835, 2147483648
        %v1868 = vxor.u32 %v1836, 2147483648
        %v1869 = vxor.u32 %v1837, 2147483648
        %v1870 = vxor.u32 %v1838, 2147483648
        %v1871 = vxor.u32 %v1839, 2147483648
        %v1872 = vmul.f32 %v1840, 1.442695
        %v1873 = vpow.pop %v1872
        %v1874 = vmul.f32 %v1841, 1.442695
        %v1875 = vpow.pop %v1874
        %v1876 = vmul.f32 %v1842, 1.442695
        %v1877 = vpow.pop %v1876
        %v1878 = vmul.f32 %v1843, 1.442695
        %v1879 = vpow.pop %v1878
        %v1880 = vmul.f32 %v1844, 1.442695
        %v1881 = vpow.pop %v1880
        %v1882 = vmul.f32 %v1845, 1.442695
        %v1883 = vpow.pop %v1882
        %v1884 = vmul.f32 %v1846, 1.442695
        %v1885 = vpow.pop %v1884
        %v1886 = vmul.f32 %v1847, 1.442695
        %v1887 = vpow.pop %v1886
        %v1888 = vmul.f32 %v1848, 1.442695
        %v1889 = vpow.pop %v1888
        %v1890 = vmul.f32 %v1849, 1.442695
        %v1891 = vpow.pop %v1890
        %v1892 = vmul.f32 %v1850, 1.442695
        %v1893 = vpow.pop %v1892
        %v1894 = vmul.f32 %v1851, 1.442695
        %v1895 = vpow.pop %v1894
        %v1896 = vmul.f32 %v1852, 1.442695
        %v1897 = vpow.pop %v1896
        %v1898 = vmul.f32 %v1853, 1.442695
        %v1899 = vpow.pop %v1898
        %v1900 = vmul.f32 %v1854, 1.442695
        %v1901 = vpow.pop %v1900
        %v1902 = vmul.f32 %v1855, 1.442695
        %v1903 = vpow.pop %v1902
        %v1904 = vmul.f32 %v1856, 1.442695
        %v1905 = vpow.pop %v1904
        %v1906 = vmul.f32 %v1857, 1.442695
        %v1907 = vpow.pop %v1906
        %v1908 = vmul.f32 %v1858, 1.442695
        %v1909 = vpow.pop %v1908
        %v1910 = vmul.f32 %v1859, 1.442695
        %v1911 = vpow.pop %v1910
        %v1912 = vmul.f32 %v1860, 1.442695
        %v1913 = vpow.pop %v1912
        %v1914 = vmul.f32 %v1861, 1.442695
        %v1915 = vpow.pop %v1914
        %v1916 = vmul.f32 %v1862, 1.442695
        %v1917 = vpow.pop %v1916
        %v1918 = vmul.f32 %v1863, 1.442695
        %v1919 = vpow.pop %v1918
        %v1920 = vmul.f32 %v1864, 1.442695
        %v1921 = vpow.pop %v1920
        %v1922 = vmul.f32 %v1865, 1.442695
        %v1923 = vpow.pop %v1922
        %v1924 = vmul.f32 %v1866, 1.442695
        %v1925 = vpow.pop %v1924
        %v1926 = vmul.f32 %v1867, 1.442695
        %v1927 = vpow.pop %v1926
        %v1928 = vmul.f32 %v1868, 1.442695
        %v1929 = vpow.pop %v1928
        %v1930 = vmul.f32 %v1869, 1.442695
        %v1931 = vpow.pop %v1930
        %v1932 = vmul.f32 %v1870, 1.442695
        %v1933 = vpow.pop %v1932
        %v1934 = vmul.f32 %v1871, 1.442695
        %v1935 = vpow.pop %v1934
        %v1936 = vadd.f32 %v1873, 1.0
        %v1937 = vadd.f32 %v1875, 1.0
        %v1938 = vadd.f32 %v1877, 1.0
        %v1939 = vadd.f32 %v1879, 1.0
        %v1940 = vadd.f32 %v1881, 1.0
        %v1941 = vadd.f32 %v1883, 1.0
        %v1942 = vadd.f32 %v1885, 1.0
        %v1943 = vadd.f32 %v1887, 1.0
        %v1944 = vadd.f32 %v1889, 1.0
        %v1945 = vadd.f32 %v1891, 1.0
        %v1946 = vadd.f32 %v1893, 1.0
        %v1947 = vadd.f32 %v1895, 1.0
        %v1948 = vadd.f32 %v1897, 1.0
        %v1949 = vadd.f32 %v1899, 1.0
        %v1950 = vadd.f32 %v1901, 1.0
        %v1951 = vadd.f32 %v1903, 1.0
        %v1952 = vadd.f32 %v1905, 1.0
        %v1953 = vadd.f32 %v1907, 1.0
        %v1954 = vadd.f32 %v1909, 1.0
        %v1955 = vadd.f32 %v1911, 1.0
        %v1956 = vadd.f32 %v1913, 1.0
        %v1957 = vadd.f32 %v1915, 1.0
        %v1958 = vadd.f32 %v1917, 1.0
        %v1959 = vadd.f32 %v1919, 1.0
        %v1960 = vadd.f32 %v1921, 1.0
        %v1961 = vadd.f32 %v1923, 1.0
        %v1962 = vadd.f32 %v1925, 1.0
        %v1963 = vadd.f32 %v1927, 1.0
        %v1964 = vadd.f32 %v1929, 1.0
        %v1965 = vadd.f32 %v1931, 1.0
        %v1966 = vadd.f32 %v1933, 1.0
        %v1967 = vadd.f32 %v1935, 1.0
        %v1968 = vrcp.pop %v1936
        %v1969 = vmul.f32 1.0, %v1968
        %v1970 = vrcp.pop %v1937
        %v1971 = vmul.f32 1.0, %v1970
        %v1972 = vrcp.pop %v1938
        %v1973 = vmul.f32 1.0, %v1972
        %v1974 = vrcp.pop %v1939
        %v1975 = vmul.f32 1.0, %v1974
        %v1976 = vrcp.pop %v1940
        %v1977 = vmul.f32 1.0, %v1976
        %v1978 = vrcp.pop %v1941
        %v1979 = vmul.f32 1.0, %v1978
        %v1980 = vrcp.pop %v1942
        %v1981 = vmul.f32 1.0, %v1980
        %v1982 = vrcp.pop %v1943
        %v1983 = vmul.f32 1.0, %v1982
        %v1984 = vrcp.pop %v1944
        %v1985 = vmul.f32 1.0, %v1984
        %v1986 = vrcp.pop %v1945
        %v1987 = vmul.f32 1.0, %v1986
        %v1988 = vrcp.pop %v1946
        %v1989 = vmul.f32 1.0, %v1988
        %v1990 = vrcp.pop %v1947
        %v1991 = vmul.f32 1.0, %v1990
        %v1992 = vrcp.pop %v1948
        %v1993 = vmul.f32 1.0, %v1992
        %v1994 = vrcp.pop %v1949
        %v1995 = vmul.f32 1.0, %v1994
        %v1996 = vrcp.pop %v1950
        %v1997 = vmul.f32 1.0, %v1996
        %v1998 = vrcp.pop %v1951
        %v1999 = vmul.f32 1.0, %v1998
        %v2000 = vrcp.pop %v1952
        %v2001 = vmul.f32 1.0, %v2000
        %v2002 = vrcp.pop %v1953
        %v2003 = vmul.f32 1.0, %v2002
        %v2004 = vrcp.pop %v1954
        %v2005 = vmul.f32 1.0, %v2004
        %v2006 = vrcp.pop %v1955
        %v2007 = vmul.f32 1.0, %v2006
        %v2008 = vrcp.pop %v1956
        %v2009 = vmul.f32 1.0, %v2008
        %v2010 = vrcp.pop %v1957
        %v2011 = vmul.f32 1.0, %v2010
        %v2012 = vrcp.pop %v1958
        %v2013 = vmul.f32 1.0, %v2012
        %v2014 = vrcp.pop %v1959
        %v2015 = vmul.f32 1.0, %v2014
        %v2016 = vrcp.pop %v1960
        %v2017 = vmul.f32 1.0, %v2016
        %v2018 = vrcp.pop %v1961
        %v2019 = vmul.f32 1.0, %v2018
        %v2020 = vrcp.pop %v1962
        %v2021 = vmul.f32 1.0, %v2020
        %v2022 = vrcp.pop %v1963
        %v2023 = vmul.f32 1.0, %v2022
        %v2024 = vrcp.pop %v1964
        %v2025 = vmul.f32 1.0, %v2024
        %v2026 = vrcp.pop %v1965
        %v2027 = vmul.f32 1.0, %v2026
        %v2028 = vrcp.pop %v1966
        %v2029 = vmul.f32 1.0, %v2028
        %v2030 = vrcp.pop %v1967
        %v2031 = vmul.f32 1.0, %v2030
        %v2032 = vmul.f32 %v1808, %v1969
        %v2033 = vmul.f32 %v1809, %v1971
        %v2034 = vmul.f32 %v1810, %v1973
        %v2035 = vmul.f32 %v1811, %v1975
        %v2036 = vmul.f32 %v1812, %v1977
        %v2037 = vmul.f32 %v1813, %v1979
        %v2038 = vmul.f32 %v1814, %v1981
        %v2039 = vmul.f32 %v1815, %v1983
        %v2040 = vmul.f32 %v1816, %v1985
        %v2041 = vmul.f32 %v1817, %v1987
        %v2042 = vmul.f32 %v1818, %v1989
        %v2043 = vmul.f32 %v1819, %v1991
        %v2044 = vmul.f32 %v1820, %v1993
        %v2045 = vmul.f32 %v1821, %v1995
        %v2046 = vmul.f32 %v1822, %v1997
        %v2047 = vmul.f32 %v1823, %v1999
        %v2048 = vmul.f32 %v1824, %v2001
        %v2049 = vmul.f32 %v1825, %v2003
        %v2050 = vmul.f32 %v1826, %v2005
        %v2051 = vmul.f32 %v1827, %v2007
        %v2052 = vmul.f32 %v1828, %v2009
        %v2053 = vmul.f32 %v1829, %v2011
        %v2054 = vmul.f32 %v1830, %v2013
        %v2055 = vmul.f32 %v1831, %v2015
        %v2056 = vmul.f32 %v1832, %v2017
        %v2057 = vmul.f32 %v1833, %v2019
        %v2058 = vmul.f32 %v1834, %v2021
        %v2059 = vmul.f32 %v1835, %v2023
        %v2060 = vmul.f32 %v1836, %v2025
        %v2061 = vmul.f32 %v1837, %v2027
        %v2062 = vmul.f32 %v1838, %v2029
        %v2063 = vmul.f32 %v1839, %v2031
        %v2064 = vld [vmem:[%s5] sm:$0xff]
        %v2065 = vld [vmem:[%s5 + $0x8] sm:$0xff]
        %v2066 = vld [vmem:[%s5 + $0x10] sm:$0xff]
        %v2067 = vld [vmem:[%s5 + $0x18] sm:$0xff]
        %v2068 = vld [vmem:[%s5 + $0x20] sm:$0xff]
        %v2069 = vld [vmem:[%s5 + $0x28] sm:$0xff]
        %v2070 = vld [vmem:[%s5 + $0x30] sm:$0xff]
        %v2071 = vld [vmem:[%s5 + $0x38] sm:$0xff]
        %vm2072 = vcmask 523264
        %v2074 = vsel %vm2072, %v2032, 0
        %v2077 = vsel %vm2072, %v2033, 0
        %v2080 = vsel %vm2072, %v2034, 0
        %v2083 = vsel %vm2072, %v2035, 0
        %v2086 = vsel %vm2072, %v2036, 0
        %v2089 = vsel %vm2072, %v2037, 0
        %v2092 = vsel %vm2072, %v2038, 0
        %v2095 = vsel %vm2072, %v2039, 0
        %v2098 = vsel %vm2072, %v2040, 0
        %v2101 = vsel %vm2072, %v2041, 0
        %v2104 = vsel %vm2072, %v2042, 0
        %v2107 = vsel %vm2072, %v2043, 0
        %v2110 = vsel %vm2072, %v2044, 0
        %v2113 = vsel %vm2072, %v2045, 0
        %v2116 = vsel %vm2072, %v2046, 0
        %v2119 = vsel %vm2072, %v2047, 0
        %v2122 = vsel %vm2072, %v2048, 0
        %v2125 = vsel %vm2072, %v2049, 0
        %v2128 = vsel %vm2072, %v2050, 0
        %v2131 = vsel %vm2072, %v2051, 0
        %v2134 = vsel %vm2072, %v2052, 0
        %v2137 = vsel %vm2072, %v2053, 0
        %v2140 = vsel %vm2072, %v2054, 0
        %v2143 = vsel %vm2072, %v2055, 0
        %v2146 = vsel %vm2072, %v2056, 0
        %v2149 = vsel %vm2072, %v2057, 0
        %v2152 = vsel %vm2072, %v2058, 0
        %v2155 = vsel %vm2072, %v2059, 0
        %v2158 = vsel %vm2072, %v2060, 0
        %v2161 = vsel %vm2072, %v2061, 0
        %v2164 = vsel %vm2072, %v2062, 0
        %v2167 = vsel %vm2072, %v2063, 0
        %2169 = vmatprep.subr.mxu0 0.0
        %2170 = vmatpush1.msra.mxu0 0.0
        %2171 = vmatprep.subr.mxu0 0.0
        %2172 = vmatpush1.msra.mxu0 0.0
        %2173 = vmatprep.subr.mxu0 0.0
        %2174 = vmatpush1.msra.mxu0 0.0
        %2175 = vmatprep.subr.mxu0 0.0
        %2176 = vmatpush1.msra.mxu0 0.0
        %2177 = vmatprep.subr.mxu0 0.0
        %2178 = vmatpush1.msra.mxu0 0.0
        %2179 = vmatprep.subr.mxu0 0.0
        %2180 = vmatpush1.msra.mxu0 0.0
        %2181 = vmatprep.subr.mxu0 0.0
        %2182 = vmatpush1.msra.mxu0 0.0
        %2183 = vmatprep.subr.mxu0 0.0
        %2184 = vmatpush1.msra.mxu0 0.0
        %2185 = vmatprep.subr.mxu0 0.0
        %2186 = vmatpush1.msra.mxu0 %v2071
        %2187 = vmatprep.subr.mxu0 0.0
        %2188 = vmatpush1.msra.mxu0 %v2070
        %2189 = vmatprep.subr.mxu0 0.0
        %2190 = vmatpush1.msra.mxu0 %v2069
        %2191 = vmatprep.subr.mxu0 0.0
        %2192 = vmatpush1.msra.mxu0 %v2068
        %2193 = vmatprep.subr.mxu0 0.0
        %2194 = vmatpush1.msra.mxu0 %v2067
        %2195 = vmatprep.subr.mxu0 0.0
        %2196 = vmatpush1.msra.mxu0 %v2066
        %2197 = vmatprep.subr.mxu0 0.0
        %2198 = vmatpush1.msra.mxu0 %v2065
        %2199 = vmatprep.subr.mxu0 0.0
        %2200 = vmatpush1.msra.mxu0 %v2064
        %2201 = vmatprep.subr.mxu0 0.0
        %2202 = vmatpush2.msra.mxu0 0.0
        %2203 = vmatprep.subr.mxu0 0.0
        %2204 = vmatpush2.msra.mxu0 0.0
        %2205 = vmatprep.subr.mxu0 0.0
        %2206 = vmatpush2.msra.mxu0 0.0
        %2207 = vmatprep.subr.mxu0 0.0
        %2208 = vmatpush2.msra.mxu0 0.0
        %2209 = vmatprep.subr.mxu0 0.0
        %2210 = vmatpush2.msra.mxu0 0.0
        %2211 = vmatprep.subr.mxu0 0.0
        %2212 = vmatpush2.msra.mxu0 0.0
        %2213 = vmatprep.subr.mxu0 0.0
        %2214 = vmatpush2.msra.mxu0 0.0
        %2215 = vmatprep.subr.mxu0 0.0
        %2216 = vmatpush2.msra.mxu0 0.0
        %2217 = vmatprep.subr.mxu0 0.0
        %2218 = vmatpush2.msra.mxu0 0.0
        %2219 = vmatprep.subr.mxu0 0.0
        %2220 = vmatpush2.msra.mxu0 0.0
        %2221 = vmatprep.subr.mxu0 0.0
        %2222 = vmatpush2.msra.mxu0 0.0
        %2223 = vmatprep.subr.mxu0 0.0
        %2224 = vmatpush2.msra.mxu0 0.0
        %2225 = vmatprep.subr.mxu0 0.0
        %2226 = vmatpush2.msra.mxu0 0.0
        %2227 = vmatprep.subr.mxu0 0.0
        %2228 = vmatpush2.msra.mxu0 0.0
        %2229 = vmatprep.subr.mxu0 0.0
        %2230 = vmatpush2.msra.mxu0 0.0
        %2231 = vmatprep.subr.mxu0 0.0
        %2232 = vmatpush2.msra.mxu0 0.0
        %2233 = vmatprep.mubr.f32.mxu0 0.0
        %2234 = vmatmul.mubr.f32.gmra.mxu0 %v2074
        %v2235 = vpop.f32.mrf.mxu0
        %v2236 = vadd.f32 0.0, %v2235
        %v2237 = vpop.f32.mrf.mxu0
        %2238 = vmatprep.mubr.f32.mxu0 0.0
        %2239 = vmatmul.mubr.f32.gmra.mxu0 %v2077
        %v2240 = vpop.f32.mrf.mxu0
        %v2241 = vadd.f32 0.0, %v2240
        %v2242 = vpop.f32.mrf.mxu0
        %2243 = vmatprep.mubr.f32.mxu0 0.0
        %2244 = vmatmul.mubr.f32.gmra.mxu0 %v2080
        %v2245 = vpop.f32.mrf.mxu0
        %v2246 = vadd.f32 0.0, %v2245
        %v2247 = vpop.f32.mrf.mxu0
        %2248 = vmatprep.mubr.f32.mxu0 0.0
        %2249 = vmatmul.mubr.f32.gmra.mxu0 %v2083
        %v2250 = vpop.f32.mrf.mxu0
        %v2251 = vadd.f32 0.0, %v2250
        %v2252 = vpop.f32.mrf.mxu0
        %2253 = vmatprep.mubr.f32.mxu0 0.0
        %2254 = vmatmul.mubr.f32.gmra.mxu0 %v2086
        %v2255 = vpop.f32.mrf.mxu0
        %v2256 = vadd.f32 0.0, %v2255
        %v2257 = vpop.f32.mrf.mxu0
        %2258 = vmatprep.mubr.f32.mxu0 0.0
        %2259 = vmatmul.mubr.f32.gmra.mxu0 %v2089
        %v2260 = vpop.f32.mrf.mxu0
        %v2261 = vadd.f32 0.0, %v2260
        %v2262 = vpop.f32.mrf.mxu0
        %2263 = vmatprep.mubr.f32.mxu0 0.0
        %2264 = vmatmul.mubr.f32.gmra.mxu0 %v2092
        %v2265 = vpop.f32.mrf.mxu0
        %v2266 = vadd.f32 0.0, %v2265
        %v2267 = vpop.f32.mrf.mxu0
        %2268 = vmatprep.mubr.f32.mxu0 0.0
        %2269 = vmatmul.mubr.f32.gmra.mxu0 %v2095
        %v2270 = vpop.f32.mrf.mxu0
        %v2271 = vadd.f32 0.0, %v2270
        %v2272 = vpop.f32.mrf.mxu0
        %2273 = vmatprep.mubr.f32.mxu0 0.0
        %2274 = vmatmul.mubr.f32.gmra.mxu0 %v2098
        %v2275 = vpop.f32.mrf.mxu0
        %v2276 = vadd.f32 0.0, %v2275
        %v2277 = vpop.f32.mrf.mxu0
        %2278 = vmatprep.mubr.f32.mxu0 0.0
        %2279 = vmatmul.mubr.f32.gmra.mxu0 %v2101
        %v2280 = vpop.f32.mrf.mxu0
        %v2281 = vadd.f32 0.0, %v2280
        %v2282 = vpop.f32.mrf.mxu0
        %2283 = vmatprep.mubr.f32.mxu0 0.0
        %2284 = vmatmul.mubr.f32.gmra.mxu0 %v2104
        %v2285 = vpop.f32.mrf.mxu0
        %v2286 = vadd.f32 0.0, %v2285
        %v2287 = vpop.f32.mrf.mxu0
        %2288 = vmatprep.mubr.f32.mxu0 0.0
        %2289 = vmatmul.mubr.f32.gmra.mxu0 %v2107
        %v2290 = vpop.f32.mrf.mxu0
        %v2291 = vadd.f32 0.0, %v2290
        %v2292 = vpop.f32.mrf.mxu0
        %2293 = vmatprep.mubr.f32.mxu0 0.0
        %2294 = vmatmul.mubr.f32.gmra.mxu0 %v2110
        %v2295 = vpop.f32.mrf.mxu0
        %v2296 = vadd.f32 0.0, %v2295
        %v2297 = vpop.f32.mrf.mxu0
        %2298 = vmatprep.mubr.f32.mxu0 0.0
        %2299 = vmatmul.mubr.f32.gmra.mxu0 %v2113
        %v2300 = vpop.f32.mrf.mxu0
        %v2301 = vadd.f32 0.0, %v2300
        %v2302 = vpop.f32.mrf.mxu0
        %2303 = vmatprep.mubr.f32.mxu0 0.0
        %2304 = vmatmul.mubr.f32.gmra.mxu0 %v2116
        %v2305 = vpop.f32.mrf.mxu0
        %v2306 = vadd.f32 0.0, %v2305
        %v2307 = vpop.f32.mrf.mxu0
        %2308 = vmatprep.mubr.f32.mxu0 0.0
        %2309 = vmatmul.mubr.f32.gmra.mxu0 %v2119
        %v2310 = vpop.f32.mrf.mxu0
        %v2311 = vadd.f32 0.0, %v2310
        %v2312 = vpop.f32.mrf.mxu0
        %2313 = vmatprep.mubr.f32.mxu0 0.0
        %2314 = vmatmul.mubr.f32.gmra.mxu0 %v2122
        %v2315 = vpop.f32.mrf.mxu0
        %v2316 = vadd.f32 0.0, %v2315
        %v2317 = vpop.f32.mrf.mxu0
        %2318 = vmatprep.mubr.f32.mxu0 0.0
        %2319 = vmatmul.mubr.f32.gmra.mxu0 %v2125
        %v2320 = vpop.f32.mrf.mxu0
        %v2321 = vadd.f32 0.0, %v2320
        %v2322 = vpop.f32.mrf.mxu0
        %2323 = vmatprep.mubr.f32.mxu0 0.0
        %2324 = vmatmul.mubr.f32.gmra.mxu0 %v2128
        %v2325 = vpop.f32.mrf.mxu0
        %v2326 = vadd.f32 0.0, %v2325
        %v2327 = vpop.f32.mrf.mxu0
        %2328 = vmatprep.mubr.f32.mxu0 0.0
        %2329 = vmatmul.mubr.f32.gmra.mxu0 %v2131
        %v2330 = vpop.f32.mrf.mxu0
        %v2331 = vadd.f32 0.0, %v2330
        %v2332 = vpop.f32.mrf.mxu0
        %2333 = vmatprep.mubr.f32.mxu0 0.0
        %2334 = vmatmul.mubr.f32.gmra.mxu0 %v2134
        %v2335 = vpop.f32.mrf.mxu0
        %v2336 = vadd.f32 0.0, %v2335
        %v2337 = vpop.f32.mrf.mxu0
        %2338 = vmatprep.mubr.f32.mxu0 0.0
        %2339 = vmatmul.mubr.f32.gmra.mxu0 %v2137
        %v2340 = vpop.f32.mrf.mxu0
        %v2341 = vadd.f32 0.0, %v2340
        %v2342 = vpop.f32.mrf.mxu0
        %2343 = vmatprep.mubr.f32.mxu0 0.0
        %2344 = vmatmul.mubr.f32.gmra.mxu0 %v2140
        %v2345 = vpop.f32.mrf.mxu0
        %v2346 = vadd.f32 0.0, %v2345
        %v2347 = vpop.f32.mrf.mxu0
        %2348 = vmatprep.mubr.f32.mxu0 0.0
        %2349 = vmatmul.mubr.f32.gmra.mxu0 %v2143
        %v2350 = vpop.f32.mrf.mxu0
        %v2351 = vadd.f32 0.0, %v2350
        %v2352 = vpop.f32.mrf.mxu0
        %2353 = vmatprep.mubr.f32.mxu0 0.0
        %2354 = vmatmul.mubr.f32.gmra.mxu0 %v2146
        %v2355 = vpop.f32.mrf.mxu0
        %v2356 = vadd.f32 0.0, %v2355
        %v2357 = vpop.f32.mrf.mxu0
        %2358 = vmatprep.mubr.f32.mxu0 0.0
        %2359 = vmatmul.mubr.f32.gmra.mxu0 %v2149
        %v2360 = vpop.f32.mrf.mxu0
        %v2361 = vadd.f32 0.0, %v2360
        %v2362 = vpop.f32.mrf.mxu0
        %2363 = vmatprep.mubr.f32.mxu0 0.0
        %2364 = vmatmul.mubr.f32.gmra.mxu0 %v2152
        %v2365 = vpop.f32.mrf.mxu0
        %v2366 = vadd.f32 0.0, %v2365
        %v2367 = vpop.f32.mrf.mxu0
        %2368 = vmatprep.mubr.f32.mxu0 0.0
        %2369 = vmatmul.mubr.f32.gmra.mxu0 %v2155
        %v2370 = vpop.f32.mrf.mxu0
        %v2371 = vadd.f32 0.0, %v2370
        %v2372 = vpop.f32.mrf.mxu0
        %2373 = vmatprep.mubr.f32.mxu0 0.0
        %2374 = vmatmul.mubr.f32.gmra.mxu0 %v2158
        %v2375 = vpop.f32.mrf.mxu0
        %v2376 = vadd.f32 0.0, %v2375
        %v2377 = vpop.f32.mrf.mxu0
        %2378 = vmatprep.mubr.f32.mxu0 0.0
        %2379 = vmatmul.mubr.f32.gmra.mxu0 %v2161
        %v2380 = vpop.f32.mrf.mxu0
        %v2381 = vadd.f32 0.0, %v2380
        %v2382 = vpop.f32.mrf.mxu0
        %2383 = vmatprep.mubr.f32.mxu0 0.0
        %2384 = vmatmul.mubr.f32.gmra.mxu0 %v2164
        %v2385 = vpop.f32.mrf.mxu0
        %v2386 = vadd.f32 0.0, %v2385
        %v2387 = vpop.f32.mrf.mxu0
        %2388 = vmatprep.mubr.f32.mxu0 0.0
        %2389 = vmatmul.mubr.f32.gmra.mxu0 %v2167
        %v2390 = vpop.f32.mrf.mxu0
        %v2391 = vadd.f32 0.0, %v2390
        %v2392 = vpop.f32.mrf.mxu0
        %2393 = vdwg.mxu0
        %v2394 = vld [vmem:[%s6] sm:$0x1]
        %v2396 = vlaneseq
        %v2397 = vshrl.u32 %v2396, 7
        %v2398 = vsub.s32 0, %v2397
        %v2399 = vrot.slane %v2394, %v2398
        %v2401 = vadd.f32 %v2236, %v2399
        %v2402 = vadd.f32 %v2241, %v2399
        %v2403 = vadd.f32 %v2246, %v2399
        %v2404 = vadd.f32 %v2251, %v2399
        %v2405 = vadd.f32 %v2256, %v2399
        %v2406 = vadd.f32 %v2261, %v2399
        %v2407 = vadd.f32 %v2266, %v2399
        %v2408 = vadd.f32 %v2271, %v2399
        %v2409 = vadd.f32 %v2276, %v2399
        %v2410 = vadd.f32 %v2281, %v2399
        %v2411 = vadd.f32 %v2286, %v2399
        %v2412 = vadd.f32 %v2291, %v2399
        %v2413 = vadd.f32 %v2296, %v2399
        %v2414 = vadd.f32 %v2301, %v2399
        %v2415 = vadd.f32 %v2306, %v2399
        %v2416 = vadd.f32 %v2311, %v2399
        %v2417 = vadd.f32 %v2316, %v2399
        %v2418 = vadd.f32 %v2321, %v2399
        %v2419 = vadd.f32 %v2326, %v2399
        %v2420 = vadd.f32 %v2331, %v2399
        %v2421 = vadd.f32 %v2336, %v2399
        %v2422 = vadd.f32 %v2341, %v2399
        %v2423 = vadd.f32 %v2346, %v2399
        %v2424 = vadd.f32 %v2351, %v2399
        %v2425 = vadd.f32 %v2356, %v2399
        %v2426 = vadd.f32 %v2361, %v2399
        %v2427 = vadd.f32 %v2366, %v2399
        %v2428 = vadd.f32 %v2371, %v2399
        %v2429 = vadd.f32 %v2376, %v2399
        %v2430 = vadd.f32 %v2381, %v2399
        %v2431 = vadd.f32 %v2386, %v2399
        %v2432 = vadd.f32 %v2391, %v2399
        %vm2433 = vcmp.gt.f32.partialorder %v2401, 20.0
        %vm2434 = vcmp.gt.f32.partialorder %v2402, 20.0
        %vm2435 = vcmp.gt.f32.partialorder %v2403, 20.0
        %vm2436 = vcmp.gt.f32.partialorder %v2404, 20.0
        %vm2437 = vcmp.gt.f32.partialorder %v2405, 20.0
        %vm2438 = vcmp.gt.f32.partialorder %v2406, 20.0
        %vm2439 = vcmp.gt.f32.partialorder %v2407, 20.0
        %vm2440 = vcmp.gt.f32.partialorder %v2408, 20.0
        %vm2441 = vcmp.gt.f32.partialorder %v2409, 20.0
        %vm2442 = vcmp.gt.f32.partialorder %v2410, 20.0
        %vm2443 = vcmp.gt.f32.partialorder %v2411, 20.0
        %vm2444 = vcmp.gt.f32.partialorder %v2412, 20.0
        %vm2445 = vcmp.gt.f32.partialorder %v2413, 20.0
        %vm2446 = vcmp.gt.f32.partialorder %v2414, 20.0
        %vm2447 = vcmp.gt.f32.partialorder %v2415, 20.0
        %vm2448 = vcmp.gt.f32.partialorder %v2416, 20.0
        %vm2449 = vcmp.gt.f32.partialorder %v2417, 20.0
        %vm2450 = vcmp.gt.f32.partialorder %v2418, 20.0
        %vm2451 = vcmp.gt.f32.partialorder %v2419, 20.0
        %vm2452 = vcmp.gt.f32.partialorder %v2420, 20.0
        %vm2453 = vcmp.gt.f32.partialorder %v2421, 20.0
        %vm2454 = vcmp.gt.f32.partialorder %v2422, 20.0
        %vm2455 = vcmp.gt.f32.partialorder %v2423, 20.0
        %vm2456 = vcmp.gt.f32.partialorder %v2424, 20.0
        %vm2457 = vcmp.gt.f32.partialorder %v2425, 20.0
        %vm2458 = vcmp.gt.f32.partialorder %v2426, 20.0
        %vm2459 = vcmp.gt.f32.partialorder %v2427, 20.0
        %vm2460 = vcmp.gt.f32.partialorder %v2428, 20.0
        %vm2461 = vcmp.gt.f32.partialorder %v2429, 20.0
        %vm2462 = vcmp.gt.f32.partialorder %v2430, 20.0
        %vm2463 = vcmp.gt.f32.partialorder %v2431, 20.0
        %vm2464 = vcmp.gt.f32.partialorder %v2432, 20.0
        %v2465 = vmin.f32 %v2401, 20.0
        %v2466 = vmin.f32 %v2402, 20.0
        %v2467 = vmin.f32 %v2403, 20.0
        %v2468 = vmin.f32 %v2404, 20.0
        %v2469 = vmin.f32 %v2405, 20.0
        %v2470 = vmin.f32 %v2406, 20.0
        %v2471 = vmin.f32 %v2407, 20.0
        %v2472 = vmin.f32 %v2408, 20.0
        %v2473 = vmin.f32 %v2409, 20.0
        %v2474 = vmin.f32 %v2410, 20.0
        %v2475 = vmin.f32 %v2411, 20.0
        %v2476 = vmin.f32 %v2412, 20.0
        %v2477 = vmin.f32 %v2413, 20.0
        %v2478 = vmin.f32 %v2414, 20.0
        %v2479 = vmin.f32 %v2415, 20.0
        %v2480 = vmin.f32 %v2416, 20.0
        %v2481 = vmin.f32 %v2417, 20.0
        %v2482 = vmin.f32 %v2418, 20.0
        %v2483 = vmin.f32 %v2419, 20.0
        %v2484 = vmin.f32 %v2420, 20.0
        %v2485 = vmin.f32 %v2421, 20.0
        %v2486 = vmin.f32 %v2422, 20.0
        %v2487 = vmin.f32 %v2423, 20.0
        %v2488 = vmin.f32 %v2424, 20.0
        %v2489 = vmin.f32 %v2425, 20.0
        %v2490 = vmin.f32 %v2426, 20.0
        %v2491 = vmin.f32 %v2427, 20.0
        %v2492 = vmin.f32 %v2428, 20.0
        %v2493 = vmin.f32 %v2429, 20.0
        %v2494 = vmin.f32 %v2430, 20.0
        %v2495 = vmin.f32 %v2431, 20.0
        %v2496 = vmin.f32 %v2432, 20.0
        %v2497 = vmul.f32 %v2465, 1.442695
        %v2498 = vpow.pop %v2497
        %v2499 = vmul.f32 %v2466, 1.442695
        %v2500 = vpow.pop %v2499
        %v2501 = vmul.f32 %v2467, 1.442695
        %v2502 = vpow.pop %v2501
        %v2503 = vmul.f32 %v2468, 1.442695
        %v2504 = vpow.pop %v2503
        %v2505 = vmul.f32 %v2469, 1.442695
        %v2506 = vpow.pop %v2505
        %v2507 = vmul.f32 %v2470, 1.442695
        %v2508 = vpow.pop %v2507
        %v2509 = vmul.f32 %v2471, 1.442695
        %v2510 = vpow.pop %v2509
        %v2511 = vmul.f32 %v2472, 1.442695
        %v2512 = vpow.pop %v2511
        %v2513 = vmul.f32 %v2473, 1.442695
        %v2514 = vpow.pop %v2513
        %v2515 = vmul.f32 %v2474, 1.442695
        %v2516 = vpow.pop %v2515
        %v2517 = vmul.f32 %v2475, 1.442695
        %v2518 = vpow.pop %v2517
        %v2519 = vmul.f32 %v2476, 1.442695
        %v2520 = vpow.pop %v2519
        %v2521 = vmul.f32 %v2477, 1.442695
        %v2522 = vpow.pop %v2521
        %v2523 = vmul.f32 %v2478, 1.442695
        %v2524 = vpow.pop %v2523
        %v2525 = vmul.f32 %v2479, 1.442695
        %v2526 = vpow.pop %v2525
        %v2527 = vmul.f32 %v2480, 1.442695
        %v2528 = vpow.pop %v2527
        %v2529 = vmul.f32 %v2481, 1.442695
        %v2530 = vpow.pop %v2529
        %v2531 = vmul.f32 %v2482, 1.442695
        %v2532 = vpow.pop %v2531
        %v2533 = vmul.f32 %v2483, 1.442695
        %v2534 = vpow.pop %v2533
        %v2535 = vmul.f32 %v2484, 1.442695
        %v2536 = vpow.pop %v2535
        %v2537 = vmul.f32 %v2485, 1.442695
        %v2538 = vpow.pop %v2537
        %v2539 = vmul.f32 %v2486, 1.442695
        %v2540 = vpow.pop %v2539
        %v2541 = vmul.f32 %v2487, 1.442695
        %v2542 = vpow.pop %v2541
        %v2543 = vmul.f32 %v2488, 1.442695
        %v2544 = vpow.pop %v2543
        %v2545 = vmul.f32 %v2489, 1.442695
        %v2546 = vpow.pop %v2545
        %v2547 = vmul.f32 %v2490, 1.442695
        %v2548 = vpow.pop %v2547
        %v2549 = vmul.f32 %v2491, 1.442695
        %v2550 = vpow.pop %v2549
        %v2551 = vmul.f32 %v2492, 1.442695
        %v2552 = vpow.pop %v2551
        %v2553 = vmul.f32 %v2493, 1.442695
        %v2554 = vpow.pop %v2553
        %v2555 = vmul.f32 %v2494, 1.442695
        %v2556 = vpow.pop %v2555
        %v2557 = vmul.f32 %v2495, 1.442695
        %v2558 = vpow.pop %v2557
        %v2559 = vmul.f32 %v2496, 1.442695
        %v2560 = vpow.pop %v2559
        %v2561 = vadd.f32 %v2498, 1.0
        %v2562 = vadd.f32 %v2500, 1.0
        %v2563 = vadd.f32 %v2502, 1.0
        %v2564 = vadd.f32 %v2504, 1.0
        %v2565 = vadd.f32 %v2506, 1.0
        %v2566 = vadd.f32 %v2508, 1.0
        %v2567 = vadd.f32 %v2510, 1.0
        %v2568 = vadd.f32 %v2512, 1.0
        %v2569 = vadd.f32 %v2514, 1.0
        %v2570 = vadd.f32 %v2516, 1.0
        %v2571 = vadd.f32 %v2518, 1.0
        %v2572 = vadd.f32 %v2520, 1.0
        %v2573 = vadd.f32 %v2522, 1.0
        %v2574 = vadd.f32 %v2524, 1.0
        %v2575 = vadd.f32 %v2526, 1.0
        %v2576 = vadd.f32 %v2528, 1.0
        %v2577 = vadd.f32 %v2530, 1.0
        %v2578 = vadd.f32 %v2532, 1.0
        %v2579 = vadd.f32 %v2534, 1.0
        %v2580 = vadd.f32 %v2536, 1.0
        %v2581 = vadd.f32 %v2538, 1.0
        %v2582 = vadd.f32 %v2540, 1.0
        %v2583 = vadd.f32 %v2542, 1.0
        %v2584 = vadd.f32 %v2544, 1.0
        %v2585 = vadd.f32 %v2546, 1.0
        %v2586 = vadd.f32 %v2548, 1.0
        %v2587 = vadd.f32 %v2550, 1.0
        %v2588 = vadd.f32 %v2552, 1.0
        %v2589 = vadd.f32 %v2554, 1.0
        %v2590 = vadd.f32 %v2556, 1.0
        %v2591 = vadd.f32 %v2558, 1.0
        %v2592 = vadd.f32 %v2560, 1.0
        %v2593 = vlog2.pop %v2561
        %v2594 = vmul.f32 %v2593, 0.6931472
        %v2595 = vlog2.pop %v2562
        %v2596 = vmul.f32 %v2595, 0.6931472
        %v2597 = vlog2.pop %v2563
        %v2598 = vmul.f32 %v2597, 0.6931472
        %v2599 = vlog2.pop %v2564
        %v2600 = vmul.f32 %v2599, 0.6931472
        %v2601 = vlog2.pop %v2565
        %v2602 = vmul.f32 %v2601, 0.6931472
        %v2603 = vlog2.pop %v2566
        %v2604 = vmul.f32 %v2603, 0.6931472
        %v2605 = vlog2.pop %v2567
        %v2606 = vmul.f32 %v2605, 0.6931472
        %v2607 = vlog2.pop %v2568
        %v2608 = vmul.f32 %v2607, 0.6931472
        %v2609 = vlog2.pop %v2569
        %v2610 = vmul.f32 %v2609, 0.6931472
        %v2611 = vlog2.pop %v2570
        %v2612 = vmul.f32 %v2611, 0.6931472
        %v2613 = vlog2.pop %v2571
        %v2614 = vmul.f32 %v2613, 0.6931472
        %v2615 = vlog2.pop %v2572
        %v2616 = vmul.f32 %v2615, 0.6931472
        %v2617 = vlog2.pop %v2573
        %v2618 = vmul.f32 %v2617, 0.6931472
        %v2619 = vlog2.pop %v2574
        %v2620 = vmul.f32 %v2619, 0.6931472
        %v2621 = vlog2.pop %v2575
        %v2622 = vmul.f32 %v2621, 0.6931472
        %v2623 = vlog2.pop %v2576
        %v2624 = vmul.f32 %v2623, 0.6931472
        %v2625 = vlog2.pop %v2577
        %v2626 = vmul.f32 %v2625, 0.6931472
        %v2627 = vlog2.pop %v2578
        %v2628 = vmul.f32 %v2627, 0.6931472
        %v2629 = vlog2.pop %v2579
        %v2630 = vmul.f32 %v2629, 0.6931472
        %v2631 = vlog2.pop %v2580
        %v2632 = vmul.f32 %v2631, 0.6931472
        %v2633 = vlog2.pop %v2581
        %v2634 = vmul.f32 %v2633, 0.6931472
        %v2635 = vlog2.pop %v2582
        %v2636 = vmul.f32 %v2635, 0.6931472
        %v2637 = vlog2.pop %v2583
        %v2638 = vmul.f32 %v2637, 0.6931472
        %v2639 = vlog2.pop %v2584
        %v2640 = vmul.f32 %v2639, 0.6931472
        %v2641 = vlog2.pop %v2585
        %v2642 = vmul.f32 %v2641, 0.6931472
        %v2643 = vlog2.pop %v2586
        %v2644 = vmul.f32 %v2643, 0.6931472
        %v2645 = vlog2.pop %v2587
        %v2646 = vmul.f32 %v2645, 0.6931472
        %v2647 = vlog2.pop %v2588
        %v2648 = vmul.f32 %v2647, 0.6931472
        %v2649 = vlog2.pop %v2589
        %v2650 = vmul.f32 %v2649, 0.6931472
        %v2651 = vlog2.pop %v2590
        %v2652 = vmul.f32 %v2651, 0.6931472
        %v2653 = vlog2.pop %v2591
        %v2654 = vmul.f32 %v2653, 0.6931472
        %v2655 = vlog2.pop %v2592
        %v2656 = vmul.f32 %v2655, 0.6931472
        %v2657 = vsel %vm2433, %v2401, %v2594
        %v2658 = vsel %vm2434, %v2402, %v2596
        %v2659 = vsel %vm2435, %v2403, %v2598
        %v2660 = vsel %vm2436, %v2404, %v2600
        %v2661 = vsel %vm2437, %v2405, %v2602
        %v2662 = vsel %vm2438, %v2406, %v2604
        %v2663 = vsel %vm2439, %v2407, %v2606
        %v2664 = vsel %vm2440, %v2408, %v2608
        %v2665 = vsel %vm2441, %v2409, %v2610
        %v2666 = vsel %vm2442, %v2410, %v2612
        %v2667 = vsel %vm2443, %v2411, %v2614
        %v2668 = vsel %vm2444, %v2412, %v2616
        %v2669 = vsel %vm2445, %v2413, %v2618
        %v2670 = vsel %vm2446, %v2414, %v2620
        %v2671 = vsel %vm2447, %v2415, %v2622
        %v2672 = vsel %vm2448, %v2416, %v2624
        %v2673 = vsel %vm2449, %v2417, %v2626
        %v2674 = vsel %vm2450, %v2418, %v2628
        %v2675 = vsel %vm2451, %v2419, %v2630
        %v2676 = vsel %vm2452, %v2420, %v2632
        %v2677 = vsel %vm2453, %v2421, %v2634
        %v2678 = vsel %vm2454, %v2422, %v2636
        %v2679 = vsel %vm2455, %v2423, %v2638
        %v2680 = vsel %vm2456, %v2424, %v2640
        %v2681 = vsel %vm2457, %v2425, %v2642
        %v2682 = vsel %vm2458, %v2426, %v2644
        %v2683 = vsel %vm2459, %v2427, %v2646
        %v2684 = vsel %vm2460, %v2428, %v2648
        %v2685 = vsel %vm2461, %v2429, %v2650
        %v2686 = vsel %vm2462, %v2430, %v2652
        %v2687 = vsel %vm2463, %v2431, %v2654
        %v2688 = vsel %vm2464, %v2432, %v2656
        %2689 = vst.msk [vmem:[#allocation2] sm:$0xff] %vm2072, %v2657
        %2690 = vst.msk [vmem:[#allocation2 + $0x8] sm:$0xff] %vm2072, %v2658
        %2691 = vst.msk [vmem:[#allocation2 + $0x10] sm:$0xff] %vm2072, %v2659
        %2692 = vst.msk [vmem:[#allocation2 + $0x18] sm:$0xff] %vm2072, %v2660
        %2693 = vst.msk [vmem:[#allocation2 + $0x20] sm:$0xff] %vm2072, %v2661
        %2694 = vst.msk [vmem:[#allocation2 + $0x28] sm:$0xff] %vm2072, %v2662
        %2695 = vst.msk [vmem:[#allocation2 + $0x30] sm:$0xff] %vm2072, %v2663
        %2696 = vst.msk [vmem:[#allocation2 + $0x38] sm:$0xff] %vm2072, %v2664
        %2697 = vst.msk [vmem:[#allocation2 + $0x40] sm:$0xff] %vm2072, %v2665
        %2698 = vst.msk [vmem:[#allocation2 + $0x48] sm:$0xff] %vm2072, %v2666
        %2699 = vst.msk [vmem:[#allocation2 + $0x50] sm:$0xff] %vm2072, %v2667
        %2700 = vst.msk [vmem:[#allocation2 + $0x58] sm:$0xff] %vm2072, %v2668
        %2701 = vst.msk [vmem:[#allocation2 + $0x60] sm:$0xff] %vm2072, %v2669
        %2702 = vst.msk [vmem:[#allocation2 + $0x68] sm:$0xff] %vm2072, %v2670
        %2703 = vst.msk [vmem:[#allocation2 + $0x70] sm:$0xff] %vm2072, %v2671
        %2704 = vst.msk [vmem:[#allocation2 + $0x78] sm:$0xff] %vm2072, %v2672
        %2705 = vst.msk [vmem:[#allocation2 + $0x80] sm:$0xff] %vm2072, %v2673
        %2706 = vst.msk [vmem:[#allocation2 + $0x88] sm:$0xff] %vm2072, %v2674
        %2707 = vst.msk [vmem:[#allocation2 + $0x90] sm:$0xff] %vm2072, %v2675
        %2708 = vst.msk [vmem:[#allocation2 + $0x98] sm:$0xff] %vm2072, %v2676
        %2709 = vst.msk [vmem:[#allocation2 + $0xa0] sm:$0xff] %vm2072, %v2677
        %2710 = vst.msk [vmem:[#allocation2 + $0xa8] sm:$0xff] %vm2072, %v2678
        %2711 = vst.msk [vmem:[#allocation2 + $0xb0] sm:$0xff] %vm2072, %v2679
        %2712 = vst.msk [vmem:[#allocation2 + $0xb8] sm:$0xff] %vm2072, %v2680
        %2713 = vst.msk [vmem:[#allocation2 + $0xc0] sm:$0xff] %vm2072, %v2681
        %2714 = vst.msk [vmem:[#allocation2 + $0xc8] sm:$0xff] %vm2072, %v2682
        %2715 = vst.msk [vmem:[#allocation2 + $0xd0] sm:$0xff] %vm2072, %v2683
        %2716 = vst.msk [vmem:[#allocation2 + $0xd8] sm:$0xff] %vm2072, %v2684
        %2717 = vst.msk [vmem:[#allocation2 + $0xe0] sm:$0xff] %vm2072, %v2685
        %2718 = vst.msk [vmem:[#allocation2 + $0xe8] sm:$0xff] %vm2072, %v2686
        %2719 = vst.msk [vmem:[#allocation2 + $0xf0] sm:$0xff] %vm2072, %v2687
        %2720 = vst.msk [vmem:[#allocation2 + $0xf8] sm:$0xff] %vm2072, %v2688
        %v2721 = vmul.f32 %v2657, %v2032
        %v2722 = vmul.f32 %v2658, %v2033
        %v2723 = vmul.f32 %v2659, %v2034
        %v2724 = vmul.f32 %v2660, %v2035
        %v2725 = vmul.f32 %v2661, %v2036
        %v2726 = vmul.f32 %v2662, %v2037
        %v2727 = vmul.f32 %v2663, %v2038
        %v2728 = vmul.f32 %v2664, %v2039
        %v2729 = vmul.f32 %v2665, %v2040
        %v2730 = vmul.f32 %v2666, %v2041
        %v2731 = vmul.f32 %v2667, %v2042
        %v2732 = vmul.f32 %v2668, %v2043
        %v2733 = vmul.f32 %v2669, %v2044
        %v2734 = vmul.f32 %v2670, %v2045
        %v2735 = vmul.f32 %v2671, %v2046
        %v2736 = vmul.f32 %v2672, %v2047
        %v2737 = vmul.f32 %v2673, %v2048
        %v2738 = vmul.f32 %v2674, %v2049
        %v2739 = vmul.f32 %v2675, %v2050
        %v2740 = vmul.f32 %v2676, %v2051
        %v2741 = vmul.f32 %v2677, %v2052
        %v2742 = vmul.f32 %v2678, %v2053
        %v2743 = vmul.f32 %v2679, %v2054
        %v2744 = vmul.f32 %v2680, %v2055
        %v2745 = vmul.f32 %v2681, %v2056
        %v2746 = vmul.f32 %v2682, %v2057
        %v2747 = vmul.f32 %v2683, %v2058
        %v2748 = vmul.f32 %v2684, %v2059
        %v2749 = vmul.f32 %v2685, %v2060
        %v2750 = vmul.f32 %v2686, %v2061
        %v2751 = vmul.f32 %v2687, %v2062
        %v2752 = vmul.f32 %v2688, %v2063
        %2753 = vst.msk [vmem:[#allocation3] sm:$0xff] %vm2072, %v2721
        %2754 = vst.msk [vmem:[#allocation3 + $0x8] sm:$0xff] %vm2072, %v2722
        %2755 = vst.msk [vmem:[#allocation3 + $0x10] sm:$0xff] %vm2072, %v2723
        %2756 = vst.msk [vmem:[#allocation3 + $0x18] sm:$0xff] %vm2072, %v2724
        %2757 = vst.msk [vmem:[#allocation3 + $0x20] sm:$0xff] %vm2072, %v2725
        %2758 = vst.msk [vmem:[#allocation3 + $0x28] sm:$0xff] %vm2072, %v2726
        %2759 = vst.msk [vmem:[#allocation3 + $0x30] sm:$0xff] %vm2072, %v2727
        %2760 = vst.msk [vmem:[#allocation3 + $0x38] sm:$0xff] %vm2072, %v2728
        %2761 = vst.msk [vmem:[#allocation3 + $0x40] sm:$0xff] %vm2072, %v2729
        %2762 = vst.msk [vmem:[#allocation3 + $0x48] sm:$0xff] %vm2072, %v2730
        %2763 = vst.msk [vmem:[#allocation3 + $0x50] sm:$0xff] %vm2072, %v2731
        %2764 = vst.msk [vmem:[#allocation3 + $0x58] sm:$0xff] %vm2072, %v2732
        %2765 = vst.msk [vmem:[#allocation3 + $0x60] sm:$0xff] %vm2072, %v2733
        %2766 = vst.msk [vmem:[#allocation3 + $0x68] sm:$0xff] %vm2072, %v2734
        %2767 = vst.msk [vmem:[#allocation3 + $0x70] sm:$0xff] %vm2072, %v2735
        %2768 = vst.msk [vmem:[#allocation3 + $0x78] sm:$0xff] %vm2072, %v2736
        %2769 = vst.msk [vmem:[#allocation3 + $0x80] sm:$0xff] %vm2072, %v2737
        %2770 = vst.msk [vmem:[#allocation3 + $0x88] sm:$0xff] %vm2072, %v2738
        %2771 = vst.msk [vmem:[#allocation3 + $0x90] sm:$0xff] %vm2072, %v2739
        %2772 = vst.msk [vmem:[#allocation3 + $0x98] sm:$0xff] %vm2072, %v2740
        %2773 = vst.msk [vmem:[#allocation3 + $0xa0] sm:$0xff] %vm2072, %v2741
        %2774 = vst.msk [vmem:[#allocation3 + $0xa8] sm:$0xff] %vm2072, %v2742
        %2775 = vst.msk [vmem:[#allocation3 + $0xb0] sm:$0xff] %vm2072, %v2743
        %2776 = vst.msk [vmem:[#allocation3 + $0xb8] sm:$0xff] %vm2072, %v2744
        %2777 = vst.msk [vmem:[#allocation3 + $0xc0] sm:$0xff] %vm2072, %v2745
        %2778 = vst.msk [vmem:[#allocation3 + $0xc8] sm:$0xff] %vm2072, %v2746
        %2779 = vst.msk [vmem:[#allocation3 + $0xd0] sm:$0xff] %vm2072, %v2747
        %2780 = vst.msk [vmem:[#allocation3 + $0xd8] sm:$0xff] %vm2072, %v2748
        %2781 = vst.msk [vmem:[#allocation3 + $0xe0] sm:$0xff] %vm2072, %v2749
        %2782 = vst.msk [vmem:[#allocation3 + $0xe8] sm:$0xff] %vm2072, %v2750
        %2783 = vst.msk [vmem:[#allocation3 + $0xf0] sm:$0xff] %vm2072, %v2751
        %2784 = vst.msk [vmem:[#allocation3 + $0xf8] sm:$0xff] %vm2072, %v2752
        %2817 = vrot.lane.b32.xlu0 %v2236, 64
        %v2818 = vpop.permute.xlu0 %2817
        %2819 = vrot.lane.b32.xlu0 %v2241, 64
        %v2820 = vpop.permute.xlu0 %2819
        %2821 = vrot.lane.b32.xlu0 %v2246, 64
        %v2822 = vpop.permute.xlu0 %2821
        %2823 = vrot.lane.b32.xlu0 %v2251, 64
        %v2824 = vpop.permute.xlu0 %2823
        %2825 = vrot.lane.b32.xlu0 %v2256, 64
        %v2826 = vpop.permute.xlu0 %2825
        %2827 = vrot.lane.b32.xlu0 %v2261, 64
        %v2828 = vpop.permute.xlu0 %2827
        %2829 = vrot.lane.b32.xlu0 %v2266, 64
        %v2830 = vpop.permute.xlu0 %2829
        %2831 = vrot.lane.b32.xlu0 %v2271, 64
        %v2832 = vpop.permute.xlu0 %2831
        %2833 = vrot.lane.b32.xlu0 %v2276, 64
        %v2834 = vpop.permute.xlu0 %2833
        %2835 = vrot.lane.b32.xlu0 %v2281, 64
        %v2836 = vpop.permute.xlu0 %2835
        %2837 = vrot.lane.b32.xlu0 %v2286, 64
        %v2838 = vpop.permute.xlu0 %2837
        %2839 = vrot.lane.b32.xlu0 %v2291, 64
        %v2840 = vpop.permute.xlu0 %2839
        %2841 = vrot.lane.b32.xlu0 %v2296, 64
        %v2842 = vpop.permute.xlu0 %2841
        %2843 = vrot.lane.b32.xlu0 %v2301, 64
        %v2844 = vpop.permute.xlu0 %2843
        %2845 = vrot.lane.b32.xlu0 %v2306, 64
        %v2846 = vpop.permute.xlu0 %2845
        %2847 = vrot.lane.b32.xlu0 %v2311, 64
        %v2848 = vpop.permute.xlu0 %2847
        %2849 = vrot.lane.b32.xlu0 %v2316, 64
        %v2850 = vpop.permute.xlu0 %2849
        %2851 = vrot.lane.b32.xlu0 %v2321, 64
        %v2852 = vpop.permute.xlu0 %2851
        %2853 = vrot.lane.b32.xlu0 %v2326, 64
        %v2854 = vpop.permute.xlu0 %2853
        %2855 = vrot.lane.b32.xlu0 %v2331, 64
        %v2856 = vpop.permute.xlu0 %2855
        %2857 = vrot.lane.b32.xlu0 %v2336, 64
        %v2858 = vpop.permute.xlu0 %2857
        %2859 = vrot.lane.b32.xlu0 %v2341, 64
        %v2860 = vpop.permute.xlu0 %2859
        %2861 = vrot.lane.b32.xlu0 %v2346, 64
        %v2862 = vpop.permute.xlu0 %2861
        %2863 = vrot.lane.b32.xlu0 %v2351, 64
        %v2864 = vpop.permute.xlu0 %2863
        %2865 = vrot.lane.b32.xlu0 %v2356, 64
        %v2866 = vpop.permute.xlu0 %2865
        %2867 = vrot.lane.b32.xlu0 %v2361, 64
        %v2868 = vpop.permute.xlu0 %2867
        %2869 = vrot.lane.b32.xlu0 %v2366, 64
        %v2870 = vpop.permute.xlu0 %2869
        %2871 = vrot.lane.b32.xlu0 %v2371, 64
        %v2872 = vpop.permute.xlu0 %2871
        %2873 = vrot.lane.b32.xlu0 %v2376, 64
        %v2874 = vpop.permute.xlu0 %2873
        %2875 = vrot.lane.b32.xlu0 %v2381, 64
        %v2876 = vpop.permute.xlu0 %2875
        %2877 = vrot.lane.b32.xlu0 %v2386, 64
        %v2878 = vpop.permute.xlu0 %2877
        %2879 = vrot.lane.b32.xlu0 %v2391, 64
        %v2880 = vpop.permute.xlu0 %2879
        %2913 = vst.msk [vmem:[#allocation4] sm:$0xff] %vm390, %v2818
        %2914 = vst.msk [vmem:[#allocation4 + $0x8] sm:$0xff] %vm390, %v2820
        %2915 = vst.msk [vmem:[#allocation4 + $0x10] sm:$0xff] %vm390, %v2822
        %2916 = vst.msk [vmem:[#allocation4 + $0x18] sm:$0xff] %vm390, %v2824
        %2917 = vst.msk [vmem:[#allocation4 + $0x20] sm:$0xff] %vm390, %v2826
        %2918 = vst.msk [vmem:[#allocation4 + $0x28] sm:$0xff] %vm390, %v2828
        %2919 = vst.msk [vmem:[#allocation4 + $0x30] sm:$0xff] %vm390, %v2830
        %2920 = vst.msk [vmem:[#allocation4 + $0x38] sm:$0xff] %vm390, %v2832
        %2921 = vst.msk [vmem:[#allocation4 + $0x40] sm:$0xff] %vm390, %v2834
        %2922 = vst.msk [vmem:[#allocation4 + $0x48] sm:$0xff] %vm390, %v2836
        %2923 = vst.msk [vmem:[#allocation4 + $0x50] sm:$0xff] %vm390, %v2838
        %2924 = vst.msk [vmem:[#allocation4 + $0x58] sm:$0xff] %vm390, %v2840
        %2925 = vst.msk [vmem:[#allocation4 + $0x60] sm:$0xff] %vm390, %v2842
        %2926 = vst.msk [vmem:[#allocation4 + $0x68] sm:$0xff] %vm390, %v2844
        %2927 = vst.msk [vmem:[#allocation4 + $0x70] sm:$0xff] %vm390, %v2846
        %2928 = vst.msk [vmem:[#allocation4 + $0x78] sm:$0xff] %vm390, %v2848
        %2929 = vst.msk [vmem:[#allocation4 + $0x80] sm:$0xff] %vm390, %v2850
        %2930 = vst.msk [vmem:[#allocation4 + $0x88] sm:$0xff] %vm390, %v2852
        %2931 = vst.msk [vmem:[#allocation4 + $0x90] sm:$0xff] %vm390, %v2854
        %2932 = vst.msk [vmem:[#allocation4 + $0x98] sm:$0xff] %vm390, %v2856
        %2933 = vst.msk [vmem:[#allocation4 + $0xa0] sm:$0xff] %vm390, %v2858
        %2934 = vst.msk [vmem:[#allocation4 + $0xa8] sm:$0xff] %vm390, %v2860
        %2935 = vst.msk [vmem:[#allocation4 + $0xb0] sm:$0xff] %vm390, %v2862
        %2936 = vst.msk [vmem:[#allocation4 + $0xb8] sm:$0xff] %vm390, %v2864
        %2937 = vst.msk [vmem:[#allocation4 + $0xc0] sm:$0xff] %vm390, %v2866
        %2938 = vst.msk [vmem:[#allocation4 + $0xc8] sm:$0xff] %vm390, %v2868
        %2939 = vst.msk [vmem:[#allocation4 + $0xd0] sm:$0xff] %vm390, %v2870
        %2940 = vst.msk [vmem:[#allocation4 + $0xd8] sm:$0xff] %vm390, %v2872
        %2941 = vst.msk [vmem:[#allocation4 + $0xe0] sm:$0xff] %vm390, %v2874
        %2942 = vst.msk [vmem:[#allocation4 + $0xe8] sm:$0xff] %vm390, %v2876
        %2943 = vst.msk [vmem:[#allocation4 + $0xf0] sm:$0xff] %vm390, %v2878
        %2944 = vst.msk [vmem:[#allocation4 + $0xf8] sm:$0xff] %vm390, %v2880
        %v2945 = vld [vmem:[%s7] sm:$0xff]
        %v2946 = vld [vmem:[%s7 + $0x8] sm:$0xff]
        loop: start=0, step=1, limit=32
        $region61: #{tpu_custom_call.1} parent=59 // loop_pre_header
          _
        $region62: #{tpu_custom_call.1} parent=59 // loop_header
          %s2948 = sphi 0, %s2952
          %p2949 = scmp.ge.s32.totalorder %s2948, 32
          %v2953 = vphi 0.0, %v3493
        $region63: #{tpu_custom_call.1} parent=59 // loop_header_branch
          %2951 = sbr.rel (%p2949) target = $region67
        $region64: #{tpu_custom_call.1} parent=59 // loop_body
          %s2954 = smul.u32 %s2948, 8
          %s2955 = scalar_lea.vmem [#allocation2], %s2954
          %v2956 = vld [vmem:[%s2955] sm:$0xff]
          %s2957 = scalar_lea.vmem [#allocation3], %s2954
          %v2958 = vld [vmem:[%s2957] sm:$0xff]
          %s2959 = scalar_lea.vmem [#allocation4], %s2954
          %v2960 = vld [vmem:[%s2959] sm:$0xff]
          %v2962 = vcombine.high %v2956, %v2956
          %v2964 = vunpack.c.l.s4 1966171168
          %v2965 = vunpack.c.0.s8 %v2964
          %v2966 = vlaneseq
          %v2967 = vshrl.u32 %v2966, 7
          %v2968 = vsub.s32 %v2965, %v2967
          %v2969 = vrot.slane %v2956, %v2968
          %v2971 = vunpack.c.l.s4 1966171168
          %v2972 = vunpack.c.0.s8 %v2971
          %v2973 = vlaneseq
          %v2974 = vshrl.u32 %v2973, 7
          %v2975 = vsub.s32 %v2972, %v2974
          %v2976 = vrot.slane %v2962, %v2975
          %v2977 = vcombine.high %v2969, %v2969
          %v2978 = vcombine.high %v2976, %v2976
          %v2980 = vunpack.c.l.s4 1966171168
          %v2981 = vunpack.c.0.s8 %v2980
          %v2982 = vlaneseq
          %v2983 = vshrl.u32 %v2982, 7
          %v2984 = vsub.s32 %v2981, %v2983
          %v2985 = vrot.slane %v2969, %v2984
          %v2987 = vunpack.c.l.s4 1966171168
          %v2988 = vunpack.c.0.s8 %v2987
          %v2989 = vlaneseq
          %v2990 = vshrl.u32 %v2989, 7
          %v2991 = vsub.s32 %v2988, %v2990
          %v2992 = vrot.slane %v2976, %v2991
          %v2994 = vunpack.c.l.s4 1966171168
          %v2995 = vunpack.c.0.s8 %v2994
          %v2996 = vlaneseq
          %v2997 = vshrl.u32 %v2996, 7
          %v2998 = vsub.s32 %v2995, %v2997
          %v2999 = vrot.slane %v2977, %v2998
          %v3001 = vunpack.c.l.s4 1966171168
          %v3002 = vunpack.c.0.s8 %v3001
          %v3003 = vlaneseq
          %v3004 = vshrl.u32 %v3003, 7
          %v3005 = vsub.s32 %v3002, %v3004
          %v3006 = vrot.slane %v2978, %v3005
          %v3007 = vcombine.high %v2985, %v2985
          %v3008 = vcombine.high %v2992, %v2992
          %v3009 = vcombine.high %v2999, %v2999
          %v3010 = vcombine.high %v3006, %v3006
          %v3011 = vlaneseq
          %v3012 = vshrl.u32 %v3011, 7
          %v3013 = vsub.s32 0, %v3012
          %v3014 = vrot.slane %v2985, %v3013
          %v3015 = vlaneseq
          %v3016 = vshrl.u32 %v3015, 7
          %v3017 = vsub.s32 0, %v3016
          %v3018 = vrot.slane %v2999, %v3017
          %v3019 = vlaneseq
          %v3020 = vshrl.u32 %v3019, 7
          %v3021 = vsub.s32 0, %v3020
          %v3022 = vrot.slane %v3007, %v3021
          %v3023 = vlaneseq
          %v3024 = vshrl.u32 %v3023, 7
          %v3025 = vsub.s32 0, %v3024
          %v3026 = vrot.slane %v3009, %v3025
          %v3027 = vlaneseq
          %v3028 = vshrl.u32 %v3027, 7
          %v3029 = vsub.s32 0, %v3028
          %v3030 = vrot.slane %v2992, %v3029
          %v3031 = vlaneseq
          %v3032 = vshrl.u32 %v3031, 7
          %v3033 = vsub.s32 0, %v3032
          %v3034 = vrot.slane %v3006, %v3033
          %v3035 = vlaneseq
          %v3036 = vshrl.u32 %v3035, 7
          %v3037 = vsub.s32 0, %v3036
          %v3038 = vrot.slane %v3008, %v3037
          %v3039 = vlaneseq
          %v3040 = vshrl.u32 %v3039, 7
          %v3041 = vsub.s32 0, %v3040
          %v3042 = vrot.slane %v3010, %v3041
          %v3051 = vmul.f32 %v3014, %v2945
          %v3052 = vmul.f32 %v3018, %v2945
          %v3053 = vmul.f32 %v3022, %v2945
          %v3054 = vmul.f32 %v3026, %v2945
          %v3055 = vmul.f32 %v3030, %v2945
          %v3056 = vmul.f32 %v3034, %v2945
          %v3057 = vmul.f32 %v3038, %v2945
          %v3058 = vmul.f32 %v3042, %v2945
          %v3059 = vmul.f32 %v3014, %v2946
          %v3060 = vmul.f32 %v3018, %v2946
          %v3061 = vmul.f32 %v3022, %v2946
          %v3062 = vmul.f32 %v3026, %v2946
          %v3063 = vmul.f32 %v3030, %v2946
          %v3064 = vmul.f32 %v3034, %v2946
          %v3065 = vmul.f32 %v3038, %v2946
          %v3066 = vmul.f32 %v3042, %v2946
          %3075 = vrot.lane.b32.xlu0 %v3059, 64
          %v3076 = vpop.permute.xlu0 %3075
          %3077 = vrot.lane.b32.xlu0 %v3060, 64
          %v3078 = vpop.permute.xlu0 %3077
          %3079 = vrot.lane.b32.xlu0 %v3061, 64
          %v3080 = vpop.permute.xlu0 %3079
          %3081 = vrot.lane.b32.xlu0 %v3062, 64
          %v3082 = vpop.permute.xlu0 %3081
          %3083 = vrot.lane.b32.xlu0 %v3063, 64
          %v3084 = vpop.permute.xlu0 %3083
          %3085 = vrot.lane.b32.xlu0 %v3064, 64
          %v3086 = vpop.permute.xlu0 %3085
          %3087 = vrot.lane.b32.xlu0 %v3065, 64
          %v3088 = vpop.permute.xlu0 %3087
          %3089 = vrot.lane.b32.xlu0 %v3066, 64
          %v3090 = vpop.permute.xlu0 %3089
          %v3099 = vsel %vm2072, %v3051, %v3076
          %v3100 = vsel %vm2072, %v3052, %v3078
          %v3101 = vsel %vm2072, %v3053, %v3080
          %v3102 = vsel %vm2072, %v3054, %v3082
          %v3103 = vsel %vm2072, %v3055, %v3084
          %v3104 = vsel %vm2072, %v3056, %v3086
          %v3105 = vsel %vm2072, %v3057, %v3088
          %v3106 = vsel %vm2072, %v3058, %v3090
          %v3107 = vmul.f32 %v3099, 1.442695
          %v3108 = vpow.pop %v3107
          %v3109 = vmul.f32 %v3100, 1.442695
          %v3110 = vpow.pop %v3109
          %v3111 = vmul.f32 %v3101, 1.442695
          %v3112 = vpow.pop %v3111
          %v3113 = vmul.f32 %v3102, 1.442695
          %v3114 = vpow.pop %v3113
          %v3115 = vmul.f32 %v3103, 1.442695
          %v3116 = vpow.pop %v3115
          %v3117 = vmul.f32 %v3104, 1.442695
          %v3118 = vpow.pop %v3117
          %v3119 = vmul.f32 %v3105, 1.442695
          %v3120 = vpow.pop %v3119
          %v3121 = vmul.f32 %v3106, 1.442695
          %v3122 = vpow.pop %v3121
          %v3124 = vcombine.high %v2958, %v2958
          %v3126 = vunpack.c.l.s4 1966171168
          %v3127 = vunpack.c.0.s8 %v3126
          %v3128 = vlaneseq
          %v3129 = vshrl.u32 %v3128, 7
          %v3130 = vsub.s32 %v3127, %v3129
          %v3131 = vrot.slane %v2958, %v3130
          %v3133 = vunpack.c.l.s4 1966171168
          %v3134 = vunpack.c.0.s8 %v3133
          %v3135 = vlaneseq
          %v3136 = vshrl.u32 %v3135, 7
          %v3137 = vsub.s32 %v3134, %v3136
          %v3138 = vrot.slane %v3124, %v3137
          %v3139 = vcombine.high %v3131, %v3131
          %v3140 = vcombine.high %v3138, %v3138
          %v3142 = vunpack.c.l.s4 1966171168
          %v3143 = vunpack.c.0.s8 %v3142
          %v3144 = vlaneseq
          %v3145 = vshrl.u32 %v3144, 7
          %v3146 = vsub.s32 %v3143, %v3145
          %v3147 = vrot.slane %v3131, %v3146
          %v3149 = vunpack.c.l.s4 1966171168
          %v3150 = vunpack.c.0.s8 %v3149
          %v3151 = vlaneseq
          %v3152 = vshrl.u32 %v3151, 7
          %v3153 = vsub.s32 %v3150, %v3152
          %v3154 = vrot.slane %v3138, %v3153
          %v3156 = vunpack.c.l.s4 1966171168
          %v3157 = vunpack.c.0.s8 %v3156
          %v3158 = vlaneseq
          %v3159 = vshrl.u32 %v3158, 7
          %v3160 = vsub.s32 %v3157, %v3159
          %v3161 = vrot.slane %v3139, %v3160
          %v3163 = vunpack.c.l.s4 1966171168
          %v3164 = vunpack.c.0.s8 %v3163
          %v3165 = vlaneseq
          %v3166 = vshrl.u32 %v3165, 7
          %v3167 = vsub.s32 %v3164, %v3166
          %v3168 = vrot.slane %v3140, %v3167
          %v3169 = vcombine.high %v3147, %v3147
          %v3170 = vcombine.high %v3154, %v3154
          %v3171 = vcombine.high %v3161, %v3161
          %v3172 = vcombine.high %v3168, %v3168
          %v3173 = vlaneseq
          %v3174 = vshrl.u32 %v3173, 7
          %v3175 = vsub.s32 0, %v3174
          %v3176 = vrot.slane %v2960, %v3175
          %3178 = vbcast.lane.b32.xlu0 %v3176, 256
          %v3179 = vpop.permute.xlu0 %3178
          %v3180 = vlaneseq
          %v3181 = vshrl.u32 %v3180, 7
          %v3182 = vsub.s32 1, %v3181
          %v3183 = vrot.slane %v2960, %v3182
          %3185 = vbcast.lane.b32.xlu0 %v3183, 256
          %v3186 = vpop.permute.xlu0 %3185
          %v3187 = vlaneseq
          %v3188 = vshrl.u32 %v3187, 7
          %v3189 = vsub.s32 2, %v3188
          %v3190 = vrot.slane %v2960, %v3189
          %3192 = vbcast.lane.b32.xlu0 %v3190, 256
          %v3193 = vpop.permute.xlu0 %3192
          %v3194 = vlaneseq
          %v3195 = vshrl.u32 %v3194, 7
          %v3196 = vsub.s32 3, %v3195
          %v3197 = vrot.slane %v2960, %v3196
          %3199 = vbcast.lane.b32.xlu0 %v3197, 256
          %v3200 = vpop.permute.xlu0 %3199
          %v3201 = vlaneseq
          %v3202 = vshrl.u32 %v3201, 7
          %v3203 = vsub.s32 4, %v3202
          %v3204 = vrot.slane %v2960, %v3203
          %3206 = vbcast.lane.b32.xlu0 %v3204, 256
          %v3207 = vpop.permute.xlu0 %3206
          %v3208 = vlaneseq
          %v3209 = vshrl.u32 %v3208, 7
          %v3210 = vsub.s32 5, %v3209
          %v3211 = vrot.slane %v2960, %v3210
          %3213 = vbcast.lane.b32.xlu0 %v3211, 256
          %v3214 = vpop.permute.xlu0 %3213
          %v3215 = vlaneseq
          %v3216 = vshrl.u32 %v3215, 7
          %v3217 = vsub.s32 6, %v3216
          %v3218 = vrot.slane %v2960, %v3217
          %3220 = vbcast.lane.b32.xlu0 %v3218, 256
          %v3221 = vpop.permute.xlu0 %3220
          %v3222 = vlaneseq
          %v3223 = vshrl.u32 %v3222, 7
          %v3224 = vsub.s32 7, %v3223
          %v3225 = vrot.slane %v2960, %v3224
          %3227 = vbcast.lane.b32.xlu0 %v3225, 256
          %v3228 = vpop.permute.xlu0 %3227
          %v3229 = vlaneseq
          %v3230 = vshrl.u32 %v3229, 7
          %v3231 = vsub.s32 0, %v3230
          %v3232 = vrot.slane %v3147, %v3231
          %v3233 = vlaneseq
          %v3234 = vshrl.u32 %v3233, 7
          %v3235 = vsub.s32 0, %v3234
          %v3236 = vrot.slane %v3161, %v3235
          %v3237 = vlaneseq
          %v3238 = vshrl.u32 %v3237, 7
          %v3239 = vsub.s32 0, %v3238
          %v3240 = vrot.slane %v3169, %v3239
          %v3241 = vlaneseq
          %v3242 = vshrl.u32 %v3241, 7
          %v3243 = vsub.s32 0, %v3242
          %v3244 = vrot.slane %v3171, %v3243
          %v3245 = vlaneseq
          %v3246 = vshrl.u32 %v3245, 7
          %v3247 = vsub.s32 0, %v3246
          %v3248 = vrot.slane %v3154, %v3247
          %v3249 = vlaneseq
          %v3250 = vshrl.u32 %v3249, 7
          %v3251 = vsub.s32 0, %v3250
          %v3252 = vrot.slane %v3168, %v3251
          %v3253 = vlaneseq
          %v3254 = vshrl.u32 %v3253, 7
          %v3255 = vsub.s32 0, %v3254
          %v3256 = vrot.slane %v3170, %v3255
          %v3257 = vlaneseq
          %v3258 = vshrl.u32 %v3257, 7
          %v3259 = vsub.s32 0, %v3258
          %v3260 = vrot.slane %v3172, %v3259
          %v3269 = vmul.f32 %v3232, %v3179
          %v3270 = vmul.f32 %v3236, %v3186
          %v3271 = vmul.f32 %v3240, %v3193
          %v3272 = vmul.f32 %v3244, %v3200
          %v3273 = vmul.f32 %v3248, %v3207
          %v3274 = vmul.f32 %v3252, %v3214
          %v3275 = vmul.f32 %v3256, %v3221
          %v3276 = vmul.f32 %v3260, %v3228
          %s3278 = sor.u32 256, 8
          %3279 = vbcast.lane.b32.xlu0 %v3176, %s3278
          %v3280 = vpop.permute.xlu0 %3279
          %s3282 = sor.u32 256, 8
          %3283 = vbcast.lane.b32.xlu0 %v3183, %s3282
          %v3284 = vpop.permute.xlu0 %3283
          %s3286 = sor.u32 256, 8
          %3287 = vbcast.lane.b32.xlu0 %v3190, %s3286
          %v3288 = vpop.permute.xlu0 %3287
          %s3290 = sor.u32 256, 8
          %3291 = vbcast.lane.b32.xlu0 %v3197, %s3290
          %v3292 = vpop.permute.xlu0 %3291
          %s3294 = sor.u32 256, 8
          %3295 = vbcast.lane.b32.xlu0 %v3204, %s3294
          %v3296 = vpop.permute.xlu0 %3295
          %s3298 = sor.u32 256, 8
          %3299 = vbcast.lane.b32.xlu0 %v3211, %s3298
          %v3300 = vpop.permute.xlu0 %3299
          %s3302 = sor.u32 256, 8
          %3303 = vbcast.lane.b32.xlu0 %v3218, %s3302
          %v3304 = vpop.permute.xlu0 %3303
          %s3306 = sor.u32 256, 8
          %3307 = vbcast.lane.b32.xlu0 %v3225, %s3306
          %v3308 = vpop.permute.xlu0 %3307
          %v3309 = vmul.f32 %v3232, %v3280
          %v3310 = vmul.f32 %v3236, %v3284
          %v3311 = vmul.f32 %v3240, %v3288
          %v3312 = vmul.f32 %v3244, %v3292
          %v3313 = vmul.f32 %v3248, %v3296
          %v3314 = vmul.f32 %v3252, %v3300
          %v3315 = vmul.f32 %v3256, %v3304
          %v3316 = vmul.f32 %v3260, %v3308
          %3325 = vrot.lane.b32.xlu0 %v3309, 64
          %v3326 = vpop.permute.xlu0 %3325
          %3327 = vrot.lane.b32.xlu0 %v3310, 64
          %v3328 = vpop.permute.xlu0 %3327
          %3329 = vrot.lane.b32.xlu0 %v3311, 64
          %v3330 = vpop.permute.xlu0 %3329
          %3331 = vrot.lane.b32.xlu0 %v3312, 64
          %v3332 = vpop.permute.xlu0 %3331
          %3333 = vrot.lane.b32.xlu0 %v3313, 64
          %v3334 = vpop.permute.xlu0 %3333
          %3335 = vrot.lane.b32.xlu0 %v3314, 64
          %v3336 = vpop.permute.xlu0 %3335
          %3337 = vrot.lane.b32.xlu0 %v3315, 64
          %v3338 = vpop.permute.xlu0 %3337
          %3339 = vrot.lane.b32.xlu0 %v3316, 64
          %v3340 = vpop.permute.xlu0 %3339
          %v3349 = vsel %vm2072, %v3269, %v3326
          %v3350 = vsel %vm2072, %v3270, %v3328
          %v3351 = vsel %vm2072, %v3271, %v3330
          %v3352 = vsel %vm2072, %v3272, %v3332
          %v3353 = vsel %vm2072, %v3273, %v3334
          %v3354 = vsel %vm2072, %v3274, %v3336
          %v3355 = vsel %vm2072, %v3275, %v3338
          %v3356 = vsel %vm2072, %v3276, %v3340
          %s3358 = sor.u32 256, 16
          %3359 = vbcast.lane.b32.xlu0 %v3176, %s3358
          %v3360 = vpop.permute.xlu0 %3359
          %s3362 = sor.u32 256, 16
          %3363 = vbcast.lane.b32.xlu0 %v3183, %s3362
          %v3364 = vpop.permute.xlu0 %3363
          %s3366 = sor.u32 256, 16
          %3367 = vbcast.lane.b32.xlu0 %v3190, %s3366
          %v3368 = vpop.permute.xlu0 %3367
          %s3370 = sor.u32 256, 16
          %3371 = vbcast.lane.b32.xlu0 %v3197, %s3370
          %v3372 = vpop.permute.xlu0 %3371
          %s3374 = sor.u32 256, 16
          %3375 = vbcast.lane.b32.xlu0 %v3204, %s3374
          %v3376 = vpop.permute.xlu0 %3375
          %s3378 = sor.u32 256, 16
          %3379 = vbcast.lane.b32.xlu0 %v3211, %s3378
          %v3380 = vpop.permute.xlu0 %3379
          %s3382 = sor.u32 256, 16
          %3383 = vbcast.lane.b32.xlu0 %v3218, %s3382
          %v3384 = vpop.permute.xlu0 %3383
          %s3386 = sor.u32 256, 16
          %3387 = vbcast.lane.b32.xlu0 %v3225, %s3386
          %v3388 = vpop.permute.xlu0 %3387
          %s3390 = sor.u32 256, 24
          %3391 = vbcast.lane.b32.xlu0 %v3176, %s3390
          %v3392 = vpop.permute.xlu0 %3391
          %s3394 = sor.u32 256, 24
          %3395 = vbcast.lane.b32.xlu0 %v3183, %s3394
          %v3396 = vpop.permute.xlu0 %3395
          %s3398 = sor.u32 256, 24
          %3399 = vbcast.lane.b32.xlu0 %v3190, %s3398
          %v3400 = vpop.permute.xlu0 %3399
          %s3402 = sor.u32 256, 24
          %3403 = vbcast.lane.b32.xlu0 %v3197, %s3402
          %v3404 = vpop.permute.xlu0 %3403
          %s3406 = sor.u32 256, 24
          %3407 = vbcast.lane.b32.xlu0 %v3204, %s3406
          %v3408 = vpop.permute.xlu0 %3407
          %s3410 = sor.u32 256, 24
          %3411 = vbcast.lane.b32.xlu0 %v3211, %s3410
          %v3412 = vpop.permute.xlu0 %3411
          %s3414 = sor.u32 256, 24
          %3415 = vbcast.lane.b32.xlu0 %v3218, %s3414
          %v3416 = vpop.permute.xlu0 %3415
          %s3418 = sor.u32 256, 24
          %3419 = vbcast.lane.b32.xlu0 %v3225, %s3418
          %v3420 = vpop.permute.xlu0 %3419
          %v3421 = vsel %vm2072, %v3360, %v3392
          %v3422 = vsel %vm2072, %v3364, %v3396
          %v3423 = vsel %vm2072, %v3368, %v3400
          %v3424 = vsel %vm2072, %v3372, %v3404
          %v3425 = vsel %vm2072, %v3376, %v3408
          %v3426 = vsel %vm2072, %v3380, %v3412
          %v3427 = vsel %vm2072, %v3384, %v3416
          %v3428 = vsel %vm2072, %v3388, %v3420
          %v3429 = vmul.f32 %v3108, %v2953
          %v3430 = vadd.f32 %v3429, %v3349
          %v3431 = vmul.f32 %v3430, %v3421
          %v3432 = vrot.slane %v3431, 4
          %v3433 = vadd.f32 %v3431, %v3432
          %v3434 = vrot.slane %v3433, 2
          %v3435 = vadd.f32 %v3433, %v3434
          %v3436 = vrot.slane %v3435, 1
          %v3437 = vadd.f32 %v3435, %v3436
          %v3438 = vmul.f32 %v3110, %v3430
          %v3439 = vadd.f32 %v3438, %v3350
          %v3440 = vmul.f32 %v3439, %v3422
          %v3441 = vrot.slane %v3440, 4
          %v3442 = vadd.f32 %v3440, %v3441
          %v3443 = vrot.slane %v3442, 2
          %v3444 = vadd.f32 %v3442, %v3443
          %v3445 = vrot.slane %v3444, 1
          %v3446 = vadd.f32 %v3444, %v3445
          %v3447 = vmul.f32 %v3112, %v3439
          %v3448 = vadd.f32 %v3447, %v3351
          %v3449 = vmul.f32 %v3448, %v3423
          %v3450 = vrot.slane %v3449, 4
          %v3451 = vadd.f32 %v3449, %v3450
          %v3452 = vrot.slane %v3451, 2
          %v3453 = vadd.f32 %v3451, %v3452
          %v3454 = vrot.slane %v3453, 1
          %v3455 = vadd.f32 %v3453, %v3454
          %v3456 = vmul.f32 %v3114, %v3448
          %v3457 = vadd.f32 %v3456, %v3352
          %v3458 = vmul.f32 %v3457, %v3424
          %v3459 = vrot.slane %v3458, 4
          %v3460 = vadd.f32 %v3458, %v3459
          %v3461 = vrot.slane %v3460, 2
          %v3462 = vadd.f32 %v3460, %v3461
          %v3463 = vrot.slane %v3462, 1
          %v3464 = vadd.f32 %v3462, %v3463
          %v3465 = vmul.f32 %v3116, %v3457
          %v3466 = vadd.f32 %v3465, %v3353
          %v3467 = vmul.f32 %v3466, %v3425
          %v3468 = vrot.slane %v3467, 4
          %v3469 = vadd.f32 %v3467, %v3468
          %v3470 = vrot.slane %v3469, 2
          %v3471 = vadd.f32 %v3469, %v3470
          %v3472 = vrot.slane %v3471, 1
          %v3473 = vadd.f32 %v3471, %v3472
          %v3474 = vmul.f32 %v3118, %v3466
          %v3475 = vadd.f32 %v3474, %v3354
          %v3476 = vmul.f32 %v3475, %v3426
          %v3477 = vrot.slane %v3476, 4
          %v3478 = vadd.f32 %v3476, %v3477
          %v3479 = vrot.slane %v3478, 2
          %v3480 = vadd.f32 %v3478, %v3479
          %v3481 = vrot.slane %v3480, 1
          %v3482 = vadd.f32 %v3480, %v3481
          %v3483 = vmul.f32 %v3120, %v3475
          %v3484 = vadd.f32 %v3483, %v3355
          %v3485 = vmul.f32 %v3484, %v3427
          %v3486 = vrot.slane %v3485, 4
          %v3487 = vadd.f32 %v3485, %v3486
          %v3488 = vrot.slane %v3487, 2
          %v3489 = vadd.f32 %v3487, %v3488
          %v3490 = vrot.slane %v3489, 1
          %v3491 = vadd.f32 %v3489, %v3490
          %v3492 = vmul.f32 %v3122, %v3484
          %v3493 = vadd.f32 %v3492, %v3356
          %v3494 = vmul.f32 %v3493, %v3428
          %v3495 = vrot.slane %v3494, 4
          %v3496 = vadd.f32 %v3494, %v3495
          %v3497 = vrot.slane %v3496, 2
          %v3498 = vadd.f32 %v3496, %v3497
          %v3499 = vrot.slane %v3498, 1
          %v3500 = vadd.f32 %v3498, %v3499
          %vm3501 = vcmask 1040384
          %v3502 = vsel %vm3501, %v3437, %v3446
          %vm3503 = vcmask 1041408
          %v3504 = vsel %vm3503, %v3502, %v3455
          %vm3505 = vcmask 1042432
          %v3506 = vsel %vm3505, %v3504, %v3464
          %vm3507 = vcmask 1043456
          %v3508 = vsel %vm3507, %v3506, %v3473
          %vm3509 = vcmask 1044480
          %v3510 = vsel %vm3509, %v3508, %v3482
          %vm3511 = vcmask 1045504
          %v3512 = vsel %vm3511, %v3510, %v3491
          %vm3513 = vcmask 1046528
          %v3514 = vsel %vm3513, %v3512, %v3500
          %s3515 = scalar_lea.vmem [#allocation5], %s2954
          %3516 = vst [vmem:[%s3515] sm:$0xff] %v3514
        $region65: #{tpu_custom_call.1} parent=59 // loop_footer
          %s2952 = sadd.s32 1, %s2948
        $region66: #{tpu_custom_call.1} parent=59 // loop_footer_branch
          %2947 = sbr.rel target = $region62
        $region67: #{tpu_custom_call.1} parent=59 // loop_exit
          _
        %v3517 = vld [vmem:[#allocation5] sm:$0xff]
        %v3518 = vld [vmem:[#allocation5 + $0x8] sm:$0xff]
        %v3519 = vld [vmem:[#allocation5 + $0x10] sm:$0xff]
        %v3520 = vld [vmem:[#allocation5 + $0x18] sm:$0xff]
        %v3521 = vld [vmem:[#allocation5 + $0x20] sm:$0xff]
        %v3522 = vld [vmem:[#allocation5 + $0x28] sm:$0xff]
        %v3523 = vld [vmem:[#allocation5 + $0x30] sm:$0xff]
        %v3524 = vld [vmem:[#allocation5 + $0x38] sm:$0xff]
        %v3525 = vld [vmem:[#allocation5 + $0x40] sm:$0xff]
        %v3526 = vld [vmem:[#allocation5 + $0x48] sm:$0xff]
        %v3527 = vld [vmem:[#allocation5 + $0x50] sm:$0xff]
        %v3528 = vld [vmem:[#allocation5 + $0x58] sm:$0xff]
        %v3529 = vld [vmem:[#allocation5 + $0x60] sm:$0xff]
        %v3530 = vld [vmem:[#allocation5 + $0x68] sm:$0xff]
        %v3531 = vld [vmem:[#allocation5 + $0x70] sm:$0xff]
        %v3532 = vld [vmem:[#allocation5 + $0x78] sm:$0xff]
        %v3533 = vld [vmem:[#allocation5 + $0x80] sm:$0xff]
        %v3534 = vld [vmem:[#allocation5 + $0x88] sm:$0xff]
        %v3535 = vld [vmem:[#allocation5 + $0x90] sm:$0xff]
        %v3536 = vld [vmem:[#allocation5 + $0x98] sm:$0xff]
        %v3537 = vld [vmem:[#allocation5 + $0xa0] sm:$0xff]
        %v3538 = vld [vmem:[#allocation5 + $0xa8] sm:$0xff]
        %v3539 = vld [vmem:[#allocation5 + $0xb0] sm:$0xff]
        %v3540 = vld [vmem:[#allocation5 + $0xb8] sm:$0xff]
        %v3541 = vld [vmem:[#allocation5 + $0xc0] sm:$0xff]
        %v3542 = vld [vmem:[#allocation5 + $0xc8] sm:$0xff]
        %v3543 = vld [vmem:[#allocation5 + $0xd0] sm:$0xff]
        %v3544 = vld [vmem:[#allocation5 + $0xd8] sm:$0xff]
        %v3545 = vld [vmem:[#allocation5 + $0xe0] sm:$0xff]
        %v3546 = vld [vmem:[#allocation5 + $0xe8] sm:$0xff]
        %v3547 = vld [vmem:[#allocation5 + $0xf0] sm:$0xff]
        %v3548 = vld [vmem:[#allocation5 + $0xf8] sm:$0xff]
        %3581 = vrot.lane.b32.xlu0 %v3517, 64
        %v3582 = vpop.permute.xlu0 %3581
        %3583 = vrot.lane.b32.xlu0 %v3518, 64
        %v3584 = vpop.permute.xlu0 %3583
        %3585 = vrot.lane.b32.xlu0 %v3519, 64
        %v3586 = vpop.permute.xlu0 %3585
        %3587 = vrot.lane.b32.xlu0 %v3520, 64
        %v3588 = vpop.permute.xlu0 %3587
        %3589 = vrot.lane.b32.xlu0 %v3521, 64
        %v3590 = vpop.permute.xlu0 %3589
        %3591 = vrot.lane.b32.xlu0 %v3522, 64
        %v3592 = vpop.permute.xlu0 %3591
        %3593 = vrot.lane.b32.xlu0 %v3523, 64
        %v3594 = vpop.permute.xlu0 %3593
        %3595 = vrot.lane.b32.xlu0 %v3524, 64
        %v3596 = vpop.permute.xlu0 %3595
        %3597 = vrot.lane.b32.xlu0 %v3525, 64
        %v3598 = vpop.permute.xlu0 %3597
        %3599 = vrot.lane.b32.xlu0 %v3526, 64
        %v3600 = vpop.permute.xlu0 %3599
        %3601 = vrot.lane.b32.xlu0 %v3527, 64
        %v3602 = vpop.permute.xlu0 %3601
        %3603 = vrot.lane.b32.xlu0 %v3528, 64
        %v3604 = vpop.permute.xlu0 %3603
        %3605 = vrot.lane.b32.xlu0 %v3529, 64
        %v3606 = vpop.permute.xlu0 %3605
        %3607 = vrot.lane.b32.xlu0 %v3530, 64
        %v3608 = vpop.permute.xlu0 %3607
        %3609 = vrot.lane.b32.xlu0 %v3531, 64
        %v3610 = vpop.permute.xlu0 %3609
        %3611 = vrot.lane.b32.xlu0 %v3532, 64
        %v3612 = vpop.permute.xlu0 %3611
        %3613 = vrot.lane.b32.xlu0 %v3533, 64
        %v3614 = vpop.permute.xlu0 %3613
        %3615 = vrot.lane.b32.xlu0 %v3534, 64
        %v3616 = vpop.permute.xlu0 %3615
        %3617 = vrot.lane.b32.xlu0 %v3535, 64
        %v3618 = vpop.permute.xlu0 %3617
        %3619 = vrot.lane.b32.xlu0 %v3536, 64
        %v3620 = vpop.permute.xlu0 %3619
        %3621 = vrot.lane.b32.xlu0 %v3537, 64
        %v3622 = vpop.permute.xlu0 %3621
        %3623 = vrot.lane.b32.xlu0 %v3538, 64
        %v3624 = vpop.permute.xlu0 %3623
        %3625 = vrot.lane.b32.xlu0 %v3539, 64
        %v3626 = vpop.permute.xlu0 %3625
        %3627 = vrot.lane.b32.xlu0 %v3540, 64
        %v3628 = vpop.permute.xlu0 %3627
        %3629 = vrot.lane.b32.xlu0 %v3541, 64
        %v3630 = vpop.permute.xlu0 %3629
        %3631 = vrot.lane.b32.xlu0 %v3542, 64
        %v3632 = vpop.permute.xlu0 %3631
        %3633 = vrot.lane.b32.xlu0 %v3543, 64
        %v3634 = vpop.permute.xlu0 %3633
        %3635 = vrot.lane.b32.xlu0 %v3544, 64
        %v3636 = vpop.permute.xlu0 %3635
        %3637 = vrot.lane.b32.xlu0 %v3545, 64
        %v3638 = vpop.permute.xlu0 %3637
        %3639 = vrot.lane.b32.xlu0 %v3546, 64
        %v3640 = vpop.permute.xlu0 %3639
        %3641 = vrot.lane.b32.xlu0 %v3547, 64
        %v3642 = vpop.permute.xlu0 %3641
        %3643 = vrot.lane.b32.xlu0 %v3548, 64
        %v3644 = vpop.permute.xlu0 %3643
        %v3677 = vadd.f32 %v3517, %v3582
        %v3678 = vadd.f32 %v3518, %v3584
        %v3679 = vadd.f32 %v3519, %v3586
        %v3680 = vadd.f32 %v3520, %v3588
        %v3681 = vadd.f32 %v3521, %v3590
        %v3682 = vadd.f32 %v3522, %v3592
        %v3683 = vadd.f32 %v3523, %v3594
        %v3684 = vadd.f32 %v3524, %v3596
        %v3685 = vadd.f32 %v3525, %v3598
        %v3686 = vadd.f32 %v3526, %v3600
        %v3687 = vadd.f32 %v3527, %v3602
        %v3688 = vadd.f32 %v3528, %v3604
        %v3689 = vadd.f32 %v3529, %v3606
        %v3690 = vadd.f32 %v3530, %v3608
        %v3691 = vadd.f32 %v3531, %v3610
        %v3692 = vadd.f32 %v3532, %v3612
        %v3693 = vadd.f32 %v3533, %v3614
        %v3694 = vadd.f32 %v3534, %v3616
        %v3695 = vadd.f32 %v3535, %v3618
        %v3696 = vadd.f32 %v3536, %v3620
        %v3697 = vadd.f32 %v3537, %v3622
        %v3698 = vadd.f32 %v3538, %v3624
        %v3699 = vadd.f32 %v3539, %v3626
        %v3700 = vadd.f32 %v3540, %v3628
        %v3701 = vadd.f32 %v3541, %v3630
        %v3702 = vadd.f32 %v3542, %v3632
        %v3703 = vadd.f32 %v3543, %v3634
        %v3704 = vadd.f32 %v3544, %v3636
        %v3705 = vadd.f32 %v3545, %v3638
        %v3706 = vadd.f32 %v3546, %v3640
        %v3707 = vadd.f32 %v3547, %v3642
        %v3708 = vadd.f32 %v3548, %v3644
        %v3709 = vld [vmem:[%s8] sm:$0x1]
        %v3711 = vlaneseq
        %v3712 = vshrl.u32 %v3711, 7
        %v3713 = vsub.s32 0, %v3712
        %v3714 = vrot.slane %v3709, %v3713
        %v3716 = vmul.f32 %v2032, %v3714
        %v3717 = vmul.f32 %v2033, %v3714
        %v3718 = vmul.f32 %v2034, %v3714
        %v3719 = vmul.f32 %v2035, %v3714
        %v3720 = vmul.f32 %v2036, %v3714
        %v3721 = vmul.f32 %v2037, %v3714
        %v3722 = vmul.f32 %v2038, %v3714
        %v3723 = vmul.f32 %v2039, %v3714
        %v3724 = vmul.f32 %v2040, %v3714
        %v3725 = vmul.f32 %v2041, %v3714
        %v3726 = vmul.f32 %v2042, %v3714
        %v3727 = vmul.f32 %v2043, %v3714
        %v3728 = vmul.f32 %v2044, %v3714
        %v3729 = vmul.f32 %v2045, %v3714
        %v3730 = vmul.f32 %v2046, %v3714
        %v3731 = vmul.f32 %v2047, %v3714
        %v3732 = vmul.f32 %v2048, %v3714
        %v3733 = vmul.f32 %v2049, %v3714
        %v3734 = vmul.f32 %v2050, %v3714
        %v3735 = vmul.f32 %v2051, %v3714
        %v3736 = vmul.f32 %v2052, %v3714
        %v3737 = vmul.f32 %v2053, %v3714
        %v3738 = vmul.f32 %v2054, %v3714
        %v3739 = vmul.f32 %v2055, %v3714
        %v3740 = vmul.f32 %v2056, %v3714
        %v3741 = vmul.f32 %v2057, %v3714
        %v3742 = vmul.f32 %v2058, %v3714
        %v3743 = vmul.f32 %v2059, %v3714
        %v3744 = vmul.f32 %v2060, %v3714
        %v3745 = vmul.f32 %v2061, %v3714
        %v3746 = vmul.f32 %v2062, %v3714
        %v3747 = vmul.f32 %v2063, %v3714
        %v3748 = vadd.f32 %v3677, %v3716
        %v3749 = vadd.f32 %v3678, %v3717
        %v3750 = vadd.f32 %v3679, %v3718
        %v3751 = vadd.f32 %v3680, %v3719
        %v3752 = vadd.f32 %v3681, %v3720
        %v3753 = vadd.f32 %v3682, %v3721
        %v3754 = vadd.f32 %v3683, %v3722
        %v3755 = vadd.f32 %v3684, %v3723
        %v3756 = vadd.f32 %v3685, %v3724
        %v3757 = vadd.f32 %v3686, %v3725
        %v3758 = vadd.f32 %v3687, %v3726
        %v3759 = vadd.f32 %v3688, %v3727
        %v3760 = vadd.f32 %v3689, %v3728
        %v3761 = vadd.f32 %v3690, %v3729
        %v3762 = vadd.f32 %v3691, %v3730
        %v3763 = vadd.f32 %v3692, %v3731
        %v3764 = vadd.f32 %v3693, %v3732
        %v3765 = vadd.f32 %v3694, %v3733
        %v3766 = vadd.f32 %v3695, %v3734
        %v3767 = vadd.f32 %v3696, %v3735
        %v3768 = vadd.f32 %v3697, %v3736
        %v3769 = vadd.f32 %v3698, %v3737
        %v3770 = vadd.f32 %v3699, %v3738
        %v3771 = vadd.f32 %v3700, %v3739
        %v3772 = vadd.f32 %v3701, %v3740
        %v3773 = vadd.f32 %v3702, %v3741
        %v3774 = vadd.f32 %v3703, %v3742
        %v3775 = vadd.f32 %v3704, %v3743
        %v3776 = vadd.f32 %v3705, %v3744
        %v3777 = vadd.f32 %v3706, %v3745
        %v3778 = vadd.f32 %v3707, %v3746
        %v3779 = vadd.f32 %v3708, %v3747
        %v3780 = vxor.u32 %v982, 2147483648
        %v3781 = vxor.u32 %v987, 2147483648
        %v3782 = vxor.u32 %v992, 2147483648
        %v3783 = vxor.u32 %v997, 2147483648
        %v3784 = vxor.u32 %v1002, 2147483648
        %v3785 = vxor.u32 %v1007, 2147483648
        %v3786 = vxor.u32 %v1012, 2147483648
        %v3787 = vxor.u32 %v1017, 2147483648
        %v3788 = vxor.u32 %v1022, 2147483648
        %v3789 = vxor.u32 %v1027, 2147483648
        %v3790 = vxor.u32 %v1032, 2147483648
        %v3791 = vxor.u32 %v1037, 2147483648
        %v3792 = vxor.u32 %v1042, 2147483648
        %v3793 = vxor.u32 %v1047, 2147483648
        %v3794 = vxor.u32 %v1052, 2147483648
        %v3795 = vxor.u32 %v1057, 2147483648
        %v3796 = vxor.u32 %v1062, 2147483648
        %v3797 = vxor.u32 %v1067, 2147483648
        %v3798 = vxor.u32 %v1072, 2147483648
        %v3799 = vxor.u32 %v1077, 2147483648
        %v3800 = vxor.u32 %v1082, 2147483648
        %v3801 = vxor.u32 %v1087, 2147483648
        %v3802 = vxor.u32 %v1092, 2147483648
        %v3803 = vxor.u32 %v1097, 2147483648
        %v3804 = vxor.u32 %v1102, 2147483648
        %v3805 = vxor.u32 %v1107, 2147483648
        %v3806 = vxor.u32 %v1112, 2147483648
        %v3807 = vxor.u32 %v1117, 2147483648
        %v3808 = vxor.u32 %v1122, 2147483648
        %v3809 = vxor.u32 %v1127, 2147483648
        %v3810 = vxor.u32 %v1132, 2147483648
        %v3811 = vxor.u32 %v1137, 2147483648
        %v3812 = vmul.f32 %v3780, 1.442695
        %v3813 = vpow.pop %v3812
        %v3814 = vmul.f32 %v3781, 1.442695
        %v3815 = vpow.pop %v3814
        %v3816 = vmul.f32 %v3782, 1.442695
        %v3817 = vpow.pop %v3816
        %v3818 = vmul.f32 %v3783, 1.442695
        %v3819 = vpow.pop %v3818
        %v3820 = vmul.f32 %v3784, 1.442695
        %v3821 = vpow.pop %v3820
        %v3822 = vmul.f32 %v3785, 1.442695
        %v3823 = vpow.pop %v3822
        %v3824 = vmul.f32 %v3786, 1.442695
        %v3825 = vpow.pop %v3824
        %v3826 = vmul.f32 %v3787, 1.442695
        %v3827 = vpow.pop %v3826
        %v3828 = vmul.f32 %v3788, 1.442695
        %v3829 = vpow.pop %v3828
        %v3830 = vmul.f32 %v3789, 1.442695
        %v3831 = vpow.pop %v3830
        %v3832 = vmul.f32 %v3790, 1.442695
        %v3833 = vpow.pop %v3832
        %v3834 = vmul.f32 %v3791, 1.442695
        %v3835 = vpow.pop %v3834
        %v3836 = vmul.f32 %v3792, 1.442695
        %v3837 = vpow.pop %v3836
        %v3838 = vmul.f32 %v3793, 1.442695
        %v3839 = vpow.pop %v3838
        %v3840 = vmul.f32 %v3794, 1.442695
        %v3841 = vpow.pop %v3840
        %v3842 = vmul.f32 %v3795, 1.442695
        %v3843 = vpow.pop %v3842
        %v3844 = vmul.f32 %v3796, 1.442695
        %v3845 = vpow.pop %v3844
        %v3846 = vmul.f32 %v3797, 1.442695
        %v3847 = vpow.pop %v3846
        %v3848 = vmul.f32 %v3798, 1.442695
        %v3849 = vpow.pop %v3848
        %v3850 = vmul.f32 %v3799, 1.442695
        %v3851 = vpow.pop %v3850
        %v3852 = vmul.f32 %v3800, 1.442695
        %v3853 = vpow.pop %v3852
        %v3854 = vmul.f32 %v3801, 1.442695
        %v3855 = vpow.pop %v3854
        %v3856 = vmul.f32 %v3802, 1.442695
        %v3857 = vpow.pop %v3856
        %v3858 = vmul.f32 %v3803, 1.442695
        %v3859 = vpow.pop %v3858
        %v3860 = vmul.f32 %v3804, 1.442695
        %v3861 = vpow.pop %v3860
        %v3862 = vmul.f32 %v3805, 1.442695
        %v3863 = vpow.pop %v3862
        %v3864 = vmul.f32 %v3806, 1.442695
        %v3865 = vpow.pop %v3864
        %v3866 = vmul.f32 %v3807, 1.442695
        %v3867 = vpow.pop %v3866
        %v3868 = vmul.f32 %v3808, 1.442695
        %v3869 = vpow.pop %v3868
        %v3870 = vmul.f32 %v3809, 1.442695
        %v3871 = vpow.pop %v3870
        %v3872 = vmul.f32 %v3810, 1.442695
        %v3873 = vpow.pop %v3872
        %v3874 = vmul.f32 %v3811, 1.442695
        %v3875 = vpow.pop %v3874
        %v3876 = vadd.f32 %v3813, 1.0
        %v3877 = vadd.f32 %v3815, 1.0
        %v3878 = vadd.f32 %v3817, 1.0
        %v3879 = vadd.f32 %v3819, 1.0
        %v3880 = vadd.f32 %v3821, 1.0
        %v3881 = vadd.f32 %v3823, 1.0
        %v3882 = vadd.f32 %v3825, 1.0
        %v3883 = vadd.f32 %v3827, 1.0
        %v3884 = vadd.f32 %v3829, 1.0
        %v3885 = vadd.f32 %v3831, 1.0
        %v3886 = vadd.f32 %v3833, 1.0
        %v3887 = vadd.f32 %v3835, 1.0
        %v3888 = vadd.f32 %v3837, 1.0
        %v3889 = vadd.f32 %v3839, 1.0
        %v3890 = vadd.f32 %v3841, 1.0
        %v3891 = vadd.f32 %v3843, 1.0
        %v3892 = vadd.f32 %v3845, 1.0
        %v3893 = vadd.f32 %v3847, 1.0
        %v3894 = vadd.f32 %v3849, 1.0
        %v3895 = vadd.f32 %v3851, 1.0
        %v3896 = vadd.f32 %v3853, 1.0
        %v3897 = vadd.f32 %v3855, 1.0
        %v3898 = vadd.f32 %v3857, 1.0
        %v3899 = vadd.f32 %v3859, 1.0
        %v3900 = vadd.f32 %v3861, 1.0
        %v3901 = vadd.f32 %v3863, 1.0
        %v3902 = vadd.f32 %v3865, 1.0
        %v3903 = vadd.f32 %v3867, 1.0
        %v3904 = vadd.f32 %v3869, 1.0
        %v3905 = vadd.f32 %v3871, 1.0
        %v3906 = vadd.f32 %v3873, 1.0
        %v3907 = vadd.f32 %v3875, 1.0
        %v3908 = vrcp.pop %v3876
        %v3909 = vmul.f32 1.0, %v3908
        %v3910 = vrcp.pop %v3877
        %v3911 = vmul.f32 1.0, %v3910
        %v3912 = vrcp.pop %v3878
        %v3913 = vmul.f32 1.0, %v3912
        %v3914 = vrcp.pop %v3879
        %v3915 = vmul.f32 1.0, %v3914
        %v3916 = vrcp.pop %v3880
        %v3917 = vmul.f32 1.0, %v3916
        %v3918 = vrcp.pop %v3881
        %v3919 = vmul.f32 1.0, %v3918
        %v3920 = vrcp.pop %v3882
        %v3921 = vmul.f32 1.0, %v3920
        %v3922 = vrcp.pop %v3883
        %v3923 = vmul.f32 1.0, %v3922
        %v3924 = vrcp.pop %v3884
        %v3925 = vmul.f32 1.0, %v3924
        %v3926 = vrcp.pop %v3885
        %v3927 = vmul.f32 1.0, %v3926
        %v3928 = vrcp.pop %v3886
        %v3929 = vmul.f32 1.0, %v3928
        %v3930 = vrcp.pop %v3887
        %v3931 = vmul.f32 1.0, %v3930
        %v3932 = vrcp.pop %v3888
        %v3933 = vmul.f32 1.0, %v3932
        %v3934 = vrcp.pop %v3889
        %v3935 = vmul.f32 1.0, %v3934
        %v3936 = vrcp.pop %v3890
        %v3937 = vmul.f32 1.0, %v3936
        %v3938 = vrcp.pop %v3891
        %v3939 = vmul.f32 1.0, %v3938
        %v3940 = vrcp.pop %v3892
        %v3941 = vmul.f32 1.0, %v3940
        %v3942 = vrcp.pop %v3893
        %v3943 = vmul.f32 1.0, %v3942
        %v3944 = vrcp.pop %v3894
        %v3945 = vmul.f32 1.0, %v3944
        %v3946 = vrcp.pop %v3895
        %v3947 = vmul.f32 1.0, %v3946
        %v3948 = vrcp.pop %v3896
        %v3949 = vmul.f32 1.0, %v3948
        %v3950 = vrcp.pop %v3897
        %v3951 = vmul.f32 1.0, %v3950
        %v3952 = vrcp.pop %v3898
        %v3953 = vmul.f32 1.0, %v3952
        %v3954 = vrcp.pop %v3899
        %v3955 = vmul.f32 1.0, %v3954
        %v3956 = vrcp.pop %v3900
        %v3957 = vmul.f32 1.0, %v3956
        %v3958 = vrcp.pop %v3901
        %v3959 = vmul.f32 1.0, %v3958
        %v3960 = vrcp.pop %v3902
        %v3961 = vmul.f32 1.0, %v3960
        %v3962 = vrcp.pop %v3903
        %v3963 = vmul.f32 1.0, %v3962
        %v3964 = vrcp.pop %v3904
        %v3965 = vmul.f32 1.0, %v3964
        %v3966 = vrcp.pop %v3905
        %v3967 = vmul.f32 1.0, %v3966
        %v3968 = vrcp.pop %v3906
        %v3969 = vmul.f32 1.0, %v3968
        %v3970 = vrcp.pop %v3907
        %v3971 = vmul.f32 1.0, %v3970
        %v3972 = vmul.f32 %v982, %v3909
        %v3973 = vmul.f32 %v987, %v3911
        %v3974 = vmul.f32 %v992, %v3913
        %v3975 = vmul.f32 %v997, %v3915
        %v3976 = vmul.f32 %v1002, %v3917
        %v3977 = vmul.f32 %v1007, %v3919
        %v3978 = vmul.f32 %v1012, %v3921
        %v3979 = vmul.f32 %v1017, %v3923
        %v3980 = vmul.f32 %v1022, %v3925
        %v3981 = vmul.f32 %v1027, %v3927
        %v3982 = vmul.f32 %v1032, %v3929
        %v3983 = vmul.f32 %v1037, %v3931
        %v3984 = vmul.f32 %v1042, %v3933
        %v3985 = vmul.f32 %v1047, %v3935
        %v3986 = vmul.f32 %v1052, %v3937
        %v3987 = vmul.f32 %v1057, %v3939
        %v3988 = vmul.f32 %v1062, %v3941
        %v3989 = vmul.f32 %v1067, %v3943
        %v3990 = vmul.f32 %v1072, %v3945
        %v3991 = vmul.f32 %v1077, %v3947
        %v3992 = vmul.f32 %v1082, %v3949
        %v3993 = vmul.f32 %v1087, %v3951
        %v3994 = vmul.f32 %v1092, %v3953
        %v3995 = vmul.f32 %v1097, %v3955
        %v3996 = vmul.f32 %v1102, %v3957
        %v3997 = vmul.f32 %v1107, %v3959
        %v3998 = vmul.f32 %v1112, %v3961
        %v3999 = vmul.f32 %v1117, %v3963
        %v4000 = vmul.f32 %v1122, %v3965
        %v4001 = vmul.f32 %v1127, %v3967
        %v4002 = vmul.f32 %v1132, %v3969
        %v4003 = vmul.f32 %v1137, %v3971
        %4036 = vrot.lane.b32.xlu0 %v3972, 64
        %v4037 = vpop.permute.xlu0 %4036
        %4038 = vrot.lane.b32.xlu0 %v3973, 64
        %v4039 = vpop.permute.xlu0 %4038
        %4040 = vrot.lane.b32.xlu0 %v3974, 64
        %v4041 = vpop.permute.xlu0 %4040
        %4042 = vrot.lane.b32.xlu0 %v3975, 64
        %v4043 = vpop.permute.xlu0 %4042
        %4044 = vrot.lane.b32.xlu0 %v3976, 64
        %v4045 = vpop.permute.xlu0 %4044
        %4046 = vrot.lane.b32.xlu0 %v3977, 64
        %v4047 = vpop.permute.xlu0 %4046
        %4048 = vrot.lane.b32.xlu0 %v3978, 64
        %v4049 = vpop.permute.xlu0 %4048
        %4050 = vrot.lane.b32.xlu0 %v3979, 64
        %v4051 = vpop.permute.xlu0 %4050
        %4052 = vrot.lane.b32.xlu0 %v3980, 64
        %v4053 = vpop.permute.xlu0 %4052
        %4054 = vrot.lane.b32.xlu0 %v3981, 64
        %v4055 = vpop.permute.xlu0 %4054
        %4056 = vrot.lane.b32.xlu0 %v3982, 64
        %v4057 = vpop.permute.xlu0 %4056
        %4058 = vrot.lane.b32.xlu0 %v3983, 64
        %v4059 = vpop.permute.xlu0 %4058
        %4060 = vrot.lane.b32.xlu0 %v3984, 64
        %v4061 = vpop.permute.xlu0 %4060
        %4062 = vrot.lane.b32.xlu0 %v3985, 64
        %v4063 = vpop.permute.xlu0 %4062
        %4064 = vrot.lane.b32.xlu0 %v3986, 64
        %v4065 = vpop.permute.xlu0 %4064
        %4066 = vrot.lane.b32.xlu0 %v3987, 64
        %v4067 = vpop.permute.xlu0 %4066
        %4068 = vrot.lane.b32.xlu0 %v3988, 64
        %v4069 = vpop.permute.xlu0 %4068
        %4070 = vrot.lane.b32.xlu0 %v3989, 64
        %v4071 = vpop.permute.xlu0 %4070
        %4072 = vrot.lane.b32.xlu0 %v3990, 64
        %v4073 = vpop.permute.xlu0 %4072
        %4074 = vrot.lane.b32.xlu0 %v3991, 64
        %v4075 = vpop.permute.xlu0 %4074
        %4076 = vrot.lane.b32.xlu0 %v3992, 64
        %v4077 = vpop.permute.xlu0 %4076
        %4078 = vrot.lane.b32.xlu0 %v3993, 64
        %v4079 = vpop.permute.xlu0 %4078
        %4080 = vrot.lane.b32.xlu0 %v3994, 64
        %v4081 = vpop.permute.xlu0 %4080
        %4082 = vrot.lane.b32.xlu0 %v3995, 64
        %v4083 = vpop.permute.xlu0 %4082
        %4084 = vrot.lane.b32.xlu0 %v3996, 64
        %v4085 = vpop.permute.xlu0 %4084
        %4086 = vrot.lane.b32.xlu0 %v3997, 64
        %v4087 = vpop.permute.xlu0 %4086
        %4088 = vrot.lane.b32.xlu0 %v3998, 64
        %v4089 = vpop.permute.xlu0 %4088
        %4090 = vrot.lane.b32.xlu0 %v3999, 64
        %v4091 = vpop.permute.xlu0 %4090
        %4092 = vrot.lane.b32.xlu0 %v4000, 64
        %v4093 = vpop.permute.xlu0 %4092
        %4094 = vrot.lane.b32.xlu0 %v4001, 64
        %v4095 = vpop.permute.xlu0 %4094
        %4096 = vrot.lane.b32.xlu0 %v4002, 64
        %v4097 = vpop.permute.xlu0 %4096
        %4098 = vrot.lane.b32.xlu0 %v4003, 64
        %v4099 = vpop.permute.xlu0 %4098
        %v4132 = vmul.f32 %v3748, %v4037
        %v4133 = vmul.f32 %v3749, %v4039
        %v4134 = vmul.f32 %v3750, %v4041
        %v4135 = vmul.f32 %v3751, %v4043
        %v4136 = vmul.f32 %v3752, %v4045
        %v4137 = vmul.f32 %v3753, %v4047
        %v4138 = vmul.f32 %v3754, %v4049
        %v4139 = vmul.f32 %v3755, %v4051
        %v4140 = vmul.f32 %v3756, %v4053
        %v4141 = vmul.f32 %v3757, %v4055
        %v4142 = vmul.f32 %v3758, %v4057
        %v4143 = vmul.f32 %v3759, %v4059
        %v4144 = vmul.f32 %v3760, %v4061
        %v4145 = vmul.f32 %v3761, %v4063
        %v4146 = vmul.f32 %v3762, %v4065
        %v4147 = vmul.f32 %v3763, %v4067
        %v4148 = vmul.f32 %v3764, %v4069
        %v4149 = vmul.f32 %v3765, %v4071
        %v4150 = vmul.f32 %v3766, %v4073
        %v4151 = vmul.f32 %v3767, %v4075
        %v4152 = vmul.f32 %v3768, %v4077
        %v4153 = vmul.f32 %v3769, %v4079
        %v4154 = vmul.f32 %v3770, %v4081
        %v4155 = vmul.f32 %v3771, %v4083
        %v4156 = vmul.f32 %v3772, %v4085
        %v4157 = vmul.f32 %v3773, %v4087
        %v4158 = vmul.f32 %v3774, %v4089
        %v4159 = vmul.f32 %v3775, %v4091
        %v4160 = vmul.f32 %v3776, %v4093
        %v4161 = vmul.f32 %v3777, %v4095
        %v4162 = vmul.f32 %v3778, %v4097
        %v4163 = vmul.f32 %v3779, %v4099
        %v4164 = vld [vmem:[%s9] sm:$0xff]
        %v4165 = vld [vmem:[%s9 + $0x8] sm:$0xff]
        %v4166 = vld [vmem:[%s9 + $0x10] sm:$0xff]
        %v4167 = vld [vmem:[%s9 + $0x18] sm:$0xff]
        %v4168 = vld [vmem:[%s9 + $0x20] sm:$0xff]
        %v4169 = vld [vmem:[%s9 + $0x28] sm:$0xff]
        %v4170 = vld [vmem:[%s9 + $0x30] sm:$0xff]
        %v4171 = vld [vmem:[%s9 + $0x38] sm:$0xff]
        %v4173 = vsel %vm2072, %v4132, 0
        %v4176 = vsel %vm2072, %v4133, 0
        %v4179 = vsel %vm2072, %v4134, 0
        %v4182 = vsel %vm2072, %v4135, 0
        %v4185 = vsel %vm2072, %v4136, 0
        %v4188 = vsel %vm2072, %v4137, 0
        %v4191 = vsel %vm2072, %v4138, 0
        %v4194 = vsel %vm2072, %v4139, 0
        %v4197 = vsel %vm2072, %v4140, 0
        %v4200 = vsel %vm2072, %v4141, 0
        %v4203 = vsel %vm2072, %v4142, 0
        %v4206 = vsel %vm2072, %v4143, 0
        %v4209 = vsel %vm2072, %v4144, 0
        %v4212 = vsel %vm2072, %v4145, 0
        %v4215 = vsel %vm2072, %v4146, 0
        %v4218 = vsel %vm2072, %v4147, 0
        %v4221 = vsel %vm2072, %v4148, 0
        %v4224 = vsel %vm2072, %v4149, 0
        %v4227 = vsel %vm2072, %v4150, 0
        %v4230 = vsel %vm2072, %v4151, 0
        %v4233 = vsel %vm2072, %v4152, 0
        %v4236 = vsel %vm2072, %v4153, 0
        %v4239 = vsel %vm2072, %v4154, 0
        %v4242 = vsel %vm2072, %v4155, 0
        %v4245 = vsel %vm2072, %v4156, 0
        %v4248 = vsel %vm2072, %v4157, 0
        %v4251 = vsel %vm2072, %v4158, 0
        %v4254 = vsel %vm2072, %v4159, 0
        %v4257 = vsel %vm2072, %v4160, 0
        %v4260 = vsel %vm2072, %v4161, 0
        %v4263 = vsel %vm2072, %v4162, 0
        %v4266 = vsel %vm2072, %v4163, 0
        %4268 = vmatprep.subr.mxu0 0.0
        %4269 = vmatpush1.msra.mxu0 0.0
        %4270 = vmatprep.subr.mxu0 0.0
        %4271 = vmatpush1.msra.mxu0 0.0
        %4272 = vmatprep.subr.mxu0 0.0
        %4273 = vmatpush1.msra.mxu0 0.0
        %4274 = vmatprep.subr.mxu0 0.0
        %4275 = vmatpush1.msra.mxu0 0.0
        %4276 = vmatprep.subr.mxu0 0.0
        %4277 = vmatpush1.msra.mxu0 0.0
        %4278 = vmatprep.subr.mxu0 0.0
        %4279 = vmatpush1.msra.mxu0 0.0
        %4280 = vmatprep.subr.mxu0 0.0
        %4281 = vmatpush1.msra.mxu0 0.0
        %4282 = vmatprep.subr.mxu0 0.0
        %4283 = vmatpush1.msra.mxu0 0.0
        %4284 = vmatprep.subr.mxu0 0.0
        %4285 = vmatpush1.msra.mxu0 %v4171
        %4286 = vmatprep.subr.mxu0 0.0
        %4287 = vmatpush1.msra.mxu0 %v4170
        %4288 = vmatprep.subr.mxu0 0.0
        %4289 = vmatpush1.msra.mxu0 %v4169
        %4290 = vmatprep.subr.mxu0 0.0
        %4291 = vmatpush1.msra.mxu0 %v4168
        %4292 = vmatprep.subr.mxu0 0.0
        %4293 = vmatpush1.msra.mxu0 %v4167
        %4294 = vmatprep.subr.mxu0 0.0
        %4295 = vmatpush1.msra.mxu0 %v4166
        %4296 = vmatprep.subr.mxu0 0.0
        %4297 = vmatpush1.msra.mxu0 %v4165
        %4298 = vmatprep.subr.mxu0 0.0
        %4299 = vmatpush1.msra.mxu0 %v4164
        %4300 = vmatprep.subr.mxu0 0.0
        %4301 = vmatpush2.msra.mxu0 0.0
        %4302 = vmatprep.subr.mxu0 0.0
        %4303 = vmatpush2.msra.mxu0 0.0
        %4304 = vmatprep.subr.mxu0 0.0
        %4305 = vmatpush2.msra.mxu0 0.0
        %4306 = vmatprep.subr.mxu0 0.0
        %4307 = vmatpush2.msra.mxu0 0.0
        %4308 = vmatprep.subr.mxu0 0.0
        %4309 = vmatpush2.msra.mxu0 0.0
        %4310 = vmatprep.subr.mxu0 0.0
        %4311 = vmatpush2.msra.mxu0 0.0
        %4312 = vmatprep.subr.mxu0 0.0
        %4313 = vmatpush2.msra.mxu0 0.0
        %4314 = vmatprep.subr.mxu0 0.0
        %4315 = vmatpush2.msra.mxu0 0.0
        %4316 = vmatprep.subr.mxu0 0.0
        %4317 = vmatpush2.msra.mxu0 0.0
        %4318 = vmatprep.subr.mxu0 0.0
        %4319 = vmatpush2.msra.mxu0 0.0
        %4320 = vmatprep.subr.mxu0 0.0
        %4321 = vmatpush2.msra.mxu0 0.0
        %4322 = vmatprep.subr.mxu0 0.0
        %4323 = vmatpush2.msra.mxu0 0.0
        %4324 = vmatprep.subr.mxu0 0.0
        %4325 = vmatpush2.msra.mxu0 0.0
        %4326 = vmatprep.subr.mxu0 0.0
        %4327 = vmatpush2.msra.mxu0 0.0
        %4328 = vmatprep.subr.mxu0 0.0
        %4329 = vmatpush2.msra.mxu0 0.0
        %4330 = vmatprep.subr.mxu0 0.0
        %4331 = vmatpush2.msra.mxu0 0.0
        %4332 = vmatprep.mubr.f32.mxu0 0.0
        %4333 = vmatmul.mubr.f32.gmra.mxu0 %v4173
        %v4334 = vpop.f32.mrf.mxu0
        %v4335 = vadd.f32 0.0, %v4334
        %v4336 = vpop.f32.mrf.mxu0
        %4337 = vmatprep.mubr.f32.mxu0 0.0
        %4338 = vmatmul.mubr.f32.gmra.mxu0 %v4176
        %v4339 = vpop.f32.mrf.mxu0
        %v4340 = vadd.f32 0.0, %v4339
        %v4341 = vpop.f32.mrf.mxu0
        %4342 = vmatprep.mubr.f32.mxu0 0.0
        %4343 = vmatmul.mubr.f32.gmra.mxu0 %v4179
        %v4344 = vpop.f32.mrf.mxu0
        %v4345 = vadd.f32 0.0, %v4344
        %v4346 = vpop.f32.mrf.mxu0
        %4347 = vmatprep.mubr.f32.mxu0 0.0
        %4348 = vmatmul.mubr.f32.gmra.mxu0 %v4182
        %v4349 = vpop.f32.mrf.mxu0
        %v4350 = vadd.f32 0.0, %v4349
        %v4351 = vpop.f32.mrf.mxu0
        %4352 = vmatprep.mubr.f32.mxu0 0.0
        %4353 = vmatmul.mubr.f32.gmra.mxu0 %v4185
        %v4354 = vpop.f32.mrf.mxu0
        %v4355 = vadd.f32 0.0, %v4354
        %v4356 = vpop.f32.mrf.mxu0
        %4357 = vmatprep.mubr.f32.mxu0 0.0
        %4358 = vmatmul.mubr.f32.gmra.mxu0 %v4188
        %v4359 = vpop.f32.mrf.mxu0
        %v4360 = vadd.f32 0.0, %v4359
        %v4361 = vpop.f32.mrf.mxu0
        %4362 = vmatprep.mubr.f32.mxu0 0.0
        %4363 = vmatmul.mubr.f32.gmra.mxu0 %v4191
        %v4364 = vpop.f32.mrf.mxu0
        %v4365 = vadd.f32 0.0, %v4364
        %v4366 = vpop.f32.mrf.mxu0
        %4367 = vmatprep.mubr.f32.mxu0 0.0
        %4368 = vmatmul.mubr.f32.gmra.mxu0 %v4194
        %v4369 = vpop.f32.mrf.mxu0
        %v4370 = vadd.f32 0.0, %v4369
        %v4371 = vpop.f32.mrf.mxu0
        %4372 = vmatprep.mubr.f32.mxu0 0.0
        %4373 = vmatmul.mubr.f32.gmra.mxu0 %v4197
        %v4374 = vpop.f32.mrf.mxu0
        %v4375 = vadd.f32 0.0, %v4374
        %v4376 = vpop.f32.mrf.mxu0
        %4377 = vmatprep.mubr.f32.mxu0 0.0
        %4378 = vmatmul.mubr.f32.gmra.mxu0 %v4200
        %v4379 = vpop.f32.mrf.mxu0
        %v4380 = vadd.f32 0.0, %v4379
        %v4381 = vpop.f32.mrf.mxu0
        %4382 = vmatprep.mubr.f32.mxu0 0.0
        %4383 = vmatmul.mubr.f32.gmra.mxu0 %v4203
        %v4384 = vpop.f32.mrf.mxu0
        %v4385 = vadd.f32 0.0, %v4384
        %v4386 = vpop.f32.mrf.mxu0
        %4387 = vmatprep.mubr.f32.mxu0 0.0
        %4388 = vmatmul.mubr.f32.gmra.mxu0 %v4206
        %v4389 = vpop.f32.mrf.mxu0
        %v4390 = vadd.f32 0.0, %v4389
        %v4391 = vpop.f32.mrf.mxu0
        %4392 = vmatprep.mubr.f32.mxu0 0.0
        %4393 = vmatmul.mubr.f32.gmra.mxu0 %v4209
        %v4394 = vpop.f32.mrf.mxu0
        %v4395 = vadd.f32 0.0, %v4394
        %v4396 = vpop.f32.mrf.mxu0
        %4397 = vmatprep.mubr.f32.mxu0 0.0
        %4398 = vmatmul.mubr.f32.gmra.mxu0 %v4212
        %v4399 = vpop.f32.mrf.mxu0
        %v4400 = vadd.f32 0.0, %v4399
        %v4401 = vpop.f32.mrf.mxu0
        %4402 = vmatprep.mubr.f32.mxu0 0.0
        %4403 = vmatmul.mubr.f32.gmra.mxu0 %v4215
        %v4404 = vpop.f32.mrf.mxu0
        %v4405 = vadd.f32 0.0, %v4404
        %v4406 = vpop.f32.mrf.mxu0
        %4407 = vmatprep.mubr.f32.mxu0 0.0
        %4408 = vmatmul.mubr.f32.gmra.mxu0 %v4218
        %v4409 = vpop.f32.mrf.mxu0
        %v4410 = vadd.f32 0.0, %v4409
        %v4411 = vpop.f32.mrf.mxu0
        %4412 = vmatprep.mubr.f32.mxu0 0.0
        %4413 = vmatmul.mubr.f32.gmra.mxu0 %v4221
        %v4414 = vpop.f32.mrf.mxu0
        %v4415 = vadd.f32 0.0, %v4414
        %v4416 = vpop.f32.mrf.mxu0
        %4417 = vmatprep.mubr.f32.mxu0 0.0
        %4418 = vmatmul.mubr.f32.gmra.mxu0 %v4224
        %v4419 = vpop.f32.mrf.mxu0
        %v4420 = vadd.f32 0.0, %v4419
        %v4421 = vpop.f32.mrf.mxu0
        %4422 = vmatprep.mubr.f32.mxu0 0.0
        %4423 = vmatmul.mubr.f32.gmra.mxu0 %v4227
        %v4424 = vpop.f32.mrf.mxu0
        %v4425 = vadd.f32 0.0, %v4424
        %v4426 = vpop.f32.mrf.mxu0
        %4427 = vmatprep.mubr.f32.mxu0 0.0
        %4428 = vmatmul.mubr.f32.gmra.mxu0 %v4230
        %v4429 = vpop.f32.mrf.mxu0
        %v4430 = vadd.f32 0.0, %v4429
        %v4431 = vpop.f32.mrf.mxu0
        %4432 = vmatprep.mubr.f32.mxu0 0.0
        %4433 = vmatmul.mubr.f32.gmra.mxu0 %v4233
        %v4434 = vpop.f32.mrf.mxu0
        %v4435 = vadd.f32 0.0, %v4434
        %v4436 = vpop.f32.mrf.mxu0
        %4437 = vmatprep.mubr.f32.mxu0 0.0
        %4438 = vmatmul.mubr.f32.gmra.mxu0 %v4236
        %v4439 = vpop.f32.mrf.mxu0
        %v4440 = vadd.f32 0.0, %v4439
        %v4441 = vpop.f32.mrf.mxu0
        %4442 = vmatprep.mubr.f32.mxu0 0.0
        %4443 = vmatmul.mubr.f32.gmra.mxu0 %v4239
        %v4444 = vpop.f32.mrf.mxu0
        %v4445 = vadd.f32 0.0, %v4444
        %v4446 = vpop.f32.mrf.mxu0
        %4447 = vmatprep.mubr.f32.mxu0 0.0
        %4448 = vmatmul.mubr.f32.gmra.mxu0 %v4242
        %v4449 = vpop.f32.mrf.mxu0
        %v4450 = vadd.f32 0.0, %v4449
        %v4451 = vpop.f32.mrf.mxu0
        %4452 = vmatprep.mubr.f32.mxu0 0.0
        %4453 = vmatmul.mubr.f32.gmra.mxu0 %v4245
        %v4454 = vpop.f32.mrf.mxu0
        %v4455 = vadd.f32 0.0, %v4454
        %v4456 = vpop.f32.mrf.mxu0
        %4457 = vmatprep.mubr.f32.mxu0 0.0
        %4458 = vmatmul.mubr.f32.gmra.mxu0 %v4248
        %v4459 = vpop.f32.mrf.mxu0
        %v4460 = vadd.f32 0.0, %v4459
        %v4461 = vpop.f32.mrf.mxu0
        %4462 = vmatprep.mubr.f32.mxu0 0.0
        %4463 = vmatmul.mubr.f32.gmra.mxu0 %v4251
        %v4464 = vpop.f32.mrf.mxu0
        %v4465 = vadd.f32 0.0, %v4464
        %v4466 = vpop.f32.mrf.mxu0
        %4467 = vmatprep.mubr.f32.mxu0 0.0
        %4468 = vmatmul.mubr.f32.gmra.mxu0 %v4254
        %v4469 = vpop.f32.mrf.mxu0
        %v4470 = vadd.f32 0.0, %v4469
        %v4471 = vpop.f32.mrf.mxu0
        %4472 = vmatprep.mubr.f32.mxu0 0.0
        %4473 = vmatmul.mubr.f32.gmra.mxu0 %v4257
        %v4474 = vpop.f32.mrf.mxu0
        %v4475 = vadd.f32 0.0, %v4474
        %v4476 = vpop.f32.mrf.mxu0
        %4477 = vmatprep.mubr.f32.mxu0 0.0
        %4478 = vmatmul.mubr.f32.gmra.mxu0 %v4260
        %v4479 = vpop.f32.mrf.mxu0
        %v4480 = vadd.f32 0.0, %v4479
        %v4481 = vpop.f32.mrf.mxu0
        %4482 = vmatprep.mubr.f32.mxu0 0.0
        %4483 = vmatmul.mubr.f32.gmra.mxu0 %v4263
        %v4484 = vpop.f32.mrf.mxu0
        %v4485 = vadd.f32 0.0, %v4484
        %v4486 = vpop.f32.mrf.mxu0
        %4487 = vmatprep.mubr.f32.mxu0 0.0
        %4488 = vmatmul.mubr.f32.gmra.mxu0 %v4266
        %v4489 = vpop.f32.mrf.mxu0
        %v4490 = vadd.f32 0.0, %v4489
        %v4491 = vpop.f32.mrf.mxu0
        %4492 = vdwg.mxu0
        %4493 = vxpose.xlu0.b32.start [1/16] %v4335, 128
        %4494 = vxpose.xlu0.b32.cont [2/16] %v4340, 128
        %4495 = vxpose.xlu0.b32.cont [3/16] %v4345, 128
        %4496 = vxpose.xlu0.b32.cont [4/16] %v4350, 128
        %4497 = vxpose.xlu0.b32.cont [5/16] %v4355, 128
        %4498 = vxpose.xlu0.b32.cont [6/16] %v4360, 128
        %4499 = vxpose.xlu0.b32.cont [7/16] %v4365, 128
        %4500 = vxpose.xlu0.b32.cont [8/16] %v4370, 128
        %4501 = vxpose.xlu0.b32.cont [9/16] %v4375, 128
        %4502 = vxpose.xlu0.b32.cont [10/16] %v4380, 128
        %4503 = vxpose.xlu0.b32.cont [11/16] %v4385, 128
        %4504 = vxpose.xlu0.b32.cont [12/16] %v4390, 128
        %4505 = vxpose.xlu0.b32.cont [13/16] %v4395, 128
        %4506 = vxpose.xlu0.b32.cont [14/16] %v4400, 128
        %4507 = vxpose.xlu0.b32.cont [15/16] %v4405, 128
        %4508 = vxpose.xlu0.b32.end [16/16] %v4410, 128
        %v4509 = vpop.trf.xlu0
        %v4510 = vpop.trf.xlu0
        %v4511 = vpop.trf.xlu0
        %v4512 = vpop.trf.xlu0
        %v4513 = vpop.trf.xlu0
        %v4514 = vpop.trf.xlu0
        %v4515 = vpop.trf.xlu0
        %v4516 = vpop.trf.xlu0
        %v4517 = vpop.trf.xlu0
        %v4518 = vpop.trf.xlu0
        %v4519 = vpop.trf.xlu0
        %v4520 = vpop.trf.xlu0
        %v4521 = vpop.trf.xlu0
        %v4522 = vpop.trf.xlu0
        %v4523 = vpop.trf.xlu0
        %v4524 = vpop.trf.xlu0
        %4525 = vxpose.xlu0.b32.start [1/16] %v4415, 128
        %4526 = vxpose.xlu0.b32.cont [2/16] %v4420, 128
        %4527 = vxpose.xlu0.b32.cont [3/16] %v4425, 128
        %4528 = vxpose.xlu0.b32.cont [4/16] %v4430, 128
        %4529 = vxpose.xlu0.b32.cont [5/16] %v4435, 128
        %4530 = vxpose.xlu0.b32.cont [6/16] %v4440, 128
        %4531 = vxpose.xlu0.b32.cont [7/16] %v4445, 128
        %4532 = vxpose.xlu0.b32.cont [8/16] %v4450, 128
        %4533 = vxpose.xlu0.b32.cont [9/16] %v4455, 128
        %4534 = vxpose.xlu0.b32.cont [10/16] %v4460, 128
        %4535 = vxpose.xlu0.b32.cont [11/16] %v4465, 128
        %4536 = vxpose.xlu0.b32.cont [12/16] %v4470, 128
        %4537 = vxpose.xlu0.b32.cont [13/16] %v4475, 128
        %4538 = vxpose.xlu0.b32.cont [14/16] %v4480, 128
        %4539 = vxpose.xlu0.b32.cont [15/16] %v4485, 128
        %4540 = vxpose.xlu0.b32.end [16/16] %v4490, 128
        %v4541 = vpop.trf.xlu0
        %v4542 = vpop.trf.xlu0
        %v4543 = vpop.trf.xlu0
        %v4544 = vpop.trf.xlu0
        %v4545 = vpop.trf.xlu0
        %v4546 = vpop.trf.xlu0
        %v4547 = vpop.trf.xlu0
        %v4548 = vpop.trf.xlu0
        %v4549 = vpop.trf.xlu0
        %v4550 = vpop.trf.xlu0
        %v4551 = vpop.trf.xlu0
        %v4552 = vpop.trf.xlu0
        %v4553 = vpop.trf.xlu0
        %v4554 = vpop.trf.xlu0
        %v4555 = vpop.trf.xlu0
        %v4556 = vpop.trf.xlu0
        %4557 = vst [vmem:[%s352] sm:$0xff] %v4509
        %4558 = vst [vmem:[%s352 + $0x8] sm:$0xff] %v4541
        %4559 = vst [vmem:[%s352 + $0x10] sm:$0xff] %v4510
        %4560 = vst [vmem:[%s352 + $0x18] sm:$0xff] %v4542
        %4561 = vst [vmem:[%s352 + $0x20] sm:$0xff] %v4511
        %4562 = vst [vmem:[%s352 + $0x28] sm:$0xff] %v4543
        %4563 = vst [vmem:[%s352 + $0x30] sm:$0xff] %v4512
        %4564 = vst [vmem:[%s352 + $0x38] sm:$0xff] %v4544
        %s4565 = sand.u32 %s247, 1
        %s4566 = scalar_lea.sflag [#allocation7], %s4565
        %s4567 = sand.u32 %s247, 1
        %s4568 = smul.addr %s4567, 64
        %s4569 = scalar_lea.vmem [#allocation6], %s4568
        // Predicated region
        $region68: #{tpu_custom_call.1} parent=59 // pred_check
          %p4570 = pneg %p257
        $region69: #{tpu_custom_call.1} parent=59 // pred_check_branch
          %4572 = sbr.rel (%p4570) target = $region71
        $region70: #{tpu_custom_call.1} parent=59 // pred_region
          %s4574 = ssub.s32 1024, 1024
          %4575 = vsyncadd %s4566, %s4574
          %s4576 = smul.addr %s24, 8
          %s4577 = smul.addr %s4576, 128
          %s4578 = scalar_lea.hbm %s10, %s4577
          %s4579 = sshll.u32 %s4569, 4
          %s4580 = int_to_ptr.vmem [resolvable:$true] %s4579
          %4585 = dma.vmem_to_hbm [thread:$0]  %s4580, 1024, %s4578, %s4566, 256, 256, 16
        $region71: #{tpu_custom_call.1} parent=59 // pred_fallthru
          _
      $region60: #{tpu_custom_call.1} parent=5 // pred_fallthru
        _
      %p4586 = scmp.le.s32.totalorder 2, %s19
      // Predicated region
      $region72: #{tpu_custom_call.1} parent=5 // pred_check
        %p4587 = pneg %p4586
      $region73: #{tpu_custom_call.1} parent=5 // pred_check_branch
        %4589 = sbr.rel (%p4587) target = $region75
      $region74: #{tpu_custom_call.1} parent=5 // pred_region
        %s4590 = ssub.s32 %s19, 2
        // Predicated region
        $region76: #{tpu_custom_call.1} parent=74 // pred_check
          %p4591 = pneg %p263
        $region77: #{tpu_custom_call.1} parent=74 // pred_check_branch
          %4593 = sbr.rel (%p4591) target = $region79
        $region78: #{tpu_custom_call.1} parent=74 // pred_region
          %s4594 = sand.u32 %s248, 1
          %s4595 = scalar_lea.sflag [#allocation7], %s4594
          %s4596 = sand.u32 %s248, 1
          %s4597 = smul.addr %s4596, 64
          %s4598 = scalar_lea.vmem [#allocation6], %s4597
          %4599 = dma.done %s4595, 1024
        $region79: #{tpu_custom_call.1} parent=74 // pred_fallthru
          _
      $region75: #{tpu_custom_call.1} parent=5 // pred_fallthru
        _
    $region6: #{tpu_custom_call.1} parent=1 // loop_footer
      %s23 = sadd.s32 1, %s19
    $region7: #{tpu_custom_call.1} parent=1 // loop_footer_branch
      %18 = sbr.rel target = $region3
    $region8: #{tpu_custom_call.1} parent=1 // loop_exit
      _
    %4600 = vsyncpa [#allocation7], 1
    %s4601 = scalar_lea.sflag [#allocation7], 1
    %4602 = vsyncpa %s4601, 1

</llo_original>
